<compile_context>
chip_gen: v5e
topology: v5e:2x2
jax: 0.10.0
libtpu: 0.0.40
codegen_flags: <defaults>
</compile_context>

<pallas_src>
import jax
import jax.numpy as jnp
from jax.experimental import pallas as pl
from jax.experimental.pallas import tpu as pltpu


N_HIDDEN = 256
N_CLS = 10
N_CLS_PAD = 128        # lane-dense classifier width (cols 10..127 masked via -1e30 bias)
NEG_INF = -1e30


def relations_kernel(sent_ref, cond_ref,
                     w1i_ref, w1j_ref, w1c_ref, b1_ref, rep_ref,
                     w2_ref, b2_ref, w3_ref, b3_ref,
                     fw1_ref, fb1_ref, fw2_ref, fb2_ref, fw3_ref, fb3_ref,
                     out_ref):
    """One grid step = all S*S relation pairs of a block of Bb batch elements."""
    Bb, S, Ea = sent_ref.shape
    n = w2_ref.shape[0]

    sent = sent_ref[...].reshape(Bb * S, Ea)       # (Bb*S, Ea)  compute dtype
    cond = cond_ref[...][:, 0, :]                  # (Bb, E)     compute dtype

    # ---- g layer 1, algebraically split over the concat [obj_i | obj_j | cond] ----
    # relation row (b, p, q) = [sent[b,q], sent[b,p], cond[b]]
    #                        => a_i[b*S+q] + a_j[b*S+p] + a_c[b]
    a_i = jnp.dot(sent, w1i_ref[...], preferred_element_type=jnp.float32)     # (Bb*S, 256)
    a_j = jnp.dot(sent, w1j_ref[...], preferred_element_type=jnp.float32)     # (Bb*S, 256)
    a_c = (jnp.dot(cond, w1c_ref[...], preferred_element_type=jnp.float32)
           + b1_ref[...])                                                     # (Bb, 256)

    # Fused one-hot replication: a single MXU matmul expands and sums the three
    # pieces into the (Bb*S*S, 256) layer-1 pre-activation (bias already in a_c).
    a_cat = jnp.concatenate([a_i, a_j, a_c], axis=0).astype(rep_ref.dtype)    # (2*Bb*S+Bb, 256)
    h = jnp.maximum(
        jnp.dot(rep_ref[...], a_cat, preferred_element_type=jnp.float32), 0.0)  # (Bb*S*S, 256)

    # ---- g layers 2 & 3: dominant MXU work at M = Bb*S*S; f32 accumulate ----
    h = h.astype(w2_ref.dtype)
    h = jnp.maximum(jnp.dot(h, w2_ref[...],
                            preferred_element_type=jnp.float32) + b2_ref[...], 0.0)
    h = h.astype(w3_ref.dtype)
    h = jnp.maximum(jnp.dot(h, w3_ref[...],
                            preferred_element_type=jnp.float32) + b3_ref[...], 0.0)

    # ---- pooling: per-batch-element sum over the S*S pairs (f32) ----
    # S*S = 64 is a multiple of the sublane tile, so this reshape is layout-free.
    pooled = jnp.sum(h.reshape(Bb, S * S, n), axis=1)                         # (Bb, 256)

    # ---- f MLP ----
    y = pooled.astype(fw1_ref.dtype)
    y = jnp.maximum(jnp.dot(y, fw1_ref[...],
                            preferred_element_type=jnp.float32) + fb1_ref[...], 0.0)
    y = y.astype(fw2_ref.dtype)
    y = jnp.maximum(jnp.dot(y, fw2_ref[...],
                            preferred_element_type=jnp.float32) + fb2_ref[...], 0.0)
    # TODO(synk): nn.Dropout treated as identity (eval mode); training-mode dropout not implemented.
    y = y.astype(fw3_ref.dtype)
    logits = (jnp.dot(y, fw3_ref[...], preferred_element_type=jnp.float32)
              + fb3_ref[...])                                                 # (Bb, 128) padded

    # ---- log_softmax over the padded class dim (pad bias = -1e30 -> exp == 0) ----
    m = jnp.max(logits, axis=-1, keepdims=True)
    z = logits - m
    lse = jnp.log(jnp.sum(jnp.exp(z), axis=-1, keepdims=True))
    out_ref[0] = z - lse


def make_coordinate_map(batch_size, max_sentence_len):
    # Matches the PyTorch loop literally: (i / sqrt(S) - 2) / 2 and
    # (i % sqrt(S) - 2) / 2 (Python-3 float division / float modulo).
    i = jnp.arange(max_sentence_len, dtype=jnp.float32)
    sq = float(max_sentence_len) ** 0.5
    c0 = (i / sq - 2.0) / 2.0
    c1 = (jnp.mod(i, sq) - 2.0) / 2.0
    coord = jnp.stack([c0, c1], axis=-1)                       # (S, 2)
    return jnp.broadcast_to(coord[None], (batch_size, max_sentence_len, 2)).astype(jnp.float32)


def init_params(key, embed_dim):
    d_in = (embed_dim + 2) * 2 + embed_dim
    layer_dims = [(d_in, N_HIDDEN), (N_HIDDEN, N_HIDDEN), (N_HIDDEN, N_HIDDEN),     # g
                  (N_HIDDEN, N_HIDDEN), (N_HIDDEN, N_HIDDEN), (N_HIDDEN, N_CLS)]    # f
    params = []
    for fan_in, fan_out in layer_dims:
        key, kw, kb = jax.random.split(key, 3)
        bound = 1.0 / (fan_in ** 0.5)
        w = jax.random.uniform(kw, (fan_in, fan_out), jnp.float32, -bound, bound)
        b = jax.random.uniform(kb, (1, fan_out), jnp.float32, -bound, bound)
        params += [w, b]
    return tuple(params)


def _make_replication_matrix(block_b, max_sentence_len):
    """One-hot matrix fusing obj_i / obj_j / condition replication into one matmul.

    Row r = b*S*S + p*S + q has ones at columns (b*S + q) [selects a_i],
    Bb*S + b*S + p [selects a_j], and 2*Bb*S + b [selects a_c], so that
    T @ vstack([a_i, a_j, a_c]) produces the layer-1 pre-activation for every
    relation pair without materializing the (B*S*S, D_in) relation tensor.
    """
    Bb, S = block_b, max_sentence_len
    r = jnp.arange(Bb * S * S)
    b = r // (S * S)
    p = (r // S) % S
    q = r % S
    t = jnp.zeros((Bb * S * S, 2 * Bb * S + Bb), jnp.float32)
    t = t.at[r, b * S + q].set(1.0)
    t = t.at[r, Bb * S + b * S + p].set(1.0)
    t = t.at[r, 2 * Bb * S + b].set(1.0)
    return t


def _pick_block_b(batch_size, max_sentence_len):
    # Fill the MXU rows: target M = Bb*S*S >= 256 (v6e/v7x tile; >=128 is already
    # fine on v5e) while keeping >= 2 grid steps so v7x's two TCs both get work.
    target = max(1, pl.cdiv(256, max_sentence_len * max_sentence_len))
    return max(1, min(target, max(1, batch_size // 2)))


def relations_network_forward(sentences, condition, coord_map, params, *,
                              compute_dtype=jnp.bfloat16, block_b=None):
    B, S, E = sentences.shape
    Ea = E + 2
    n = N_HIDDEN
    gw1, gb1, gw2, gb2, gw3, gb3, fw1, fb1, fw2, fb2, fw3, fb3 = params

    Bb = _pick_block_b(B, S) if block_b is None else block_b
    n_blocks = pl.cdiv(B, Bb)
    B_pad = n_blocks * Bb

    # Only raw inputs go through HBM (no (B*S*S, D_in) tensor, no pooling matrix).
    sent_aug = jnp.concatenate([sentences, coord_map], axis=2)            # (B, S, E+2)
    cond3 = condition[:, None, :]                                         # (B, 1, E)
    if B_pad != B:                                                        # pad batch to a Bb multiple
        sent_aug = jnp.pad(sent_aug, ((0, B_pad - B), (0, 0), (0, 0)))
        cond3 = jnp.pad(cond3, ((0, B_pad - B), (0, 0), (0, 0)))

    # Split the g layer-1 weight along the [obj_i | obj_j | cond] concat structure.
    w1i, w1j, w1c = gw1[:Ea], gw1[Ea:2 * Ea], gw1[2 * Ea:]
    rep_t = _make_replication_matrix(Bb, S)

    # Lane-dense classifier: zero-padded weight cols, -1e30 padded bias so the
    # in-kernel log_softmax ignores the padding columns (wrapper slices them off).
    fw3p = jnp.zeros((n, N_CLS_PAD), jnp.float32).at[:, :N_CLS].set(fw3)
    fb3p = jnp.full((1, N_CLS_PAD), NEG_INF, jnp.float32).at[:, :N_CLS].set(fb3)

    # All matmul operands in the compute dtype (bf16 by default); biases stay f32
    # and every matmul accumulates in f32 inside the kernel.
    cd = compute_dtype
    args = (sent_aug.astype(cd), cond3.astype(cd),
            w1i.astype(cd), w1j.astype(cd), w1c.astype(cd), gb1, rep_t.astype(cd),
            gw2.astype(cd), gb2, gw3.astype(cd), gb3,
            fw1.astype(cd), fb1, fw2.astype(cd), fb2, fw3p.astype(cd), fb3p)

    def resident_spec(x):                      # same block every grid step -> DMA'd once
        nd = x.ndim
        return pl.BlockSpec(tuple(x.shape), lambda b, _nd=nd: (0,) * _nd)

    in_specs = [
        pl.BlockSpec((Bb, S, Ea), lambda b: (b, 0, 0)),   # Bb batch elements per step
        pl.BlockSpec((Bb, 1, E), lambda b: (b, 0, 0)),
    ] + [resident_spec(x) for x in args[2:]]              # weights/constants stay resident

    out_specs = pl.BlockSpec((1, Bb, N_CLS_PAD), lambda b: (b, 0, 0))

    flops_per_step = (2 * 2 * Bb * S * Ea * n + 2 * Bb * E * n        # g layer 1 (split)
                      + 2 * Bb * S * S * (2 * Bb * S + Bb) * n        # fused replication matmul
                      + 2 * 2 * Bb * S * S * n * n                    # g layers 2 & 3
                      + 2 * 2 * Bb * n * n + 2 * Bb * n * N_CLS_PAD)  # f MLP
    resident_bytes = sum(int(x.size) * x.dtype.itemsize for x in args[2:])
    stream_bytes = sum(int(x.size) * x.dtype.itemsize for x in args[:2])
    cost = pl.CostEstimate(
        flops=int(n_blocks * flops_per_step),
        transcendentals=int(B_pad * (N_CLS_PAD + 1)),
        bytes_accessed=int(resident_bytes + stream_bytes + B_pad * N_CLS_PAD * 4))

    out = pl.pallas_call(
        relations_kernel,
        out_shape=jax.ShapeDtypeStruct((n_blocks, Bb, N_CLS_PAD), jnp.float32),
        grid=(n_blocks,),
        in_specs=in_specs,
        out_specs=out_specs,
        compiler_params=pltpu.CompilerParams(
            dimension_semantics=("parallel",),            # batch blocks independent (2 TCs on v7x)
            vmem_limit_bytes=32 * 1024 * 1024),           # working set ~2 MiB; safe on v5e/v6e/v7x
        cost_estimate=cost,
    )(*args)
    return out.reshape(B_pad, N_CLS_PAD)[:B, :N_CLS]


def reference_forward(sentences, condition, coord_map, params):
    """Pure-JAX f32 reference mirroring the PyTorch module."""
    B, S, E = sentences.shape
    gw1, gb1, gw2, gb2, gw3, gb3, fw1, fb1, fw2, fb2, fw3, fb3 = params
    sent_aug = jnp.concatenate([sentences, coord_map], axis=2)                  # (B, S, E+2)
    obj_i = jnp.broadcast_to(sent_aug[:, None, :, :], (B, S, S, E + 2))         # varies over dim 2
    obj_j = jnp.broadcast_to(sent_aug[:, :, None, :], (B, S, S, E + 2))         # varies over dim 1
    cond = jnp.broadcast_to(condition[:, None, None, :], (B, S, S, E))
    rel = jnp.concatenate([obj_i, obj_j, cond], axis=3).reshape(B * S * S, 3 * E + 4)
    h = jnp.maximum(rel @ gw1 + gb1, 0.0)
    h = jnp.maximum(h @ gw2 + gb2, 0.0)
    h = jnp.maximum(h @ gw3 + gb3, 0.0)
    pooled = h.reshape(B, S * S, N_HIDDEN).sum(axis=1)
    y = jnp.maximum(pooled @ fw1 + fb1, 0.0)
    y = jnp.maximum(y @ fw2 + fb2, 0.0)
    logits = y @ fw3 + fb3
    return jax.nn.log_softmax(logits, axis=-1)


if __name__ == "__main__":
    B, S, E = 8, 8, 32          # batch, max_sentence_len, embed_dim

    key = jax.random.PRNGKey(0)
    k_sent, k_cond, k_params = jax.random.split(key, 3)
    sentences = jax.random.normal(k_sent, (B, S, E), dtype=jnp.float32)
    condition = jax.random.normal(k_cond, (B, E), dtype=jnp.float32)
    coord_map = make_coordinate_map(B, S)
    params = init_params(k_params, E)

    ref = jax.block_until_ready(reference_forward(sentences, condition, coord_map, params))

    # 1) Structural correctness: run the kernel fully in f32 -> tight tolerance.
    out_f32 = jax.block_until_ready(
        relations_network_forward(sentences, condition, coord_map, params,
                                  compute_dtype=jnp.float32))
    assert out_f32.shape == (B, N_CLS)
    assert jnp.allclose(out_f32, ref, atol=2e-3, rtol=2e-3), "f32 kernel/reference mismatch"

    # 2) Performance configuration: bf16 matmul operands (f32 accumulate) -> wiring
    #    sanity check at bf16-level tolerance.
    out = jax.block_until_ready(
        relations_network_forward(sentences, condition, coord_map, params,
                                  compute_dtype=jnp.bfloat16))
    assert out.shape == (B, N_CLS)
    assert jnp.allclose(out, ref, atol=1.5e-1, rtol=1.5e-1), "bf16 kernel/reference mismatch"

    print("KERNEL_OK")
</pallas_src>

<mosaic_0001>
module attributes {stable_mosaic.version = 11 : i64} {
  func.func @relations_kernel(%arg0: i32, %arg1: memref<4x8x34xf32, #tpu.memory_space<vmem>>, %arg2: memref<4x1x32xf32, #tpu.memory_space<vmem>>, %arg3: memref<34x256xf32, #tpu.memory_space<vmem>>, %arg4: memref<34x256xf32, #tpu.memory_space<vmem>>, %arg5: memref<32x256xf32, #tpu.memory_space<vmem>>, %arg6: memref<1x256xf32, #tpu.memory_space<vmem>>, %arg7: memref<256x68xf32, #tpu.memory_space<vmem>>, %arg8: memref<256x256xf32, #tpu.memory_space<vmem>>, %arg9: memref<1x256xf32, #tpu.memory_space<vmem>>, %arg10: memref<256x256xf32, #tpu.memory_space<vmem>>, %arg11: memref<1x256xf32, #tpu.memory_space<vmem>>, %arg12: memref<256x256xf32, #tpu.memory_space<vmem>>, %arg13: memref<1x256xf32, #tpu.memory_space<vmem>>, %arg14: memref<256x256xf32, #tpu.memory_space<vmem>>, %arg15: memref<1x256xf32, #tpu.memory_space<vmem>>, %arg16: memref<256x128xf32, #tpu.memory_space<vmem>>, %arg17: memref<1x128xf32, #tpu.memory_space<vmem>>, %arg18: memref<1x4x128xf32, #tpu.memory_space<vmem>>) attributes {dimension_semantics = [#tpu.dimension_semantics<parallel>], iteration_bounds = array<i64: 2>, scalar_prefetch = 0 : i64, scratch_operands = 0 : i64, tpu.core_type = #tpu.core_type<tc>, window_params = [{transform_indices = @transform_0, window_bounds = array<i64: 4, 8, 34>}, {transform_indices = @transform_1, window_bounds = array<i64: 4, 1, 32>}, {pipeline_mode = #tpu.pipeline_mode<synchronous>, transform_indices = @transform_2, window_bounds = array<i64: 34, 256>}, {pipeline_mode = #tpu.pipeline_mode<synchronous>, transform_indices = @transform_3, window_bounds = array<i64: 34, 256>}, {pipeline_mode = #tpu.pipeline_mode<synchronous>, transform_indices = @transform_4, window_bounds = array<i64: 32, 256>}, {pipeline_mode = #tpu.pipeline_mode<synchronous>, transform_indices = @transform_5, window_bounds = array<i64: 1, 256>}, {pipeline_mode = #tpu.pipeline_mode<synchronous>, transform_indices = @transform_6, window_bounds = array<i64: 256, 68>}, {pipeline_mode = #tpu.pipeline_mode<synchronous>, transform_indices = @transform_7, window_bounds = array<i64: 256, 256>}, {pipeline_mode = #tpu.pipeline_mode<synchronous>, transform_indices = @transform_8, window_bounds = array<i64: 1, 256>}, {pipeline_mode = #tpu.pipeline_mode<synchronous>, transform_indices = @transform_9, window_bounds = array<i64: 256, 256>}, {pipeline_mode = #tpu.pipeline_mode<synchronous>, transform_indices = @transform_10, window_bounds = array<i64: 1, 256>}, {pipeline_mode = #tpu.pipeline_mode<synchronous>, transform_indices = @transform_11, window_bounds = array<i64: 256, 256>}, {pipeline_mode = #tpu.pipeline_mode<synchronous>, transform_indices = @transform_12, window_bounds = array<i64: 1, 256>}, {pipeline_mode = #tpu.pipeline_mode<synchronous>, transform_indices = @transform_13, window_bounds = array<i64: 256, 256>}, {pipeline_mode = #tpu.pipeline_mode<synchronous>, transform_indices = @transform_14, window_bounds = array<i64: 1, 256>}, {pipeline_mode = #tpu.pipeline_mode<synchronous>, transform_indices = @transform_15, window_bounds = array<i64: 256, 128>}, {pipeline_mode = #tpu.pipeline_mode<synchronous>, transform_indices = @transform_16, window_bounds = array<i64: 1, 128>}, {transform_indices = @transform_17, window_bounds = array<i64: 1, 4, 128>}]} {
    %c0 = arith.constant 0 : index
    %c0_0 = arith.constant 0 : index
    %c0_1 = arith.constant 0 : index
    %0 = vector.load %arg1[%c0, %c0_0, %c0_1] : memref<4x8x34xf32, #tpu.memory_space<vmem>>, vector<4x8x34xf32>
    %1 = vector.shape_cast %0 : vector<4x8x34xf32> to vector<32x34xf32>
    %c0_2 = arith.constant 0 : index
    %c0_3 = arith.constant 0 : index
    %c0_4 = arith.constant 0 : index
    %2 = vector.load %arg2[%c0_2, %c0_3, %c0_4] : memref<4x1x32xf32, #tpu.memory_space<vmem>>, vector<4x1x32xf32>
    %3 = vector.shape_cast %2 : vector<4x1x32xf32> to vector<4x32xf32>
    %c0_5 = arith.constant 0 : index
    %c0_6 = arith.constant 0 : index
    %4 = vector.load %arg3[%c0_5, %c0_6] : memref<34x256xf32, #tpu.memory_space<vmem>>, vector<34x256xf32>
    %cst = arith.constant dense<0.000000e+00> : vector<32x256xf32>
    %5 = tpu.matmul %1, %4, %cst {dimension_numbers = #tpu.dot_dimension_numbers<[1], [0], [0], [1], [0, 0, 1, 1], [], []>} : vector<32x34xf32>, vector<34x256xf32>, vector<32x256xf32> -> vector<32x256xf32>
    %c0_7 = arith.constant 0 : index
    %c0_8 = arith.constant 0 : index
    %6 = vector.load %arg4[%c0_7, %c0_8] : memref<34x256xf32, #tpu.memory_space<vmem>>, vector<34x256xf32>
    %cst_9 = arith.constant dense<0.000000e+00> : vector<32x256xf32>
    %7 = tpu.matmul %1, %6, %cst_9 {dimension_numbers = #tpu.dot_dimension_numbers<[1], [0], [0], [1], [0, 0, 1, 1], [], []>} : vector<32x34xf32>, vector<34x256xf32>, vector<32x256xf32> -> vector<32x256xf32>
    %c0_10 = arith.constant 0 : index
    %c0_11 = arith.constant 0 : index
    %8 = vector.load %arg5[%c0_10, %c0_11] : memref<32x256xf32, #tpu.memory_space<vmem>>, vector<32x256xf32>
    %cst_12 = arith.constant dense<0.000000e+00> : vector<4x256xf32>
    %9 = tpu.matmul %3, %8, %cst_12 {dimension_numbers = #tpu.dot_dimension_numbers<[1], [0], [0], [1], [0, 0, 1, 1], [], []>} : vector<4x32xf32>, vector<32x256xf32>, vector<4x256xf32> -> vector<4x256xf32>
    %c0_13 = arith.constant 0 : index
    %c0_14 = arith.constant 0 : index
    %10 = vector.load %arg6[%c0_13, %c0_14] : memref<1x256xf32, #tpu.memory_space<vmem>>, vector<1x256xf32>
    %11 = vector.broadcast %10 : vector<1x256xf32> to vector<4x256xf32>
    %12 = arith.addf %9, %11 : vector<4x256xf32>
    %13 = tpu.concatenate %5, %7, %12 in 0 : vector<32x256xf32>, vector<32x256xf32>, vector<4x256xf32> -> vector<68x256xf32>
    %c0_15 = arith.constant 0 : index
    %c0_16 = arith.constant 0 : index
    %14 = vector.load %arg7[%c0_15, %c0_16] : memref<256x68xf32, #tpu.memory_space<vmem>>, vector<256x68xf32>
    %cst_17 = arith.constant dense<0.000000e+00> : vector<256x256xf32>
    %15 = tpu.matmul %14, %13, %cst_17 {dimension_numbers = #tpu.dot_dimension_numbers<[1], [0], [0], [1], [0, 0, 1, 1], [], []>} : vector<256x68xf32>, vector<68x256xf32>, vector<256x256xf32> -> vector<256x256xf32>
    %cst_18 = arith.constant 0.000000e+00 : f32
    %16 = vector.broadcast %cst_18 : f32 to vector<256x256xf32>
    %17 = arith.maximumf %15, %16 : vector<256x256xf32>
    %c0_19 = arith.constant 0 : index
    %c0_20 = arith.constant 0 : index
    %18 = vector.load %arg8[%c0_19, %c0_20] : memref<256x256xf32, #tpu.memory_space<vmem>>, vector<256x256xf32>
    %cst_21 = arith.constant dense<0.000000e+00> : vector<256x256xf32>
    %19 = tpu.matmul %17, %18, %cst_21 {dimension_numbers = #tpu.dot_dimension_numbers<[1], [0], [0], [1], [0, 0, 1, 1], [], []>} : vector<256x256xf32>, vector<256x256xf32>, vector<256x256xf32> -> vector<256x256xf32>
    %c0_22 = arith.constant 0 : index
    %c0_23 = arith.constant 0 : index
    %20 = vector.load %arg9[%c0_22, %c0_23] : memref<1x256xf32, #tpu.memory_space<vmem>>, vector<1x256xf32>
    %21 = vector.broadcast %20 : vector<1x256xf32> to vector<256x256xf32>
    %22 = arith.addf %19, %21 : vector<256x256xf32>
    %cst_24 = arith.constant 0.000000e+00 : f32
    %23 = vector.broadcast %cst_24 : f32 to vector<256x256xf32>
    %24 = arith.maximumf %22, %23 : vector<256x256xf32>
    %c0_25 = arith.constant 0 : index
    %c0_26 = arith.constant 0 : index
    %25 = vector.load %arg10[%c0_25, %c0_26] : memref<256x256xf32, #tpu.memory_space<vmem>>, vector<256x256xf32>
    %cst_27 = arith.constant dense<0.000000e+00> : vector<256x256xf32>
    %26 = tpu.matmul %24, %25, %cst_27 {dimension_numbers = #tpu.dot_dimension_numbers<[1], [0], [0], [1], [0, 0, 1, 1], [], []>} : vector<256x256xf32>, vector<256x256xf32>, vector<256x256xf32> -> vector<256x256xf32>
    %c0_28 = arith.constant 0 : index
    %c0_29 = arith.constant 0 : index
    %27 = vector.load %arg11[%c0_28, %c0_29] : memref<1x256xf32, #tpu.memory_space<vmem>>, vector<1x256xf32>
    %28 = vector.broadcast %27 : vector<1x256xf32> to vector<256x256xf32>
    %29 = arith.addf %26, %28 : vector<256x256xf32>
    %cst_30 = arith.constant 0.000000e+00 : f32
    %30 = vector.broadcast %cst_30 : f32 to vector<256x256xf32>
    %31 = arith.maximumf %29, %30 : vector<256x256xf32>
    %32 = vector.shape_cast %31 : vector<256x256xf32> to vector<4x64x256xf32>
    %cst_31 = arith.constant dense<0.000000e+00> : vector<4x256xf32>
    %33 = vector.multi_reduction <add>, %32, %cst_31 [1] : vector<4x64x256xf32> to vector<4x256xf32>
    %c0_32 = arith.constant 0 : index
    %c0_33 = arith.constant 0 : index
    %34 = vector.load %arg12[%c0_32, %c0_33] : memref<256x256xf32, #tpu.memory_space<vmem>>, vector<256x256xf32>
    %cst_34 = arith.constant dense<0.000000e+00> : vector<4x256xf32>
    %35 = tpu.matmul %33, %34, %cst_34 {dimension_numbers = #tpu.dot_dimension_numbers<[1], [0], [0], [1], [0, 0, 1, 1], [], []>} : vector<4x256xf32>, vector<256x256xf32>, vector<4x256xf32> -> vector<4x256xf32>
    %c0_35 = arith.constant 0 : index
    %c0_36 = arith.constant 0 : index
    %36 = vector.load %arg13[%c0_35, %c0_36] : memref<1x256xf32, #tpu.memory_space<vmem>>, vector<1x256xf32>
    %37 = vector.broadcast %36 : vector<1x256xf32> to vector<4x256xf32>
    %38 = arith.addf %35, %37 : vector<4x256xf32>
    %cst_37 = arith.constant 0.000000e+00 : f32
    %39 = vector.broadcast %cst_37 : f32 to vector<4x256xf32>
    %40 = arith.maximumf %38, %39 : vector<4x256xf32>
    %c0_38 = arith.constant 0 : index
    %c0_39 = arith.constant 0 : index
    %41 = vector.load %arg14[%c0_38, %c0_39] : memref<256x256xf32, #tpu.memory_space<vmem>>, vector<256x256xf32>
    %cst_40 = arith.constant dense<0.000000e+00> : vector<4x256xf32>
    %42 = tpu.matmul %40, %41, %cst_40 {dimension_numbers = #tpu.dot_dimension_numbers<[1], [0], [0], [1], [0, 0, 1, 1], [], []>} : vector<4x256xf32>, vector<256x256xf32>, vector<4x256xf32> -> vector<4x256xf32>
    %c0_41 = arith.constant 0 : index
    %c0_42 = arith.constant 0 : index
    %43 = vector.load %arg15[%c0_41, %c0_42] : memref<1x256xf32, #tpu.memory_space<vmem>>, vector<1x256xf32>
    %44 = vector.broadcast %43 : vector<1x256xf32> to vector<4x256xf32>
    %45 = arith.addf %42, %44 : vector<4x256xf32>
    %cst_43 = arith.constant 0.000000e+00 : f32
    %46 = vector.broadcast %cst_43 : f32 to vector<4x256xf32>
    %47 = arith.maximumf %45, %46 : vector<4x256xf32>
    %c0_44 = arith.constant 0 : index
    %c0_45 = arith.constant 0 : index
    %48 = vector.load %arg16[%c0_44, %c0_45] : memref<256x128xf32, #tpu.memory_space<vmem>>, vector<256x128xf32>
    %cst_46 = arith.constant dense<0.000000e+00> : vector<4x128xf32>
    %49 = tpu.matmul %47, %48, %cst_46 {dimension_numbers = #tpu.dot_dimension_numbers<[1], [0], [0], [1], [0, 0, 1, 1], [], []>} : vector<4x256xf32>, vector<256x128xf32>, vector<4x128xf32> -> vector<4x128xf32>
    %c0_47 = arith.constant 0 : index
    %c0_48 = arith.constant 0 : index
    %50 = vector.load %arg17[%c0_47, %c0_48] : memref<1x128xf32, #tpu.memory_space<vmem>>, vector<1x128xf32>
    %51 = vector.broadcast %50 : vector<1x128xf32> to vector<4x128xf32>
    %52 = arith.addf %49, %51 : vector<4x128xf32>
    %cst_49 = arith.constant dense<0xFF800000> : vector<4xf32>
    %53 = vector.multi_reduction <maximumf>, %52, %cst_49 [1] : vector<4x128xf32> to vector<4xf32>
    %54 = vector.shape_cast %53 : vector<4xf32> to vector<4x1xf32>
    %55 = vector.broadcast %54 : vector<4x1xf32> to vector<4x128xf32>
    %56 = arith.subf %52, %55 : vector<4x128xf32>
    %57 = math.exp %56 : vector<4x128xf32>
    %cst_50 = arith.constant dense<0.000000e+00> : vector<4xf32>
    %58 = vector.multi_reduction <add>, %57, %cst_50 [1] : vector<4x128xf32> to vector<4xf32>
    %59 = vector.shape_cast %58 : vector<4xf32> to vector<4x1xf32>
    %60 = math.log %59 : vector<4x1xf32>
    %61 = vector.broadcast %60 : vector<4x1xf32> to vector<4x128xf32>
    %62 = arith.subf %56, %61 : vector<4x128xf32>
    %c0_51 = arith.constant 0 : index
    %c0_52 = arith.constant 0 : index
    %c0_53 = arith.constant 0 : index
    %63 = vector.load %arg18[%c0_51, %c0_52, %c0_53] : memref<1x4x128xf32, #tpu.memory_space<vmem>>, vector<1x4x128xf32>
    %64 = vector.shape_cast %63 : vector<1x4x128xf32> to vector<4x128xf32>
    %65 = vector.shape_cast %62 : vector<4x128xf32> to vector<1x4x128xf32>
    tpu.vector_store %arg18[%c0_51, %c0_52, %c0_53], %65 {strides = array<i32>} : memref<1x4x128xf32, #tpu.memory_space<vmem>>, vector<1x4x128xf32>,
    return
  }
  func.func @transform_0(%arg0: i32) -> (i32, i32, i32) {
    %c0_i32 = arith.constant 0 : i32
    %c0_i32_0 = arith.constant 0 : i32
    %c0_i32_1 = arith.constant 0 : i32
    return %arg0, %c0_i32, %c0_i32_0 : i32, i32, i32
  }
  func.func @transform_1(%arg0: i32) -> (i32, i32, i32) {
    %c0_i32 = arith.constant 0 : i32
    %c0_i32_0 = arith.constant 0 : i32
    %c0_i32_1 = arith.constant 0 : i32
    return %arg0, %c0_i32, %c0_i32_0 : i32, i32, i32
  }
  func.func @transform_2(%arg0: i32) -> (i32, i32) {
    %c0_i32 = arith.constant 0 : i32
    %c0_i32_0 = arith.constant 0 : i32
    %c0_i32_1 = arith.constant 0 : i32
    return %c0_i32, %c0_i32_0 : i32, i32
  }
  func.func @transform_3(%arg0: i32) -> (i32, i32) {
    %c0_i32 = arith.constant 0 : i32
    %c0_i32_0 = arith.constant 0 : i32
    %c0_i32_1 = arith.constant 0 : i32
    return %c0_i32, %c0_i32_0 : i32, i32
  }
  func.func @transform_4(%arg0: i32) -> (i32, i32) {
    %c0_i32 = arith.constant 0 : i32
    %c0_i32_0 = arith.constant 0 : i32
    %c0_i32_1 = arith.constant 0 : i32
    return %c0_i32, %c0_i32_0 : i32, i32
  }
  func.func @transform_5(%arg0: i32) -> (i32, i32) {
    %c0_i32 = arith.constant 0 : i32
    %c0_i32_0 = arith.constant 0 : i32
    %c0_i32_1 = arith.constant 0 : i32
    return %c0_i32, %c0_i32_0 : i32, i32
  }
  func.func @transform_6(%arg0: i32) -> (i32, i32) {
    %c0_i32 = arith.constant 0 : i32
    %c0_i32_0 = arith.constant 0 : i32
    %c0_i32_1 = arith.constant 0 : i32
    return %c0_i32, %c0_i32_0 : i32, i32
  }
  func.func @transform_7(%arg0: i32) -> (i32, i32) {
    %c0_i32 = arith.constant 0 : i32
    %c0_i32_0 = arith.constant 0 : i32
    %c0_i32_1 = arith.constant 0 : i32
    return %c0_i32, %c0_i32_0 : i32, i32
  }
  func.func @transform_8(%arg0: i32) -> (i32, i32) {
    %c0_i32 = arith.constant 0 : i32
    %c0_i32_0 = arith.constant 0 : i32
    %c0_i32_1 = arith.constant 0 : i32
    return %c0_i32, %c0_i32_0 : i32, i32
  }
  func.func @transform_9(%arg0: i32) -> (i32, i32) {
    %c0_i32 = arith.constant 0 : i32
    %c0_i32_0 = arith.constant 0 : i32
    %c0_i32_1 = arith.constant 0 : i32
    return %c0_i32, %c0_i32_0 : i32, i32
  }
  func.func @transform_10(%arg0: i32) -> (i32, i32) {
    %c0_i32 = arith.constant 0 : i32
    %c0_i32_0 = arith.constant 0 : i32
    %c0_i32_1 = arith.constant 0 : i32
    return %c0_i32, %c0_i32_0 : i32, i32
  }
  func.func @transform_11(%arg0: i32) -> (i32, i32) {
    %c0_i32 = arith.constant 0 : i32
    %c0_i32_0 = arith.constant 0 : i32
    %c0_i32_1 = arith.constant 0 : i32
    return %c0_i32, %c0_i32_0 : i32, i32
  }
  func.func @transform_12(%arg0: i32) -> (i32, i32) {
    %c0_i32 = arith.constant 0 : i32
    %c0_i32_0 = arith.constant 0 : i32
    %c0_i32_1 = arith.constant 0 : i32
    return %c0_i32, %c0_i32_0 : i32, i32
  }
  func.func @transform_13(%arg0: i32) -> (i32, i32) {
    %c0_i32 = arith.constant 0 : i32
    %c0_i32_0 = arith.constant 0 : i32
    %c0_i32_1 = arith.constant 0 : i32
    return %c0_i32, %c0_i32_0 : i32, i32
  }
  func.func @transform_14(%arg0: i32) -> (i32, i32) {
    %c0_i32 = arith.constant 0 : i32
    %c0_i32_0 = arith.constant 0 : i32
    %c0_i32_1 = arith.constant 0 : i32
    return %c0_i32, %c0_i32_0 : i32, i32
  }
  func.func @transform_15(%arg0: i32) -> (i32, i32) {
    %c0_i32 = arith.constant 0 : i32
    %c0_i32_0 = arith.constant 0 : i32
    %c0_i32_1 = arith.constant 0 : i32
    return %c0_i32, %c0_i32_0 : i32, i32
  }
  func.func @transform_16(%arg0: i32) -> (i32, i32) {
    %c0_i32 = arith.constant 0 : i32
    %c0_i32_0 = arith.constant 0 : i32
    %c0_i32_1 = arith.constant 0 : i32
    return %c0_i32, %c0_i32_0 : i32, i32
  }
  func.func @transform_17(%arg0: i32) -> (i32, i32, i32) {
    %c0_i32 = arith.constant 0 : i32
    %c0_i32_0 = arith.constant 0 : i32
    %c0_i32_1 = arith.constant 0 : i32
    return %arg0, %c0_i32, %c0_i32_0 : i32, i32, i32
  }
}

</mosaic_0001>

<llo_original>
// kernel: tpu_custom_call.1
$region0: #{tpu_custom_call.1}
  #allocation0 [shape = 'u32[]', space=smem, size = 0x4, offset = 0x4, fixed_abs, tag = 'smem constant byte address 0x4 - core index']
  #allocation1 [shape = 'u32[72,128]{1,0:T(1,128)}', space=vmem, size = 0x9000, scoped, tag = 'internal scratch']
  %s0 = inlined_call_operand.vmem [shape: f32[8,8,34], index: 0, kind: input, shape index: {}]
  %s1 = inlined_call_operand.vmem [shape: f32[8,1,32], index: 1, kind: input, shape index: {}]
  %s2 = inlined_call_operand.vmem [shape: f32[34,256], index: 2, kind: input, shape index: {}]
  %s3 = inlined_call_operand.hbm [shape: f32[34,256], index: 3, kind: input, shape index: {}]
  %s4 = inlined_call_operand.hbm [shape: f32[32,256], index: 4, kind: input, shape index: {}]
  %s5 = inlined_call_operand.vmem [shape: f32[1,256], index: 5, kind: input, shape index: {}]
  %s6 = inlined_call_operand.vmem [shape: f32[256,68], index: 6, kind: input, shape index: {}]
  %s7 = inlined_call_operand.hbm [shape: f32[256,256], index: 7, kind: input, shape index: {}]
  %s8 = inlined_call_operand.vmem [shape: f32[1,256], index: 8, kind: input, shape index: {}]
  %s9 = inlined_call_operand.hbm [shape: f32[256,256], index: 9, kind: input, shape index: {}]
  %s10 = inlined_call_operand.vmem [shape: f32[1,256], index: 10, kind: input, shape index: {}]
  %s11 = inlined_call_operand.hbm [shape: f32[256,256], index: 11, kind: input, shape index: {}]
  %s12 = inlined_call_operand.hbm [shape: f32[1,256], index: 12, kind: input, shape index: {}]
  %s13 = inlined_call_operand.hbm [shape: f32[256,256], index: 13, kind: input, shape index: {}]
  %s14 = inlined_call_operand.hbm [shape: f32[1,256], index: 14, kind: input, shape index: {}]
  %s15 = inlined_call_operand.vmem [shape: f32[256,128], index: 15, kind: input, shape index: {}]
  %s16 = inlined_call_operand.hbm [shape: f32[1,128], index: 16, kind: input, shape index: {}]
  %s17 = inlined_call_operand.hbm [shape: f32[2,4,128], index: 17, kind: output, shape index: {}]
  %s18 = sld [smem:[#allocation0]]
  $region137: #{tpu_custom_call.1} parent=0
    _
  %s20 = ssub.s32 1, %s18
  %s21 = scalar_select 0, %s20, %s18
  $region1: #{tpu_custom_call.1} parent=0
    #allocation2 [shape = 'u8[40960]{0}', space=vmem, size = 0xa000, scoped, tag = 'input window, operand 3, single buffered']
    #allocation3 [shape = 's32[2]{0}', space=sflag, size = 0x8, scoped, tag = 'scoped memory for tpu_custom_call.1']
    #allocation4 [shape = 's32[2]{0}', space=sflag, size = 0x8, scoped, tag = 'scoped memory for tpu_custom_call.1']
    #allocation5 [shape = 'u8[32768]{0}', space=vmem, size = 0x8000, scoped, tag = 'input window, operand 4, single buffered']
    #allocation6 [shape = 's32[1]{0}', space=sflag, size = 0x4, scoped, tag = 'scoped memory for tpu_custom_call.1']
    #allocation7 [shape = 'u8[262144]{0}', space=vmem, size = 0x40000, scoped, tag = 'input window, operand 7, single buffered']
    #allocation8 [shape = 'u8[262144]{0}', space=vmem, size = 0x40000, scoped, tag = 'input window, operand 9, single buffered']
    #allocation9 [shape = 's32[1]{0}', space=sflag, size = 0x4, scoped, tag = 'scoped memory for tpu_custom_call.1']
    #allocation10 [shape = 'u8[262144]{0}', space=vmem, size = 0x40000, scoped, tag = 'input window, operand 11, single buffered']
    #allocation11 [shape = 'u8[1024]{0}', space=vmem, size = 0x400, scoped, tag = 'input window, operand 12, single buffered']
    #allocation12 [shape = 's32[1]{0}', space=sflag, size = 0x4, scoped, tag = 'scoped memory for tpu_custom_call.1']
    #allocation13 [shape = 'u8[262144]{0}', space=vmem, size = 0x40000, scoped, tag = 'input window, operand 13, single buffered']
    #allocation14 [shape = 'u8[1024]{0}', space=vmem, size = 0x400, scoped, tag = 'input window, operand 14, single buffered']
    #allocation15 [shape = 's32[1]{0}', space=sflag, size = 0x4, scoped, tag = 'scoped memory for tpu_custom_call.1']
    #allocation16 [shape = 'u8[512]{0}', space=vmem, size = 0x400, scoped, tag = 'input window, operand 16, single buffered']
    #allocation17 [shape = 'u8[4096]{0}', space=vmem, size = 0x1000, scoped, tag = 'output window, operand 0']
    %22 = vsyncpa [#allocation3], 0
    %23 = vsyncpa [#allocation6], 0
    %24 = vsyncpa [#allocation9], 0
    %25 = vsyncpa [#allocation12], 0
    %26 = vsyncpa [#allocation15], 0
    %27 = vsyncpa [#allocation4], 0
    %s28 = scalar_lea.sflag [#allocation4], 1
    %29 = vsyncpa %s28, 0
    loop: start=0, step=1, limit=4
    $region2: #{tpu_custom_call.1} parent=1 // loop_pre_header
      _
    $region3: #{tpu_custom_call.1} parent=1 // loop_header
      %s31 = sphi 0, %s35
      %p32 = scmp.ge.s32.totalorder %s31, 4
      %s41 = sphi 0, %s43
      %s44 = sphi 0, %s41
      %s45 = sphi 0, %s44
      %s61 = sphi 0, %s45
      %s67 = sphi 0, %s69
      %s70 = sphi 0, %s67
      %s71 = sphi 0, %s70
      %s87 = sphi 0, %s71
      %s91 = sphi 0, %s91
      %s93 = sphi 0, %s91
      %s94 = sphi 0, %s93
      %s108 = sphi 0, %s94
      %s112 = sphi 0, %s112
      %s114 = sphi 0, %s112
      %s115 = sphi 0, %s114
      %s129 = sphi 0, %s115
      %s133 = sphi 0, %s133
      %s135 = sphi 0, %s133
      %s136 = sphi 0, %s135
      %s150 = sphi 0, %s136
      %s154 = sphi 0, %s154
      %s156 = sphi 0, %s154
      %s157 = sphi 0, %s156
      %s171 = sphi 0, %s157
      %s175 = sphi 0, %s175
      %s177 = sphi 0, %s175
      %s178 = sphi 0, %s177
      %s192 = sphi 0, %s178
      %s196 = sphi 0, %s196
      %s198 = sphi 0, %s196
      %s199 = sphi 0, %s198
      %s213 = sphi 0, %s199
      %s217 = sphi 0, %s217
      %s219 = sphi 0, %s217
      %s220 = sphi 0, %s219
      %s234 = sphi 0, %s220
      %s238 = sphi 0, %s238
      %s240 = sphi 0, %s238
      %s241 = sphi 0, %s240
      %s255 = sphi 0, %s241
      %s259 = sphi 0, %s259
      %s261 = sphi 0, %s259
      %s262 = sphi 0, %s261
      %s276 = sphi 0, %s262
      %s280 = sphi 0, %s280
      %s282 = sphi 0, %s280
      %s283 = sphi 0, %s282
      %s297 = sphi 0, %s283
      %s301 = sphi 0, %s301
      %s303 = sphi 0, %s301
      %s304 = sphi 0, %s303
      %s318 = sphi 0, %s304
      %s322 = sphi 0, %s322
      %s324 = sphi 0, %s322
      %s325 = sphi 0, %s324
      %s339 = sphi 0, %s325
      %s343 = sphi 0, %s343
      %s345 = sphi 0, %s343
      %s346 = sphi 0, %s345
      %s360 = sphi 0, %s346
      %s364 = sphi 0, %s364
      %s366 = sphi 0, %s364
      %s367 = sphi 0, %s366
      %s381 = sphi 0, %s367
      %s385 = sphi 0, %s385
      %s387 = sphi 0, %s385
      %s388 = sphi 0, %s387
      %s402 = sphi 0, %s388
      %s408 = sphi 0, %s410
      %s411 = sphi 0, %s408
      %s412 = sphi 0, %s411
      %s428 = sphi 0, %s412
    $region4: #{tpu_custom_call.1} parent=1 // loop_header_branch
      %34 = sbr.rel (%p32) target = $region8
    $region5: #{tpu_custom_call.1} parent=1 // loop_body
      %s36 = ssub.s32 %s31, 1
      %s37 = ssub.s32 %s31, 2
      %s38 = sadd.s32 %s31, 1
      %s39 = ssub.s32 %s31, %s38
      %p40 = scmp.eq.s32.totalorder %s39, 0
      %s42 = sadd.s32 %s41, 1
      %s43 = scalar_select %p40, %s41, %s42
      %p46 = pneg %p40
      %p47 = scmp.eq.s32.totalorder %s31, 1
      %p48 = por %p46, %p47
      %p49 = scmp.ne.s32.totalorder %s41, %s44
      %p50 = scmp.eq.s32.totalorder %s31, 0
      %p51 = por %p49, %p50
      %p52 = scmp.ne.s32.totalorder %s41, %s44
      %p53 = scmp.eq.s32.totalorder %s36, 1
      %p54 = por %p52, %p53
      %p55 = scmp.ne.s32.totalorder %s44, %s45
      %p56 = scmp.eq.s32.totalorder %s36, 0
      %p57 = por %p55, %p56
      %p58 = scmp.ne.s32.totalorder %s44, %s45
      %p59 = scmp.eq.s32.totalorder %s37, 1
      %p60 = por %p58, %p59
      %p62 = scmp.ne.s32.totalorder %s45, %s61
      %p63 = scmp.eq.s32.totalorder %s37, 0
      %p64 = por %p62, %p63
      %s65 = ssub.s32 %s31, %s38
      %p66 = scmp.eq.s32.totalorder %s65, 0
      %s68 = sadd.s32 %s67, 1
      %s69 = scalar_select %p66, %s67, %s68
      %p72 = pneg %p66
      %p73 = scmp.eq.s32.totalorder %s31, 1
      %p74 = por %p72, %p73
      %p75 = scmp.ne.s32.totalorder %s67, %s70
      %p76 = scmp.eq.s32.totalorder %s31, 0
      %p77 = por %p75, %p76
      %p78 = scmp.ne.s32.totalorder %s67, %s70
      %p79 = scmp.eq.s32.totalorder %s36, 1
      %p80 = por %p78, %p79
      %p81 = scmp.ne.s32.totalorder %s70, %s71
      %p82 = scmp.eq.s32.totalorder %s36, 0
      %p83 = por %p81, %p82
      %p84 = scmp.ne.s32.totalorder %s70, %s71
      %p85 = scmp.eq.s32.totalorder %s37, 1
      %p86 = por %p84, %p85
      %p88 = scmp.ne.s32.totalorder %s71, %s87
      %p89 = scmp.eq.s32.totalorder %s37, 0
      %p90 = por %p88, %p89
      %s92 = sadd.s32 %s91, 1
      %p95 = scmp.eq.s32.totalorder %s31, 1
      %p96 = scmp.ne.s32.totalorder %s91, %s93
      %p97 = scmp.eq.s32.totalorder %s31, 0
      %p98 = por %p96, %p97
      %p99 = scmp.ne.s32.totalorder %s91, %s93
      %p100 = scmp.eq.s32.totalorder %s36, 1
      %p101 = por %p99, %p100
      %p102 = scmp.ne.s32.totalorder %s93, %s94
      %p103 = scmp.eq.s32.totalorder %s36, 0
      %p104 = por %p102, %p103
      %p105 = scmp.ne.s32.totalorder %s93, %s94
      %p106 = scmp.eq.s32.totalorder %s37, 1
      %p107 = por %p105, %p106
      %p109 = scmp.ne.s32.totalorder %s94, %s108
      %p110 = scmp.eq.s32.totalorder %s37, 0
      %p111 = por %p109, %p110
      %s113 = sadd.s32 %s112, 1
      %p116 = scmp.eq.s32.totalorder %s31, 1
      %p117 = scmp.ne.s32.totalorder %s112, %s114
      %p118 = scmp.eq.s32.totalorder %s31, 0
      %p119 = por %p117, %p118
      %p120 = scmp.ne.s32.totalorder %s112, %s114
      %p121 = scmp.eq.s32.totalorder %s36, 1
      %p122 = por %p120, %p121
      %p123 = scmp.ne.s32.totalorder %s114, %s115
      %p124 = scmp.eq.s32.totalorder %s36, 0
      %p125 = por %p123, %p124
      %p126 = scmp.ne.s32.totalorder %s114, %s115
      %p127 = scmp.eq.s32.totalorder %s37, 1
      %p128 = por %p126, %p127
      %p130 = scmp.ne.s32.totalorder %s115, %s129
      %p131 = scmp.eq.s32.totalorder %s37, 0
      %p132 = por %p130, %p131
      %s134 = sadd.s32 %s133, 1
      %p137 = scmp.eq.s32.totalorder %s31, 1
      %p138 = scmp.ne.s32.totalorder %s133, %s135
      %p139 = scmp.eq.s32.totalorder %s31, 0
      %p140 = por %p138, %p139
      %p141 = scmp.ne.s32.totalorder %s133, %s135
      %p142 = scmp.eq.s32.totalorder %s36, 1
      %p143 = por %p141, %p142
      %p144 = scmp.ne.s32.totalorder %s135, %s136
      %p145 = scmp.eq.s32.totalorder %s36, 0
      %p146 = por %p144, %p145
      %p147 = scmp.ne.s32.totalorder %s135, %s136
      %p148 = scmp.eq.s32.totalorder %s37, 1
      %p149 = por %p147, %p148
      %p151 = scmp.ne.s32.totalorder %s136, %s150
      %p152 = scmp.eq.s32.totalorder %s37, 0
      %p153 = por %p151, %p152
      %s155 = sadd.s32 %s154, 1
      %p158 = scmp.eq.s32.totalorder %s31, 1
      %p159 = scmp.ne.s32.totalorder %s154, %s156
      %p160 = scmp.eq.s32.totalorder %s31, 0
      %p161 = por %p159, %p160
      %p162 = scmp.ne.s32.totalorder %s154, %s156
      %p163 = scmp.eq.s32.totalorder %s36, 1
      %p164 = por %p162, %p163
      %p165 = scmp.ne.s32.totalorder %s156, %s157
      %p166 = scmp.eq.s32.totalorder %s36, 0
      %p167 = por %p165, %p166
      %p168 = scmp.ne.s32.totalorder %s156, %s157
      %p169 = scmp.eq.s32.totalorder %s37, 1
      %p170 = por %p168, %p169
      %p172 = scmp.ne.s32.totalorder %s157, %s171
      %p173 = scmp.eq.s32.totalorder %s37, 0
      %p174 = por %p172, %p173
      %s176 = sadd.s32 %s175, 1
      %p179 = scmp.eq.s32.totalorder %s31, 1
      %p180 = scmp.ne.s32.totalorder %s175, %s177
      %p181 = scmp.eq.s32.totalorder %s31, 0
      %p182 = por %p180, %p181
      %p183 = scmp.ne.s32.totalorder %s175, %s177
      %p184 = scmp.eq.s32.totalorder %s36, 1
      %p185 = por %p183, %p184
      %p186 = scmp.ne.s32.totalorder %s177, %s178
      %p187 = scmp.eq.s32.totalorder %s36, 0
      %p188 = por %p186, %p187
      %p189 = scmp.ne.s32.totalorder %s177, %s178
      %p190 = scmp.eq.s32.totalorder %s37, 1
      %p191 = por %p189, %p190
      %p193 = scmp.ne.s32.totalorder %s178, %s192
      %p194 = scmp.eq.s32.totalorder %s37, 0
      %p195 = por %p193, %p194
      %s197 = sadd.s32 %s196, 1
      %p200 = scmp.eq.s32.totalorder %s31, 1
      %p201 = scmp.ne.s32.totalorder %s196, %s198
      %p202 = scmp.eq.s32.totalorder %s31, 0
      %p203 = por %p201, %p202
      %p204 = scmp.ne.s32.totalorder %s196, %s198
      %p205 = scmp.eq.s32.totalorder %s36, 1
      %p206 = por %p204, %p205
      %p207 = scmp.ne.s32.totalorder %s198, %s199
      %p208 = scmp.eq.s32.totalorder %s36, 0
      %p209 = por %p207, %p208
      %p210 = scmp.ne.s32.totalorder %s198, %s199
      %p211 = scmp.eq.s32.totalorder %s37, 1
      %p212 = por %p210, %p211
      %p214 = scmp.ne.s32.totalorder %s199, %s213
      %p215 = scmp.eq.s32.totalorder %s37, 0
      %p216 = por %p214, %p215
      %s218 = sadd.s32 %s217, 1
      %p221 = scmp.eq.s32.totalorder %s31, 1
      %p222 = scmp.ne.s32.totalorder %s217, %s219
      %p223 = scmp.eq.s32.totalorder %s31, 0
      %p224 = por %p222, %p223
      %p225 = scmp.ne.s32.totalorder %s217, %s219
      %p226 = scmp.eq.s32.totalorder %s36, 1
      %p227 = por %p225, %p226
      %p228 = scmp.ne.s32.totalorder %s219, %s220
      %p229 = scmp.eq.s32.totalorder %s36, 0
      %p230 = por %p228, %p229
      %p231 = scmp.ne.s32.totalorder %s219, %s220
      %p232 = scmp.eq.s32.totalorder %s37, 1
      %p233 = por %p231, %p232
      %p235 = scmp.ne.s32.totalorder %s220, %s234
      %p236 = scmp.eq.s32.totalorder %s37, 0
      %p237 = por %p235, %p236
      %s239 = sadd.s32 %s238, 1
      %p242 = scmp.eq.s32.totalorder %s31, 1
      %p243 = scmp.ne.s32.totalorder %s238, %s240
      %p244 = scmp.eq.s32.totalorder %s31, 0
      %p245 = por %p243, %p244
      %p246 = scmp.ne.s32.totalorder %s238, %s240
      %p247 = scmp.eq.s32.totalorder %s36, 1
      %p248 = por %p246, %p247
      %p249 = scmp.ne.s32.totalorder %s240, %s241
      %p250 = scmp.eq.s32.totalorder %s36, 0
      %p251 = por %p249, %p250
      %p252 = scmp.ne.s32.totalorder %s240, %s241
      %p253 = scmp.eq.s32.totalorder %s37, 1
      %p254 = por %p252, %p253
      %p256 = scmp.ne.s32.totalorder %s241, %s255
      %p257 = scmp.eq.s32.totalorder %s37, 0
      %p258 = por %p256, %p257
      %s260 = sadd.s32 %s259, 1
      %p263 = scmp.eq.s32.totalorder %s31, 1
      %p264 = scmp.ne.s32.totalorder %s259, %s261
      %p265 = scmp.eq.s32.totalorder %s31, 0
      %p266 = por %p264, %p265
      %p267 = scmp.ne.s32.totalorder %s259, %s261
      %p268 = scmp.eq.s32.totalorder %s36, 1
      %p269 = por %p267, %p268
      %p270 = scmp.ne.s32.totalorder %s261, %s262
      %p271 = scmp.eq.s32.totalorder %s36, 0
      %p272 = por %p270, %p271
      %p273 = scmp.ne.s32.totalorder %s261, %s262
      %p274 = scmp.eq.s32.totalorder %s37, 1
      %p275 = por %p273, %p274
      %p277 = scmp.ne.s32.totalorder %s262, %s276
      %p278 = scmp.eq.s32.totalorder %s37, 0
      %p279 = por %p277, %p278
      %s281 = sadd.s32 %s280, 1
      %p284 = scmp.eq.s32.totalorder %s31, 1
      %p285 = scmp.ne.s32.totalorder %s280, %s282
      %p286 = scmp.eq.s32.totalorder %s31, 0
      %p287 = por %p285, %p286
      %p288 = scmp.ne.s32.totalorder %s280, %s282
      %p289 = scmp.eq.s32.totalorder %s36, 1
      %p290 = por %p288, %p289
      %p291 = scmp.ne.s32.totalorder %s282, %s283
      %p292 = scmp.eq.s32.totalorder %s36, 0
      %p293 = por %p291, %p292
      %p294 = scmp.ne.s32.totalorder %s282, %s283
      %p295 = scmp.eq.s32.totalorder %s37, 1
      %p296 = por %p294, %p295
      %p298 = scmp.ne.s32.totalorder %s283, %s297
      %p299 = scmp.eq.s32.totalorder %s37, 0
      %p300 = por %p298, %p299
      %s302 = sadd.s32 %s301, 1
      %p305 = scmp.eq.s32.totalorder %s31, 1
      %p306 = scmp.ne.s32.totalorder %s301, %s303
      %p307 = scmp.eq.s32.totalorder %s31, 0
      %p308 = por %p306, %p307
      %p309 = scmp.ne.s32.totalorder %s301, %s303
      %p310 = scmp.eq.s32.totalorder %s36, 1
      %p311 = por %p309, %p310
      %p312 = scmp.ne.s32.totalorder %s303, %s304
      %p313 = scmp.eq.s32.totalorder %s36, 0
      %p314 = por %p312, %p313
      %p315 = scmp.ne.s32.totalorder %s303, %s304
      %p316 = scmp.eq.s32.totalorder %s37, 1
      %p317 = por %p315, %p316
      %p319 = scmp.ne.s32.totalorder %s304, %s318
      %p320 = scmp.eq.s32.totalorder %s37, 0
      %p321 = por %p319, %p320
      %s323 = sadd.s32 %s322, 1
      %p326 = scmp.eq.s32.totalorder %s31, 1
      %p327 = scmp.ne.s32.totalorder %s322, %s324
      %p328 = scmp.eq.s32.totalorder %s31, 0
      %p329 = por %p327, %p328
      %p330 = scmp.ne.s32.totalorder %s322, %s324
      %p331 = scmp.eq.s32.totalorder %s36, 1
      %p332 = por %p330, %p331
      %p333 = scmp.ne.s32.totalorder %s324, %s325
      %p334 = scmp.eq.s32.totalorder %s36, 0
      %p335 = por %p333, %p334
      %p336 = scmp.ne.s32.totalorder %s324, %s325
      %p337 = scmp.eq.s32.totalorder %s37, 1
      %p338 = por %p336, %p337
      %p340 = scmp.ne.s32.totalorder %s325, %s339
      %p341 = scmp.eq.s32.totalorder %s37, 0
      %p342 = por %p340, %p341
      %s344 = sadd.s32 %s343, 1
      %p347 = scmp.eq.s32.totalorder %s31, 1
      %p348 = scmp.ne.s32.totalorder %s343, %s345
      %p349 = scmp.eq.s32.totalorder %s31, 0
      %p350 = por %p348, %p349
      %p351 = scmp.ne.s32.totalorder %s343, %s345
      %p352 = scmp.eq.s32.totalorder %s36, 1
      %p353 = por %p351, %p352
      %p354 = scmp.ne.s32.totalorder %s345, %s346
      %p355 = scmp.eq.s32.totalorder %s36, 0
      %p356 = por %p354, %p355
      %p357 = scmp.ne.s32.totalorder %s345, %s346
      %p358 = scmp.eq.s32.totalorder %s37, 1
      %p359 = por %p357, %p358
      %p361 = scmp.ne.s32.totalorder %s346, %s360
      %p362 = scmp.eq.s32.totalorder %s37, 0
      %p363 = por %p361, %p362
      %s365 = sadd.s32 %s364, 1
      %p368 = scmp.eq.s32.totalorder %s31, 1
      %p369 = scmp.ne.s32.totalorder %s364, %s366
      %p370 = scmp.eq.s32.totalorder %s31, 0
      %p371 = por %p369, %p370
      %p372 = scmp.ne.s32.totalorder %s364, %s366
      %p373 = scmp.eq.s32.totalorder %s36, 1
      %p374 = por %p372, %p373
      %p375 = scmp.ne.s32.totalorder %s366, %s367
      %p376 = scmp.eq.s32.totalorder %s36, 0
      %p377 = por %p375, %p376
      %p378 = scmp.ne.s32.totalorder %s366, %s367
      %p379 = scmp.eq.s32.totalorder %s37, 1
      %p380 = por %p378, %p379
      %p382 = scmp.ne.s32.totalorder %s367, %s381
      %p383 = scmp.eq.s32.totalorder %s37, 0
      %p384 = por %p382, %p383
      %s386 = sadd.s32 %s385, 1
      %p389 = scmp.eq.s32.totalorder %s31, 1
      %p390 = scmp.ne.s32.totalorder %s385, %s387
      %p391 = scmp.eq.s32.totalorder %s31, 0
      %p392 = por %p390, %p391
      %p393 = scmp.ne.s32.totalorder %s385, %s387
      %p394 = scmp.eq.s32.totalorder %s36, 1
      %p395 = por %p393, %p394
      %p396 = scmp.ne.s32.totalorder %s387, %s388
      %p397 = scmp.eq.s32.totalorder %s36, 0
      %p398 = por %p396, %p397
      %p399 = scmp.ne.s32.totalorder %s387, %s388
      %p400 = scmp.eq.s32.totalorder %s37, 1
      %p401 = por %p399, %p400
      %p403 = scmp.ne.s32.totalorder %s388, %s402
      %p404 = scmp.eq.s32.totalorder %s37, 0
      %p405 = por %p403, %p404
      %s406 = ssub.s32 %s31, %s38
      %p407 = scmp.eq.s32.totalorder %s406, 0
      %s409 = sadd.s32 %s408, 1
      %s410 = scalar_select %p407, %s408, %s409
      %p413 = pneg %p407
      %p414 = scmp.eq.s32.totalorder %s31, 1
      %p415 = por %p413, %p414
      %p416 = scmp.ne.s32.totalorder %s408, %s411
      %p417 = scmp.eq.s32.totalorder %s31, 0
      %p418 = por %p416, %p417
      %p419 = scmp.ne.s32.totalorder %s408, %s411
      %p420 = scmp.eq.s32.totalorder %s36, 1
      %p421 = por %p419, %p420
      %p422 = scmp.ne.s32.totalorder %s411, %s412
      %p423 = scmp.eq.s32.totalorder %s36, 0
      %p424 = por %p422, %p423
      %p425 = scmp.ne.s32.totalorder %s411, %s412
      %p426 = scmp.eq.s32.totalorder %s37, 1
      %p427 = por %p425, %p426
      %p429 = scmp.ne.s32.totalorder %s412, %s428
      %p430 = scmp.eq.s32.totalorder %s37, 0
      %p431 = por %p429, %p430
      %p432 = scmp.le.s32.totalorder 1, %s31
      %p433 = scmp.lt.s32.totalorder %s31, 3
      %p434 = pnand %p432, %p433
      %p435 = pneg %p434
      // Predicated region
      $region9: #{tpu_custom_call.1} parent=5 // pred_check
        _
      $region10: #{tpu_custom_call.1} parent=5 // pred_check_branch
        %437 = sbr.rel (%p434) target = $region12
      $region11: #{tpu_custom_call.1} parent=5 // pred_region
        %s438 = ssub.s32 %s31, 1
        // Predicated region
        $region13: #{tpu_custom_call.1} parent=11 // pred_check
          %p439 = pneg %p104
        $region14: #{tpu_custom_call.1} parent=11 // pred_check_branch
          %441 = sbr.rel (%p439) target = $region16
        $region15: #{tpu_custom_call.1} parent=11 // pred_region
          _
        $region16: #{tpu_custom_call.1} parent=11 // pred_fallthru
          _
        // Predicated region
        $region17: #{tpu_custom_call.1} parent=11 // pred_check
          %p442 = pneg %p125
        $region18: #{tpu_custom_call.1} parent=11 // pred_check_branch
          %444 = sbr.rel (%p442) target = $region20
        $region19: #{tpu_custom_call.1} parent=11 // pred_region
          %446 = vsyncadd [#allocation3], 0
          %s447 = sshll.u32 %s3, 4
          %s448 = int_to_ptr.hbm [resolvable:$true] %s447
          %s449 = sshll.u32 [#allocation2], 4
          %s450 = int_to_ptr.vmem [resolvable:$true] %s449
          %455 = dma.hbm_to_vmem [thread:$0]  %s448, 1280, %s450, [#allocation3], 256, 256, 16
        $region20: #{tpu_custom_call.1} parent=11 // pred_fallthru
          _
        // Predicated region
        $region21: #{tpu_custom_call.1} parent=11 // pred_check
          %p456 = pneg %p146
        $region22: #{tpu_custom_call.1} parent=11 // pred_check_branch
          %458 = sbr.rel (%p456) target = $region24
        $region23: #{tpu_custom_call.1} parent=11 // pred_region
          %460 = vsyncadd [#allocation6], 0
          %s461 = sshll.u32 %s4, 4
          %s462 = int_to_ptr.hbm [resolvable:$true] %s461
          %s463 = sshll.u32 [#allocation5], 4
          %s464 = int_to_ptr.vmem [resolvable:$true] %s463
          %469 = dma.hbm_to_vmem [thread:$0]  %s462, 1024, %s464, [#allocation6], 256, 256, 16
        $region24: #{tpu_custom_call.1} parent=11 // pred_fallthru
          _
        // Predicated region
        $region25: #{tpu_custom_call.1} parent=11 // pred_check
          %p470 = pneg %p167
        $region26: #{tpu_custom_call.1} parent=11 // pred_check_branch
          %472 = sbr.rel (%p470) target = $region28
        $region27: #{tpu_custom_call.1} parent=11 // pred_region
          _
        $region28: #{tpu_custom_call.1} parent=11 // pred_fallthru
          _
        // Predicated region
        $region29: #{tpu_custom_call.1} parent=11 // pred_check
          %p473 = pneg %p188
        $region30: #{tpu_custom_call.1} parent=11 // pred_check_branch
          %475 = sbr.rel (%p473) target = $region32
        $region31: #{tpu_custom_call.1} parent=11 // pred_region
          _
        $region32: #{tpu_custom_call.1} parent=11 // pred_fallthru
          _
        // Predicated region
        $region33: #{tpu_custom_call.1} parent=11 // pred_check
          %p476 = pneg %p209
        $region34: #{tpu_custom_call.1} parent=11 // pred_check_branch
          %478 = sbr.rel (%p476) target = $region36
        $region35: #{tpu_custom_call.1} parent=11 // pred_region
          %480 = vsyncadd [#allocation6], 0
          %s481 = sshll.u32 %s7, 4
          %s482 = int_to_ptr.hbm [resolvable:$true] %s481
          %s483 = sshll.u32 [#allocation7], 4
          %s484 = int_to_ptr.vmem [resolvable:$true] %s483
          %489 = dma.hbm_to_vmem [thread:$0]  %s482, 8192, %s484, [#allocation6], 256, 256, 16
        $region36: #{tpu_custom_call.1} parent=11 // pred_fallthru
          _
        // Predicated region
        $region37: #{tpu_custom_call.1} parent=11 // pred_check
          %p490 = pneg %p230
        $region38: #{tpu_custom_call.1} parent=11 // pred_check_branch
          %492 = sbr.rel (%p490) target = $region40
        $region39: #{tpu_custom_call.1} parent=11 // pred_region
          _
        $region40: #{tpu_custom_call.1} parent=11 // pred_fallthru
          _
        // Predicated region
        $region41: #{tpu_custom_call.1} parent=11 // pred_check
          %p493 = pneg %p251
        $region42: #{tpu_custom_call.1} parent=11 // pred_check_branch
          %495 = sbr.rel (%p493) target = $region44
        $region43: #{tpu_custom_call.1} parent=11 // pred_region
          %497 = vsyncadd [#allocation9], 0
          %s498 = sshll.u32 %s9, 4
          %s499 = int_to_ptr.hbm [resolvable:$true] %s498
          %s500 = sshll.u32 [#allocation8], 4
          %s501 = int_to_ptr.vmem [resolvable:$true] %s500
          %506 = dma.hbm_to_vmem [thread:$0]  %s499, 8192, %s501, [#allocation9], 256, 256, 16
        $region44: #{tpu_custom_call.1} parent=11 // pred_fallthru
          _
        // Predicated region
        $region45: #{tpu_custom_call.1} parent=11 // pred_check
          %p507 = pneg %p272
        $region46: #{tpu_custom_call.1} parent=11 // pred_check_branch
          %509 = sbr.rel (%p507) target = $region48
        $region47: #{tpu_custom_call.1} parent=11 // pred_region
          _
        $region48: #{tpu_custom_call.1} parent=11 // pred_fallthru
          _
        // Predicated region
        $region49: #{tpu_custom_call.1} parent=11 // pred_check
          %p510 = pneg %p293
        $region50: #{tpu_custom_call.1} parent=11 // pred_check_branch
          %512 = sbr.rel (%p510) target = $region52
        $region51: #{tpu_custom_call.1} parent=11 // pred_region
          %514 = vsyncadd [#allocation9], 0
          %s515 = sshll.u32 %s11, 4
          %s516 = int_to_ptr.hbm [resolvable:$true] %s515
          %s517 = sshll.u32 [#allocation10], 4
          %s518 = int_to_ptr.vmem [resolvable:$true] %s517
          %523 = dma.hbm_to_vmem [thread:$0]  %s516, 8192, %s518, [#allocation9], 256, 256, 16
        $region52: #{tpu_custom_call.1} parent=11 // pred_fallthru
          _
        // Predicated region
        $region53: #{tpu_custom_call.1} parent=11 // pred_check
          %p524 = pneg %p314
        $region54: #{tpu_custom_call.1} parent=11 // pred_check_branch
          %526 = sbr.rel (%p524) target = $region56
        $region55: #{tpu_custom_call.1} parent=11 // pred_region
          %528 = vsyncadd [#allocation12], 0
          %s530 = sshll.u32 %s12, 4
          %s531 = int_to_ptr.hbm [resolvable:$true] %s530
          %s532 = sshll.u32 [#allocation11], 4
          %s533 = int_to_ptr.vmem [resolvable:$true] %s532
          %535 = dma.hbm_to_vmem [thread:$0]  %s531, 32, %s533, [#allocation12]
        $region56: #{tpu_custom_call.1} parent=11 // pred_fallthru
          _
        // Predicated region
        $region57: #{tpu_custom_call.1} parent=11 // pred_check
          %p536 = pneg %p335
        $region58: #{tpu_custom_call.1} parent=11 // pred_check_branch
          %538 = sbr.rel (%p536) target = $region60
        $region59: #{tpu_custom_call.1} parent=11 // pred_region
          %540 = vsyncadd [#allocation12], 0
          %s541 = sshll.u32 %s13, 4
          %s542 = int_to_ptr.hbm [resolvable:$true] %s541
          %s543 = sshll.u32 [#allocation13], 4
          %s544 = int_to_ptr.vmem [resolvable:$true] %s543
          %549 = dma.hbm_to_vmem [thread:$0]  %s542, 8192, %s544, [#allocation12], 256, 256, 16
        $region60: #{tpu_custom_call.1} parent=11 // pred_fallthru
          _
        // Predicated region
        $region61: #{tpu_custom_call.1} parent=11 // pred_check
          %p550 = pneg %p356
        $region62: #{tpu_custom_call.1} parent=11 // pred_check_branch
          %552 = sbr.rel (%p550) target = $region64
        $region63: #{tpu_custom_call.1} parent=11 // pred_region
          %554 = vsyncadd [#allocation15], 0
          %s556 = sshll.u32 %s14, 4
          %s557 = int_to_ptr.hbm [resolvable:$true] %s556
          %s558 = sshll.u32 [#allocation14], 4
          %s559 = int_to_ptr.vmem [resolvable:$true] %s558
          %561 = dma.hbm_to_vmem [thread:$0]  %s557, 32, %s559, [#allocation15]
        $region64: #{tpu_custom_call.1} parent=11 // pred_fallthru
          _
        // Predicated region
        $region65: #{tpu_custom_call.1} parent=11 // pred_check
          %p562 = pneg %p377
        $region66: #{tpu_custom_call.1} parent=11 // pred_check_branch
          %564 = sbr.rel (%p562) target = $region68
        $region67: #{tpu_custom_call.1} parent=11 // pred_region
          _
        $region68: #{tpu_custom_call.1} parent=11 // pred_fallthru
          _
        // Predicated region
        $region69: #{tpu_custom_call.1} parent=11 // pred_check
          %p565 = pneg %p398
        $region70: #{tpu_custom_call.1} parent=11 // pred_check_branch
          %567 = sbr.rel (%p565) target = $region72
        $region71: #{tpu_custom_call.1} parent=11 // pred_region
          %569 = vsyncadd [#allocation15], 0
          %s571 = sshll.u32 %s16, 4
          %s572 = int_to_ptr.hbm [resolvable:$true] %s571
          %s573 = sshll.u32 [#allocation16], 4
          %s574 = int_to_ptr.vmem [resolvable:$true] %s573
          %576 = dma.hbm_to_vmem [thread:$0]  %s572, 16, %s574, [#allocation15]
        $region72: #{tpu_custom_call.1} parent=11 // pred_fallthru
          _
      $region12: #{tpu_custom_call.1} parent=5 // pred_fallthru
        _
      %p577 = scmp.lt.s32.totalorder %s31, 2
      // Predicated region
      $region73: #{tpu_custom_call.1} parent=5 // pred_check
        %p578 = pneg %p577
      $region74: #{tpu_custom_call.1} parent=5 // pred_check_branch
        %580 = sbr.rel (%p578) target = $region76
      $region75: #{tpu_custom_call.1} parent=5 // pred_region
        // Predicated region
        $region77: #{tpu_custom_call.1} parent=75 // pred_check
          %p581 = pneg %p51
        $region78: #{tpu_custom_call.1} parent=75 // pred_check_branch
          %583 = sbr.rel (%p581) target = $region80
        $region79: #{tpu_custom_call.1} parent=75 // pred_region
          %s584 = smul.u32 4, %s31
          %p585 = scmp.lt.s32.totalorder %s584, 7
          %s586 = scalar_select %p585, %s584, 7
          %s587 = smul.addr %s586, 8
          %s588 = scalar_lea.vmem %s0, %s587
          %s589 = smul.u32 4, %s31
        $region80: #{tpu_custom_call.1} parent=75 // pred_fallthru
          _
        // Predicated region
        $region81: #{tpu_custom_call.1} parent=75 // pred_check
          %p590 = pneg %p77
        $region82: #{tpu_custom_call.1} parent=75 // pred_check_branch
          %592 = sbr.rel (%p590) target = $region84
        $region83: #{tpu_custom_call.1} parent=75 // pred_region
          %s593 = smul.u32 4, %s31
          %p594 = scmp.lt.s32.totalorder %s593, 7
          %s595 = scalar_select %p594, %s593, 7
          %s596 = scalar_lea.vmem %s1, %s595
          %s597 = smul.u32 4, %s31
        $region84: #{tpu_custom_call.1} parent=75 // pred_fallthru
          _
      $region76: #{tpu_custom_call.1} parent=5 // pred_fallthru
        _
      %p598 = scmp.le.s32.totalorder 1, %s31
      %p599 = scmp.lt.s32.totalorder %s31, 3
      %p600 = pnand %p598, %p599
      %p601 = pneg %p600
      // Predicated region
      $region85: #{tpu_custom_call.1} parent=5 // pred_check
        _
      $region86: #{tpu_custom_call.1} parent=5 // pred_check_branch
        %603 = sbr.rel (%p600) target = $region88
      $region87: #{tpu_custom_call.1} parent=5 // pred_region
        %s604 = ssub.s32 %s31, 1
        // Predicated region
        $region89: #{tpu_custom_call.1} parent=87 // pred_check
          %p605 = pneg %p125
        $region90: #{tpu_custom_call.1} parent=87 // pred_check_branch
          %607 = sbr.rel (%p605) target = $region92
        $region91: #{tpu_custom_call.1} parent=87 // pred_region
          %609 = dma.done [#allocation3], 1280
        $region92: #{tpu_custom_call.1} parent=87 // pred_fallthru
          _
        // Predicated region
        $region93: #{tpu_custom_call.1} parent=87 // pred_check
          %p610 = pneg %p146
        $region94: #{tpu_custom_call.1} parent=87 // pred_check_branch
          %612 = sbr.rel (%p610) target = $region96
        $region95: #{tpu_custom_call.1} parent=87 // pred_region
          %614 = dma.done [#allocation6], 1024
        $region96: #{tpu_custom_call.1} parent=87 // pred_fallthru
          _
        // Predicated region
        $region97: #{tpu_custom_call.1} parent=87 // pred_check
          %p615 = pneg %p209
        $region98: #{tpu_custom_call.1} parent=87 // pred_check_branch
          %617 = sbr.rel (%p615) target = $region100
        $region99: #{tpu_custom_call.1} parent=87 // pred_region
          %619 = dma.done [#allocation6], 8192
        $region100: #{tpu_custom_call.1} parent=87 // pred_fallthru
          _
        // Predicated region
        $region101: #{tpu_custom_call.1} parent=87 // pred_check
          %p620 = pneg %p251
        $region102: #{tpu_custom_call.1} parent=87 // pred_check_branch
          %622 = sbr.rel (%p620) target = $region104
        $region103: #{tpu_custom_call.1} parent=87 // pred_region
          %624 = dma.done [#allocation9], 8192
        $region104: #{tpu_custom_call.1} parent=87 // pred_fallthru
          _
        // Predicated region
        $region105: #{tpu_custom_call.1} parent=87 // pred_check
          %p625 = pneg %p293
        $region106: #{tpu_custom_call.1} parent=87 // pred_check_branch
          %627 = sbr.rel (%p625) target = $region108
        $region107: #{tpu_custom_call.1} parent=87 // pred_region
          %629 = dma.done [#allocation9], 8192
        $region108: #{tpu_custom_call.1} parent=87 // pred_fallthru
          _
        // Predicated region
        $region109: #{tpu_custom_call.1} parent=87 // pred_check
          %p630 = pneg %p314
        $region110: #{tpu_custom_call.1} parent=87 // pred_check_branch
          %632 = sbr.rel (%p630) target = $region112
        $region111: #{tpu_custom_call.1} parent=87 // pred_region
          %634 = dma.done [#allocation12], 32
        $region112: #{tpu_custom_call.1} parent=87 // pred_fallthru
          _
        // Predicated region
        $region113: #{tpu_custom_call.1} parent=87 // pred_check
          %p635 = pneg %p335
        $region114: #{tpu_custom_call.1} parent=87 // pred_check_branch
          %637 = sbr.rel (%p635) target = $region116
        $region115: #{tpu_custom_call.1} parent=87 // pred_region
          %639 = dma.done [#allocation12], 8192
        $region116: #{tpu_custom_call.1} parent=87 // pred_fallthru
          _
        // Predicated region
        $region117: #{tpu_custom_call.1} parent=87 // pred_check
          %p640 = pneg %p356
        $region118: #{tpu_custom_call.1} parent=87 // pred_check_branch
          %642 = sbr.rel (%p640) target = $region120
        $region119: #{tpu_custom_call.1} parent=87 // pred_region
          %644 = dma.done [#allocation15], 32
        $region120: #{tpu_custom_call.1} parent=87 // pred_fallthru
          _
        // Predicated region
        $region121: #{tpu_custom_call.1} parent=87 // pred_check
          %p645 = pneg %p398
        $region122: #{tpu_custom_call.1} parent=87 // pred_check_branch
          %647 = sbr.rel (%p645) target = $region124
        $region123: #{tpu_custom_call.1} parent=87 // pred_region
          %649 = dma.done [#allocation15], 16
        $region124: #{tpu_custom_call.1} parent=87 // pred_fallthru
          _
        %s650 = smul.u32 4, %s36
        %p651 = scmp.lt.s32.totalorder %s650, 7
        %s652 = scalar_select %p651, %s650, 7
        %s653 = smul.addr %s652, 8
        %s654 = scalar_lea.vmem %s0, %s653
        %p655 = pneg %p57
        %p656 = pneg %p54
        %s657 = smul.u32 4, %s36
        %p658 = scmp.lt.s32.totalorder %s657, 7
        %s659 = scalar_select %p658, %s657, 7
        %s660 = scalar_lea.vmem %s1, %s659
        %p661 = pneg %p83
        %p662 = pneg %p80
        %p663 = pneg %p104
        %p664 = pneg %p101
        %p665 = pneg %p125
        %p666 = pneg %p122
        %p667 = pneg %p146
        %p668 = pneg %p143
        %p669 = pneg %p167
        %p670 = pneg %p164
        %p671 = pneg %p188
        %p672 = pneg %p185
        %p673 = pneg %p209
        %p674 = pneg %p206
        %p675 = pneg %p230
        %p676 = pneg %p227
        %p677 = pneg %p251
        %p678 = pneg %p248
        %p679 = pneg %p272
        %p680 = pneg %p269
        %p681 = pneg %p293
        %p682 = pneg %p290
        %p683 = pneg %p314
        %p684 = pneg %p311
        %p685 = pneg %p335
        %p686 = pneg %p332
        %p687 = pneg %p356
        %p688 = pneg %p353
        %p689 = pneg %p377
        %p690 = pneg %p374
        %p691 = pneg %p398
        %p692 = pneg %p395
        %p693 = pneg %p424
        %p694 = pneg %p421
        %s695 = sand.u32 %s411, 1
        %s696 = scalar_lea.sflag [#allocation4], %s695
        %s697 = sand.u32 %s411, 1
        %s698 = smul.addr %s697, 4
        %s699 = scalar_lea.vmem [#allocation17], %s698
        %s700 = smul.u32 4, %s36
        %p701 = scmp.lt.s32.totalorder %s700, 7
        %s702 = scalar_select %p701, %s700, 7
        %s703 = smul.addr %s702, 8
        %s704 = scalar_lea.vmem %s0, %s703
        %s705 = smul.u32 4, %s36
        %s706 = smul.u32 4, %s36
        %p707 = scmp.lt.s32.totalorder %s706, 7
        %s708 = scalar_select %p707, %s706, 7
        %s709 = scalar_lea.vmem %s1, %s708
        %s710 = smul.u32 4, %s36
        %v711 = vld [vmem:[%s704] sm:$0xff]
        %v712 = vld [vmem:[%s704 + $0x8] sm:$0xff]
        %v713 = vld [vmem:[%s704 + $0x10] sm:$0xff]
        %v714 = vld [vmem:[%s704 + $0x18] sm:$0xff]
        %v715 = vld [vmem:[%s709] sm:$0x1]
        %v716 = vld [vmem:[%s709 + $0x1] sm:$0x1]
        %v717 = vld [vmem:[%s709 + $0x2] sm:$0x1]
        %v718 = vld [vmem:[%s709 + $0x3] sm:$0x1]
        %v719 = vld [vmem:[%s2] sm:$0xff]
        %v720 = vld [vmem:[%s2 + $0x8] sm:$0xff]
        %v721 = vld [vmem:[%s2 + $0x10] sm:$0xff]
        %v722 = vld [vmem:[%s2 + $0x18] sm:$0xff]
        %v723 = vld [vmem:[%s2 + $0x20] sm:$0xff]
        %v724 = vld [vmem:[%s2 + $0x28] sm:$0xff]
        %v725 = vld [vmem:[%s2 + $0x30] sm:$0xff]
        %v726 = vld [vmem:[%s2 + $0x38] sm:$0xff]
        %v727 = vld [vmem:[%s2 + $0x40] sm:$0x3]
        %v728 = vld [vmem:[%s2 + $0x48] sm:$0x3]
        %vm729 = vcmask 277504
        %v731 = vsel %vm729, %v711, 0
        %v734 = vsel %vm729, %v712, 0
        %v737 = vsel %vm729, %v713, 0
        %v740 = vsel %vm729, %v714, 0
        %vm742 = vcmask 1041408
        %v744 = vsel %vm742, %v727, 0
        %v747 = vsel %vm742, %v728, 0
        %749 = vmatpush.msra.mxu0 0.0
        %750 = vmatpush.msra.mxu0 0.0
        %751 = vmatpush.msra.mxu0 0.0
        %752 = vmatpush.msra.mxu0 0.0
        %753 = vmatpush.msra.mxu0 0.0
        %754 = vmatpush.msra.mxu0 0.0
        %755 = vmatpush.msra.mxu0 0.0
        %756 = vmatpush.msra.mxu0 0.0
        %757 = vmatpush.msra.mxu0 0.0
        %758 = vmatpush.msra.mxu0 0.0
        %759 = vmatpush.msra.mxu0 0.0
        %760 = vmatpush.msra.mxu0 %v744
        %761 = vmatpush.msra.mxu0 %v725
        %762 = vmatpush.msra.mxu0 %v723
        %763 = vmatpush.msra.mxu0 %v721
        %764 = vmatpush.msra.mxu0 %v719
        %765 = vmatmul.f32.gmra.mxu0 %v731
        %v766 = vpop.f32.mrf.mxu0
        %v767 = vadd.f32 0.0, %v766
        %768 = vmatmul.f32.gmra.mxu0 %v734
        %v769 = vpop.f32.mrf.mxu0
        %v770 = vadd.f32 0.0, %v769
        %771 = vmatmul.f32.gmra.mxu0 %v737
        %v772 = vpop.f32.mrf.mxu0
        %v773 = vadd.f32 0.0, %v772
        %774 = vmatmul.f32.gmra.mxu0 %v740
        %v775 = vpop.f32.mrf.mxu0
        %v776 = vadd.f32 0.0, %v775
        %777 = vdwg.mxu0
        %778 = vmatpush.msra.mxu0 0.0
        %779 = vmatpush.msra.mxu0 0.0
        %780 = vmatpush.msra.mxu0 0.0
        %781 = vmatpush.msra.mxu0 0.0
        %782 = vmatpush.msra.mxu0 0.0
        %783 = vmatpush.msra.mxu0 0.0
        %784 = vmatpush.msra.mxu0 0.0
        %785 = vmatpush.msra.mxu0 0.0
        %786 = vmatpush.msra.mxu0 0.0
        %787 = vmatpush.msra.mxu0 0.0
        %788 = vmatpush.msra.mxu0 0.0
        %789 = vmatpush.msra.mxu0 %v747
        %790 = vmatpush.msra.mxu0 %v726
        %791 = vmatpush.msra.mxu0 %v724
        %792 = vmatpush.msra.mxu0 %v722
        %793 = vmatpush.msra.mxu0 %v720
        %794 = vmatmul.f32.gmra.mxu0 %v731
        %v795 = vpop.f32.mrf.mxu0
        %v796 = vadd.f32 0.0, %v795
        %797 = vmatmul.f32.gmra.mxu0 %v734
        %v798 = vpop.f32.mrf.mxu0
        %v799 = vadd.f32 0.0, %v798
        %800 = vmatmul.f32.gmra.mxu0 %v737
        %v801 = vpop.f32.mrf.mxu0
        %v802 = vadd.f32 0.0, %v801
        %803 = vmatmul.f32.gmra.mxu0 %v740
        %v804 = vpop.f32.mrf.mxu0
        %v805 = vadd.f32 0.0, %v804
        %806 = vdwg.mxu0
        %v807 = vld [vmem:[#allocation2] sm:$0xff]
        %v808 = vld [vmem:[#allocation2 + $0x8] sm:$0xff]
        %v809 = vld [vmem:[#allocation2 + $0x10] sm:$0xff]
        %v810 = vld [vmem:[#allocation2 + $0x18] sm:$0xff]
        %v811 = vld [vmem:[#allocation2 + $0x20] sm:$0xff]
        %v812 = vld [vmem:[#allocation2 + $0x28] sm:$0xff]
        %v813 = vld [vmem:[#allocation2 + $0x30] sm:$0xff]
        %v814 = vld [vmem:[#allocation2 + $0x38] sm:$0xff]
        %v815 = vld [vmem:[#allocation2 + $0x40] sm:$0x3]
        %v816 = vld [vmem:[#allocation2 + $0x48] sm:$0x3]
        %v818 = vsel %vm742, %v815, 0
        %v821 = vsel %vm742, %v816, 0
        %823 = vmatpush.msra.mxu0 0.0
        %824 = vmatpush.msra.mxu0 0.0
        %825 = vmatpush.msra.mxu0 0.0
        %826 = vmatpush.msra.mxu0 0.0
        %827 = vmatpush.msra.mxu0 0.0
        %828 = vmatpush.msra.mxu0 0.0
        %829 = vmatpush.msra.mxu0 0.0
        %830 = vmatpush.msra.mxu0 0.0
        %831 = vmatpush.msra.mxu0 0.0
        %832 = vmatpush.msra.mxu0 0.0
        %833 = vmatpush.msra.mxu0 0.0
        %834 = vmatpush.msra.mxu0 %v818
        %835 = vmatpush.msra.mxu0 %v813
        %836 = vmatpush.msra.mxu0 %v811
        %837 = vmatpush.msra.mxu0 %v809
        %838 = vmatpush.msra.mxu0 %v807
        %839 = vmatmul.f32.gmra.mxu0 %v731
        %v840 = vpop.f32.mrf.mxu0
        %v841 = vadd.f32 0.0, %v840
        %842 = vmatmul.f32.gmra.mxu0 %v734
        %v843 = vpop.f32.mrf.mxu0
        %v844 = vadd.f32 0.0, %v843
        %845 = vmatmul.f32.gmra.mxu0 %v737
        %v846 = vpop.f32.mrf.mxu0
        %v847 = vadd.f32 0.0, %v846
        %848 = vmatmul.f32.gmra.mxu0 %v740
        %v849 = vpop.f32.mrf.mxu0
        %v850 = vadd.f32 0.0, %v849
        %851 = vdwg.mxu0
        %852 = vmatpush.msra.mxu0 0.0
        %853 = vmatpush.msra.mxu0 0.0
        %854 = vmatpush.msra.mxu0 0.0
        %855 = vmatpush.msra.mxu0 0.0
        %856 = vmatpush.msra.mxu0 0.0
        %857 = vmatpush.msra.mxu0 0.0
        %858 = vmatpush.msra.mxu0 0.0
        %859 = vmatpush.msra.mxu0 0.0
        %860 = vmatpush.msra.mxu0 0.0
        %861 = vmatpush.msra.mxu0 0.0
        %862 = vmatpush.msra.mxu0 0.0
        %863 = vmatpush.msra.mxu0 %v821
        %864 = vmatpush.msra.mxu0 %v814
        %865 = vmatpush.msra.mxu0 %v812
        %866 = vmatpush.msra.mxu0 %v810
        %867 = vmatpush.msra.mxu0 %v808
        %868 = vmatmul.f32.gmra.mxu0 %v731
        %v869 = vpop.f32.mrf.mxu0
        %v870 = vadd.f32 0.0, %v869
        %871 = vmatmul.f32.gmra.mxu0 %v734
        %v872 = vpop.f32.mrf.mxu0
        %v873 = vadd.f32 0.0, %v872
        %874 = vmatmul.f32.gmra.mxu0 %v737
        %v875 = vpop.f32.mrf.mxu0
        %v876 = vadd.f32 0.0, %v875
        %877 = vmatmul.f32.gmra.mxu0 %v740
        %v878 = vpop.f32.mrf.mxu0
        %v879 = vadd.f32 0.0, %v878
        %880 = vdwg.mxu0
        %v881 = vld [vmem:[#allocation5] sm:$0xff]
        %v882 = vld [vmem:[#allocation5 + $0x8] sm:$0xff]
        %v883 = vld [vmem:[#allocation5 + $0x10] sm:$0xff]
        %v884 = vld [vmem:[#allocation5 + $0x18] sm:$0xff]
        %v885 = vld [vmem:[#allocation5 + $0x20] sm:$0xff]
        %v886 = vld [vmem:[#allocation5 + $0x28] sm:$0xff]
        %v887 = vld [vmem:[#allocation5 + $0x30] sm:$0xff]
        %v888 = vld [vmem:[#allocation5 + $0x38] sm:$0xff]
        %v889 = vld [vmem:[%s5] sm:$0x3]
        %v891 = vperm.slane %v889, 0
        %v892 = vperm.slane %v889, 1
        %899 = vst [vmem:[#allocation1] ss:$9 sm:$0xff] %v715
        %s900 = scalar_lea.vmem [#allocation1], 1
        %901 = vst [vmem:[%s900] ss:$9 sm:$0xff] %v716
        %s902 = scalar_lea.vmem [#allocation1], 2
        %903 = vst [vmem:[%s902] ss:$9 sm:$0xff] %v717
        %s904 = scalar_lea.vmem [#allocation1], 3
        %905 = vst [vmem:[%s904] ss:$9 sm:$0xff] %v718
        %v906 = vld [vmem:[#allocation1] sm:$0xff]
        %vm907 = vcmask 261120
        %v908 = vsel %vm907, %v906, 0
        %910 = vmatpush.msra.mxu0 0.0
        %911 = vmatpush.msra.mxu0 0.0
        %912 = vmatpush.msra.mxu0 0.0
        %913 = vmatpush.msra.mxu0 0.0
        %914 = vmatpush.msra.mxu0 0.0
        %915 = vmatpush.msra.mxu0 0.0
        %916 = vmatpush.msra.mxu0 0.0
        %917 = vmatpush.msra.mxu0 0.0
        %918 = vmatpush.msra.mxu0 0.0
        %919 = vmatpush.msra.mxu0 0.0
        %920 = vmatpush.msra.mxu0 0.0
        %921 = vmatpush.msra.mxu0 0.0
        %922 = vmatpush.msra.mxu0 %v887
        %923 = vmatpush.msra.mxu0 %v885
        %924 = vmatpush.msra.mxu0 %v883
        %925 = vmatpush.msra.mxu0 %v881
        %926 = vmatmul.f32.gmra.mxu0 %v908
        %v927 = vpop.f32.mrf.mxu0
        %v928 = vadd.f32 %v891, %v927
        %929 = vdwg.mxu0
        %930 = vmatpush.msra.mxu0 0.0
        %931 = vmatpush.msra.mxu0 0.0
        %932 = vmatpush.msra.mxu0 0.0
        %933 = vmatpush.msra.mxu0 0.0
        %934 = vmatpush.msra.mxu0 0.0
        %935 = vmatpush.msra.mxu0 0.0
        %936 = vmatpush.msra.mxu0 0.0
        %937 = vmatpush.msra.mxu0 0.0
        %938 = vmatpush.msra.mxu0 0.0
        %939 = vmatpush.msra.mxu0 0.0
        %940 = vmatpush.msra.mxu0 0.0
        %941 = vmatpush.msra.mxu0 0.0
        %942 = vmatpush.msra.mxu0 %v888
        %943 = vmatpush.msra.mxu0 %v886
        %944 = vmatpush.msra.mxu0 %v884
        %945 = vmatpush.msra.mxu0 %v882
        %946 = vmatmul.f32.gmra.mxu0 %v908
        %v947 = vpop.f32.mrf.mxu0
        %v948 = vadd.f32 %v892, %v947
        %949 = vdwg.mxu0
        %v950 = vld [vmem:[%s6] sm:$0xff]
        %v951 = vld [vmem:[%s6 + $0x8] sm:$0xff]
        %v952 = vld [vmem:[%s6 + $0x10] sm:$0xff]
        %v953 = vld [vmem:[%s6 + $0x18] sm:$0xff]
        %v954 = vld [vmem:[%s6 + $0x20] sm:$0xff]
        %v955 = vld [vmem:[%s6 + $0x28] sm:$0xff]
        %v956 = vld [vmem:[%s6 + $0x30] sm:$0xff]
        %v957 = vld [vmem:[%s6 + $0x38] sm:$0xff]
        %v958 = vld [vmem:[%s6 + $0x40] sm:$0xff]
        %v959 = vld [vmem:[%s6 + $0x48] sm:$0xff]
        %v960 = vld [vmem:[%s6 + $0x50] sm:$0xff]
        %v961 = vld [vmem:[%s6 + $0x58] sm:$0xff]
        %v962 = vld [vmem:[%s6 + $0x60] sm:$0xff]
        %v963 = vld [vmem:[%s6 + $0x68] sm:$0xff]
        %v964 = vld [vmem:[%s6 + $0x70] sm:$0xff]
        %v965 = vld [vmem:[%s6 + $0x78] sm:$0xff]
        %v966 = vld [vmem:[%s6 + $0x80] sm:$0xff]
        %v967 = vld [vmem:[%s6 + $0x88] sm:$0xff]
        %v968 = vld [vmem:[%s6 + $0x90] sm:$0xff]
        %v969 = vld [vmem:[%s6 + $0x98] sm:$0xff]
        %v970 = vld [vmem:[%s6 + $0xa0] sm:$0xff]
        %v971 = vld [vmem:[%s6 + $0xa8] sm:$0xff]
        %v972 = vld [vmem:[%s6 + $0xb0] sm:$0xff]
        %v973 = vld [vmem:[%s6 + $0xb8] sm:$0xff]
        %v974 = vld [vmem:[%s6 + $0xc0] sm:$0xff]
        %v975 = vld [vmem:[%s6 + $0xc8] sm:$0xff]
        %v976 = vld [vmem:[%s6 + $0xd0] sm:$0xff]
        %v977 = vld [vmem:[%s6 + $0xd8] sm:$0xff]
        %v978 = vld [vmem:[%s6 + $0xe0] sm:$0xff]
        %v979 = vld [vmem:[%s6 + $0xe8] sm:$0xff]
        %v980 = vld [vmem:[%s6 + $0xf0] sm:$0xff]
        %v981 = vld [vmem:[%s6 + $0xf8] sm:$0xff]
        %vm982 = vcmask 556032
        %v984 = vsel %vm982, %v950, 0
        %v987 = vsel %vm982, %v951, 0
        %v990 = vsel %vm982, %v952, 0
        %v993 = vsel %vm982, %v953, 0
        %v996 = vsel %vm982, %v954, 0
        %v999 = vsel %vm982, %v955, 0
        %v1002 = vsel %vm982, %v956, 0
        %v1005 = vsel %vm982, %v957, 0
        %v1008 = vsel %vm982, %v958, 0
        %v1011 = vsel %vm982, %v959, 0
        %v1014 = vsel %vm982, %v960, 0
        %v1017 = vsel %vm982, %v961, 0
        %v1020 = vsel %vm982, %v962, 0
        %v1023 = vsel %vm982, %v963, 0
        %v1026 = vsel %vm982, %v964, 0
        %v1029 = vsel %vm982, %v965, 0
        %v1032 = vsel %vm982, %v966, 0
        %v1035 = vsel %vm982, %v967, 0
        %v1038 = vsel %vm982, %v968, 0
        %v1041 = vsel %vm982, %v969, 0
        %v1044 = vsel %vm982, %v970, 0
        %v1047 = vsel %vm982, %v971, 0
        %v1050 = vsel %vm982, %v972, 0
        %v1053 = vsel %vm982, %v973, 0
        %v1056 = vsel %vm982, %v974, 0
        %v1059 = vsel %vm982, %v975, 0
        %v1062 = vsel %vm982, %v976, 0
        %v1065 = vsel %vm982, %v977, 0
        %v1068 = vsel %vm982, %v978, 0
        %v1071 = vsel %vm982, %v979, 0
        %v1074 = vsel %vm982, %v980, 0
        %v1077 = vsel %vm982, %v981, 0
        %vm1079 = vcmask 1043456
        %v1081 = vsel %vm1079, %v928, 0
        %v1084 = vsel %vm1079, %v948, 0
        %1086 = vmatpush.msra.mxu0 0.0
        %1087 = vmatpush.msra.mxu0 0.0
        %1088 = vmatpush.msra.mxu0 0.0
        %1089 = vmatpush.msra.mxu0 0.0
        %1090 = vmatpush.msra.mxu0 0.0
        %1091 = vmatpush.msra.mxu0 0.0
        %1092 = vmatpush.msra.mxu0 0.0
        %1093 = vmatpush.msra.mxu0 %v1081
        %1094 = vmatpush.msra.mxu0 %v850
        %1095 = vmatpush.msra.mxu0 %v847
        %1096 = vmatpush.msra.mxu0 %v844
        %1097 = vmatpush.msra.mxu0 %v841
        %1098 = vmatpush.msra.mxu0 %v776
        %1099 = vmatpush.msra.mxu0 %v773
        %1100 = vmatpush.msra.mxu0 %v770
        %1101 = vmatpush.msra.mxu0 %v767
        %1102 = vmatmul.f32.gmra.mxu0 %v984
        %v1103 = vpop.f32.mrf.mxu0
        %v1104 = vadd.f32 0.0, %v1103
        %1105 = vmatmul.f32.gmra.mxu0 %v987
        %v1106 = vpop.f32.mrf.mxu0
        %v1107 = vadd.f32 0.0, %v1106
        %1108 = vmatmul.f32.gmra.mxu0 %v990
        %v1109 = vpop.f32.mrf.mxu0
        %v1110 = vadd.f32 0.0, %v1109
        %1111 = vmatmul.f32.gmra.mxu0 %v993
        %v1112 = vpop.f32.mrf.mxu0
        %v1113 = vadd.f32 0.0, %v1112
        %1114 = vmatmul.f32.gmra.mxu0 %v996
        %v1115 = vpop.f32.mrf.mxu0
        %v1116 = vadd.f32 0.0, %v1115
        %1117 = vmatmul.f32.gmra.mxu0 %v999
        %v1118 = vpop.f32.mrf.mxu0
        %v1119 = vadd.f32 0.0, %v1118
        %1120 = vmatmul.f32.gmra.mxu0 %v1002
        %v1121 = vpop.f32.mrf.mxu0
        %v1122 = vadd.f32 0.0, %v1121
        %1123 = vmatmul.f32.gmra.mxu0 %v1005
        %v1124 = vpop.f32.mrf.mxu0
        %v1125 = vadd.f32 0.0, %v1124
        %1126 = vmatmul.f32.gmra.mxu0 %v1008
        %v1127 = vpop.f32.mrf.mxu0
        %v1128 = vadd.f32 0.0, %v1127
        %1129 = vmatmul.f32.gmra.mxu0 %v1011
        %v1130 = vpop.f32.mrf.mxu0
        %v1131 = vadd.f32 0.0, %v1130
        %1132 = vmatmul.f32.gmra.mxu0 %v1014
        %v1133 = vpop.f32.mrf.mxu0
        %v1134 = vadd.f32 0.0, %v1133
        %1135 = vmatmul.f32.gmra.mxu0 %v1017
        %v1136 = vpop.f32.mrf.mxu0
        %v1137 = vadd.f32 0.0, %v1136
        %1138 = vmatmul.f32.gmra.mxu0 %v1020
        %v1139 = vpop.f32.mrf.mxu0
        %v1140 = vadd.f32 0.0, %v1139
        %1141 = vmatmul.f32.gmra.mxu0 %v1023
        %v1142 = vpop.f32.mrf.mxu0
        %v1143 = vadd.f32 0.0, %v1142
        %1144 = vmatmul.f32.gmra.mxu0 %v1026
        %v1145 = vpop.f32.mrf.mxu0
        %v1146 = vadd.f32 0.0, %v1145
        %1147 = vmatmul.f32.gmra.mxu0 %v1029
        %v1148 = vpop.f32.mrf.mxu0
        %v1149 = vadd.f32 0.0, %v1148
        %1150 = vmatmul.f32.gmra.mxu0 %v1032
        %v1151 = vpop.f32.mrf.mxu0
        %v1152 = vadd.f32 0.0, %v1151
        %1153 = vmatmul.f32.gmra.mxu0 %v1035
        %v1154 = vpop.f32.mrf.mxu0
        %v1155 = vadd.f32 0.0, %v1154
        %1156 = vmatmul.f32.gmra.mxu0 %v1038
        %v1157 = vpop.f32.mrf.mxu0
        %v1158 = vadd.f32 0.0, %v1157
        %1159 = vmatmul.f32.gmra.mxu0 %v1041
        %v1160 = vpop.f32.mrf.mxu0
        %v1161 = vadd.f32 0.0, %v1160
        %1162 = vmatmul.f32.gmra.mxu0 %v1044
        %v1163 = vpop.f32.mrf.mxu0
        %v1164 = vadd.f32 0.0, %v1163
        %1165 = vmatmul.f32.gmra.mxu0 %v1047
        %v1166 = vpop.f32.mrf.mxu0
        %v1167 = vadd.f32 0.0, %v1166
        %1168 = vmatmul.f32.gmra.mxu0 %v1050
        %v1169 = vpop.f32.mrf.mxu0
        %v1170 = vadd.f32 0.0, %v1169
        %1171 = vmatmul.f32.gmra.mxu0 %v1053
        %v1172 = vpop.f32.mrf.mxu0
        %v1173 = vadd.f32 0.0, %v1172
        %1174 = vmatmul.f32.gmra.mxu0 %v1056
        %v1175 = vpop.f32.mrf.mxu0
        %v1176 = vadd.f32 0.0, %v1175
        %1177 = vmatmul.f32.gmra.mxu0 %v1059
        %v1178 = vpop.f32.mrf.mxu0
        %v1179 = vadd.f32 0.0, %v1178
        %1180 = vmatmul.f32.gmra.mxu0 %v1062
        %v1181 = vpop.f32.mrf.mxu0
        %v1182 = vadd.f32 0.0, %v1181
        %1183 = vmatmul.f32.gmra.mxu0 %v1065
        %v1184 = vpop.f32.mrf.mxu0
        %v1185 = vadd.f32 0.0, %v1184
        %1186 = vmatmul.f32.gmra.mxu0 %v1068
        %v1187 = vpop.f32.mrf.mxu0
        %v1188 = vadd.f32 0.0, %v1187
        %1189 = vmatmul.f32.gmra.mxu0 %v1071
        %v1190 = vpop.f32.mrf.mxu0
        %v1191 = vadd.f32 0.0, %v1190
        %1192 = vmatmul.f32.gmra.mxu0 %v1074
        %v1193 = vpop.f32.mrf.mxu0
        %v1194 = vadd.f32 0.0, %v1193
        %1195 = vmatmul.f32.gmra.mxu0 %v1077
        %v1196 = vpop.f32.mrf.mxu0
        %v1197 = vadd.f32 0.0, %v1196
        %1198 = vdwg.mxu0
        %1199 = vmatpush.msra.mxu0 0.0
        %1200 = vmatpush.msra.mxu0 0.0
        %1201 = vmatpush.msra.mxu0 0.0
        %1202 = vmatpush.msra.mxu0 0.0
        %1203 = vmatpush.msra.mxu0 0.0
        %1204 = vmatpush.msra.mxu0 0.0
        %1205 = vmatpush.msra.mxu0 0.0
        %1206 = vmatpush.msra.mxu0 %v1084
        %1207 = vmatpush.msra.mxu0 %v879
        %1208 = vmatpush.msra.mxu0 %v876
        %1209 = vmatpush.msra.mxu0 %v873
        %1210 = vmatpush.msra.mxu0 %v870
        %1211 = vmatpush.msra.mxu0 %v805
        %1212 = vmatpush.msra.mxu0 %v802
        %1213 = vmatpush.msra.mxu0 %v799
        %1214 = vmatpush.msra.mxu0 %v796
        %1215 = vmatmul.f32.gmra.mxu0 %v984
        %v1216 = vpop.f32.mrf.mxu0
        %v1217 = vadd.f32 0.0, %v1216
        %1218 = vmatmul.f32.gmra.mxu0 %v987
        %v1219 = vpop.f32.mrf.mxu0
        %v1220 = vadd.f32 0.0, %v1219
        %1221 = vmatmul.f32.gmra.mxu0 %v990
        %v1222 = vpop.f32.mrf.mxu0
        %v1223 = vadd.f32 0.0, %v1222
        %1224 = vmatmul.f32.gmra.mxu0 %v993
        %v1225 = vpop.f32.mrf.mxu0
        %v1226 = vadd.f32 0.0, %v1225
        %1227 = vmatmul.f32.gmra.mxu0 %v996
        %v1228 = vpop.f32.mrf.mxu0
        %v1229 = vadd.f32 0.0, %v1228
        %1230 = vmatmul.f32.gmra.mxu0 %v999
        %v1231 = vpop.f32.mrf.mxu0
        %v1232 = vadd.f32 0.0, %v1231
        %1233 = vmatmul.f32.gmra.mxu0 %v1002
        %v1234 = vpop.f32.mrf.mxu0
        %v1235 = vadd.f32 0.0, %v1234
        %1236 = vmatmul.f32.gmra.mxu0 %v1005
        %v1237 = vpop.f32.mrf.mxu0
        %v1238 = vadd.f32 0.0, %v1237
        %1239 = vmatmul.f32.gmra.mxu0 %v1008
        %v1240 = vpop.f32.mrf.mxu0
        %v1241 = vadd.f32 0.0, %v1240
        %1242 = vmatmul.f32.gmra.mxu0 %v1011
        %v1243 = vpop.f32.mrf.mxu0
        %v1244 = vadd.f32 0.0, %v1243
        %1245 = vmatmul.f32.gmra.mxu0 %v1014
        %v1246 = vpop.f32.mrf.mxu0
        %v1247 = vadd.f32 0.0, %v1246
        %1248 = vmatmul.f32.gmra.mxu0 %v1017
        %v1249 = vpop.f32.mrf.mxu0
        %v1250 = vadd.f32 0.0, %v1249
        %1251 = vmatmul.f32.gmra.mxu0 %v1020
        %v1252 = vpop.f32.mrf.mxu0
        %v1253 = vadd.f32 0.0, %v1252
        %1254 = vmatmul.f32.gmra.mxu0 %v1023
        %v1255 = vpop.f32.mrf.mxu0
        %v1256 = vadd.f32 0.0, %v1255
        %1257 = vmatmul.f32.gmra.mxu0 %v1026
        %v1258 = vpop.f32.mrf.mxu0
        %v1259 = vadd.f32 0.0, %v1258
        %1260 = vmatmul.f32.gmra.mxu0 %v1029
        %v1261 = vpop.f32.mrf.mxu0
        %v1262 = vadd.f32 0.0, %v1261
        %1263 = vmatmul.f32.gmra.mxu0 %v1032
        %v1264 = vpop.f32.mrf.mxu0
        %v1265 = vadd.f32 0.0, %v1264
        %1266 = vmatmul.f32.gmra.mxu0 %v1035
        %v1267 = vpop.f32.mrf.mxu0
        %v1268 = vadd.f32 0.0, %v1267
        %1269 = vmatmul.f32.gmra.mxu0 %v1038
        %v1270 = vpop.f32.mrf.mxu0
        %v1271 = vadd.f32 0.0, %v1270
        %1272 = vmatmul.f32.gmra.mxu0 %v1041
        %v1273 = vpop.f32.mrf.mxu0
        %v1274 = vadd.f32 0.0, %v1273
        %1275 = vmatmul.f32.gmra.mxu0 %v1044
        %v1276 = vpop.f32.mrf.mxu0
        %v1277 = vadd.f32 0.0, %v1276
        %1278 = vmatmul.f32.gmra.mxu0 %v1047
        %v1279 = vpop.f32.mrf.mxu0
        %v1280 = vadd.f32 0.0, %v1279
        %1281 = vmatmul.f32.gmra.mxu0 %v1050
        %v1282 = vpop.f32.mrf.mxu0
        %v1283 = vadd.f32 0.0, %v1282
        %1284 = vmatmul.f32.gmra.mxu0 %v1053
        %v1285 = vpop.f32.mrf.mxu0
        %v1286 = vadd.f32 0.0, %v1285
        %1287 = vmatmul.f32.gmra.mxu0 %v1056
        %v1288 = vpop.f32.mrf.mxu0
        %v1289 = vadd.f32 0.0, %v1288
        %1290 = vmatmul.f32.gmra.mxu0 %v1059
        %v1291 = vpop.f32.mrf.mxu0
        %v1292 = vadd.f32 0.0, %v1291
        %1293 = vmatmul.f32.gmra.mxu0 %v1062
        %v1294 = vpop.f32.mrf.mxu0
        %v1295 = vadd.f32 0.0, %v1294
        %1296 = vmatmul.f32.gmra.mxu0 %v1065
        %v1297 = vpop.f32.mrf.mxu0
        %v1298 = vadd.f32 0.0, %v1297
        %1299 = vmatmul.f32.gmra.mxu0 %v1068
        %v1300 = vpop.f32.mrf.mxu0
        %v1301 = vadd.f32 0.0, %v1300
        %1302 = vmatmul.f32.gmra.mxu0 %v1071
        %v1303 = vpop.f32.mrf.mxu0
        %v1304 = vadd.f32 0.0, %v1303
        %1305 = vmatmul.f32.gmra.mxu0 %v1074
        %v1306 = vpop.f32.mrf.mxu0
        %v1307 = vadd.f32 0.0, %v1306
        %1308 = vmatmul.f32.gmra.mxu0 %v1077
        %v1309 = vpop.f32.mrf.mxu0
        %v1310 = vadd.f32 0.0, %v1309
        %1311 = vdwg.mxu0
        %v1312 = vmax.f32 %v1104, 0.0
        %v1313 = vmax.f32 %v1217, 0.0
        %v1314 = vmax.f32 %v1107, 0.0
        %v1315 = vmax.f32 %v1220, 0.0
        %v1316 = vmax.f32 %v1110, 0.0
        %v1317 = vmax.f32 %v1223, 0.0
        %v1318 = vmax.f32 %v1113, 0.0
        %v1319 = vmax.f32 %v1226, 0.0
        %v1320 = vmax.f32 %v1116, 0.0
        %v1321 = vmax.f32 %v1229, 0.0
        %v1322 = vmax.f32 %v1119, 0.0
        %v1323 = vmax.f32 %v1232, 0.0
        %v1324 = vmax.f32 %v1122, 0.0
        %v1325 = vmax.f32 %v1235, 0.0
        %v1326 = vmax.f32 %v1125, 0.0
        %v1327 = vmax.f32 %v1238, 0.0
        %v1328 = vmax.f32 %v1128, 0.0
        %v1329 = vmax.f32 %v1241, 0.0
        %v1330 = vmax.f32 %v1131, 0.0
        %v1331 = vmax.f32 %v1244, 0.0
        %v1332 = vmax.f32 %v1134, 0.0
        %v1333 = vmax.f32 %v1247, 0.0
        %v1334 = vmax.f32 %v1137, 0.0
        %v1335 = vmax.f32 %v1250, 0.0
        %v1336 = vmax.f32 %v1140, 0.0
        %v1337 = vmax.f32 %v1253, 0.0
        %v1338 = vmax.f32 %v1143, 0.0
        %v1339 = vmax.f32 %v1256, 0.0
        %v1340 = vmax.f32 %v1146, 0.0
        %v1341 = vmax.f32 %v1259, 0.0
        %v1342 = vmax.f32 %v1149, 0.0
        %v1343 = vmax.f32 %v1262, 0.0
        %v1344 = vmax.f32 %v1152, 0.0
        %v1345 = vmax.f32 %v1265, 0.0
        %v1346 = vmax.f32 %v1155, 0.0
        %v1347 = vmax.f32 %v1268, 0.0
        %v1348 = vmax.f32 %v1158, 0.0
        %v1349 = vmax.f32 %v1271, 0.0
        %v1350 = vmax.f32 %v1161, 0.0
        %v1351 = vmax.f32 %v1274, 0.0
        %v1352 = vmax.f32 %v1164, 0.0
        %v1353 = vmax.f32 %v1277, 0.0
        %v1354 = vmax.f32 %v1167, 0.0
        %v1355 = vmax.f32 %v1280, 0.0
        %v1356 = vmax.f32 %v1170, 0.0
        %v1357 = vmax.f32 %v1283, 0.0
        %v1358 = vmax.f32 %v1173, 0.0
        %v1359 = vmax.f32 %v1286, 0.0
        %v1360 = vmax.f32 %v1176, 0.0
        %v1361 = vmax.f32 %v1289, 0.0
        %v1362 = vmax.f32 %v1179, 0.0
        %v1363 = vmax.f32 %v1292, 0.0
        %v1364 = vmax.f32 %v1182, 0.0
        %v1365 = vmax.f32 %v1295, 0.0
        %v1366 = vmax.f32 %v1185, 0.0
        %v1367 = vmax.f32 %v1298, 0.0
        %v1368 = vmax.f32 %v1188, 0.0
        %v1369 = vmax.f32 %v1301, 0.0
        %v1370 = vmax.f32 %v1191, 0.0
        %v1371 = vmax.f32 %v1304, 0.0
        %v1372 = vmax.f32 %v1194, 0.0
        %v1373 = vmax.f32 %v1307, 0.0
        %v1374 = vmax.f32 %v1197, 0.0
        %v1375 = vmax.f32 %v1310, 0.0
        %v1376 = vld [vmem:[#allocation7] sm:$0xff]
        %v1377 = vld [vmem:[#allocation7 + $0x8] sm:$0xff]
        %v1378 = vld [vmem:[#allocation7 + $0x10] sm:$0xff]
        %v1379 = vld [vmem:[#allocation7 + $0x18] sm:$0xff]
        %v1380 = vld [vmem:[#allocation7 + $0x20] sm:$0xff]
        %v1381 = vld [vmem:[#allocation7 + $0x28] sm:$0xff]
        %v1382 = vld [vmem:[#allocation7 + $0x30] sm:$0xff]
        %v1383 = vld [vmem:[#allocation7 + $0x38] sm:$0xff]
        %v1384 = vld [vmem:[#allocation7 + $0x40] sm:$0xff]
        %v1385 = vld [vmem:[#allocation7 + $0x48] sm:$0xff]
        %v1386 = vld [vmem:[#allocation7 + $0x50] sm:$0xff]
        %v1387 = vld [vmem:[#allocation7 + $0x58] sm:$0xff]
        %v1388 = vld [vmem:[#allocation7 + $0x60] sm:$0xff]
        %v1389 = vld [vmem:[#allocation7 + $0x68] sm:$0xff]
        %v1390 = vld [vmem:[#allocation7 + $0x70] sm:$0xff]
        %v1391 = vld [vmem:[#allocation7 + $0x78] sm:$0xff]
        %v1392 = vld [vmem:[#allocation7 + $0x80] sm:$0xff]
        %v1393 = vld [vmem:[#allocation7 + $0x88] sm:$0xff]
        %v1394 = vld [vmem:[#allocation7 + $0x90] sm:$0xff]
        %v1395 = vld [vmem:[#allocation7 + $0x98] sm:$0xff]
        %v1396 = vld [vmem:[#allocation7 + $0xa0] sm:$0xff]
        %v1397 = vld [vmem:[#allocation7 + $0xa8] sm:$0xff]
        %v1398 = vld [vmem:[#allocation7 + $0xb0] sm:$0xff]
        %v1399 = vld [vmem:[#allocation7 + $0xb8] sm:$0xff]
        %v1400 = vld [vmem:[#allocation7 + $0xc0] sm:$0xff]
        %v1401 = vld [vmem:[#allocation7 + $0xc8] sm:$0xff]
        %v1402 = vld [vmem:[#allocation7 + $0xd0] sm:$0xff]
        %v1403 = vld [vmem:[#allocation7 + $0xd8] sm:$0xff]
        %v1404 = vld [vmem:[#allocation7 + $0xe0] sm:$0xff]
        %v1405 = vld [vmem:[#allocation7 + $0xe8] sm:$0xff]
        %v1406 = vld [vmem:[#allocation7 + $0xf0] sm:$0xff]
        %v1407 = vld [vmem:[#allocation7 + $0xf8] sm:$0xff]
        %v1408 = vld [vmem:[#allocation7 + $0x100] sm:$0xff]
        %v1409 = vld [vmem:[#allocation7 + $0x108] sm:$0xff]
        %v1410 = vld [vmem:[#allocation7 + $0x110] sm:$0xff]
        %v1411 = vld [vmem:[#allocation7 + $0x118] sm:$0xff]
        %v1412 = vld [vmem:[#allocation7 + $0x120] sm:$0xff]
        %v1413 = vld [vmem:[#allocation7 + $0x128] sm:$0xff]
        %v1414 = vld [vmem:[#allocation7 + $0x130] sm:$0xff]
        %v1415 = vld [vmem:[#allocation7 + $0x138] sm:$0xff]
        %v1416 = vld [vmem:[#allocation7 + $0x140] sm:$0xff]
        %v1417 = vld [vmem:[#allocation7 + $0x148] sm:$0xff]
        %v1418 = vld [vmem:[#allocation7 + $0x150] sm:$0xff]
        %v1419 = vld [vmem:[#allocation7 + $0x158] sm:$0xff]
        %v1420 = vld [vmem:[#allocation7 + $0x160] sm:$0xff]
        %v1421 = vld [vmem:[#allocation7 + $0x168] sm:$0xff]
        %v1422 = vld [vmem:[#allocation7 + $0x170] sm:$0xff]
        %v1423 = vld [vmem:[#allocation7 + $0x178] sm:$0xff]
        %v1424 = vld [vmem:[#allocation7 + $0x180] sm:$0xff]
        %v1425 = vld [vmem:[#allocation7 + $0x188] sm:$0xff]
        %v1426 = vld [vmem:[#allocation7 + $0x190] sm:$0xff]
        %v1427 = vld [vmem:[#allocation7 + $0x198] sm:$0xff]
        %v1428 = vld [vmem:[#allocation7 + $0x1a0] sm:$0xff]
        %v1429 = vld [vmem:[#allocation7 + $0x1a8] sm:$0xff]
        %v1430 = vld [vmem:[#allocation7 + $0x1b0] sm:$0xff]
        %v1431 = vld [vmem:[#allocation7 + $0x1b8] sm:$0xff]
        %v1432 = vld [vmem:[#allocation7 + $0x1c0] sm:$0xff]
        %v1433 = vld [vmem:[#allocation7 + $0x1c8] sm:$0xff]
        %v1434 = vld [vmem:[#allocation7 + $0x1d0] sm:$0xff]
        %v1435 = vld [vmem:[#allocation7 + $0x1d8] sm:$0xff]
        %v1436 = vld [vmem:[#allocation7 + $0x1e0] sm:$0xff]
        %v1437 = vld [vmem:[#allocation7 + $0x1e8] sm:$0xff]
        %v1438 = vld [vmem:[#allocation7 + $0x1f0] sm:$0xff]
        %v1439 = vld [vmem:[#allocation7 + $0x1f8] sm:$0xff]
        %v1440 = vld [vmem:[%s8] sm:$0x3]
        %v1442 = vperm.slane %v1440, 0
        %v1443 = vperm.slane %v1440, 1
        %1446 = vmatpush.msra.mxu0 %v1406
        %1447 = vmatpush.msra.mxu0 %v1404
        %1448 = vmatpush.msra.mxu0 %v1402
        %1449 = vmatpush.msra.mxu0 %v1400
        %1450 = vmatpush.msra.mxu0 %v1398
        %1451 = vmatpush.msra.mxu0 %v1396
        %1452 = vmatpush.msra.mxu0 %v1394
        %1453 = vmatpush.msra.mxu0 %v1392
        %1454 = vmatpush.msra.mxu0 %v1390
        %1455 = vmatpush.msra.mxu0 %v1388
        %1456 = vmatpush.msra.mxu0 %v1386
        %1457 = vmatpush.msra.mxu0 %v1384
        %1458 = vmatpush.msra.mxu0 %v1382
        %1459 = vmatpush.msra.mxu0 %v1380
        %1460 = vmatpush.msra.mxu0 %v1378
        %1461 = vmatpush.msra.mxu0 %v1376
        %1462 = vmatmul.f32.gmra.mxu0 %v1312
        %v1463 = vpop.f32.mrf.mxu0
        %v1464 = vadd.f32 %v1442, %v1463
        %1465 = vmatmul.f32.gmra.mxu0 %v1314
        %v1466 = vpop.f32.mrf.mxu0
        %v1467 = vadd.f32 %v1442, %v1466
        %1468 = vmatmul.f32.gmra.mxu0 %v1316
        %v1469 = vpop.f32.mrf.mxu0
        %v1470 = vadd.f32 %v1442, %v1469
        %1471 = vmatmul.f32.gmra.mxu0 %v1318
        %v1472 = vpop.f32.mrf.mxu0
        %v1473 = vadd.f32 %v1442, %v1472
        %1474 = vmatmul.f32.gmra.mxu0 %v1320
        %v1475 = vpop.f32.mrf.mxu0
        %v1476 = vadd.f32 %v1442, %v1475
        %1477 = vmatmul.f32.gmra.mxu0 %v1322
        %v1478 = vpop.f32.mrf.mxu0
        %v1479 = vadd.f32 %v1442, %v1478
        %1480 = vmatmul.f32.gmra.mxu0 %v1324
        %v1481 = vpop.f32.mrf.mxu0
        %v1482 = vadd.f32 %v1442, %v1481
        %1483 = vmatmul.f32.gmra.mxu0 %v1326
        %v1484 = vpop.f32.mrf.mxu0
        %v1485 = vadd.f32 %v1442, %v1484
        %1486 = vmatmul.f32.gmra.mxu0 %v1328
        %v1487 = vpop.f32.mrf.mxu0
        %v1488 = vadd.f32 %v1442, %v1487
        %1489 = vmatmul.f32.gmra.mxu0 %v1330
        %v1490 = vpop.f32.mrf.mxu0
        %v1491 = vadd.f32 %v1442, %v1490
        %1492 = vmatmul.f32.gmra.mxu0 %v1332
        %v1493 = vpop.f32.mrf.mxu0
        %v1494 = vadd.f32 %v1442, %v1493
        %1495 = vmatmul.f32.gmra.mxu0 %v1334
        %v1496 = vpop.f32.mrf.mxu0
        %v1497 = vadd.f32 %v1442, %v1496
        %1498 = vmatmul.f32.gmra.mxu0 %v1336
        %v1499 = vpop.f32.mrf.mxu0
        %v1500 = vadd.f32 %v1442, %v1499
        %1501 = vmatmul.f32.gmra.mxu0 %v1338
        %v1502 = vpop.f32.mrf.mxu0
        %v1503 = vadd.f32 %v1442, %v1502
        %1504 = vmatmul.f32.gmra.mxu0 %v1340
        %v1505 = vpop.f32.mrf.mxu0
        %v1506 = vadd.f32 %v1442, %v1505
        %1507 = vmatmul.f32.gmra.mxu0 %v1342
        %v1508 = vpop.f32.mrf.mxu0
        %v1509 = vadd.f32 %v1442, %v1508
        %1510 = vmatmul.f32.gmra.mxu0 %v1344
        %v1511 = vpop.f32.mrf.mxu0
        %v1512 = vadd.f32 %v1442, %v1511
        %1513 = vmatmul.f32.gmra.mxu0 %v1346
        %v1514 = vpop.f32.mrf.mxu0
        %v1515 = vadd.f32 %v1442, %v1514
        %1516 = vmatmul.f32.gmra.mxu0 %v1348
        %v1517 = vpop.f32.mrf.mxu0
        %v1518 = vadd.f32 %v1442, %v1517
        %1519 = vmatmul.f32.gmra.mxu0 %v1350
        %v1520 = vpop.f32.mrf.mxu0
        %v1521 = vadd.f32 %v1442, %v1520
        %1522 = vmatmul.f32.gmra.mxu0 %v1352
        %v1523 = vpop.f32.mrf.mxu0
        %v1524 = vadd.f32 %v1442, %v1523
        %1525 = vmatmul.f32.gmra.mxu0 %v1354
        %v1526 = vpop.f32.mrf.mxu0
        %v1527 = vadd.f32 %v1442, %v1526
        %1528 = vmatmul.f32.gmra.mxu0 %v1356
        %v1529 = vpop.f32.mrf.mxu0
        %v1530 = vadd.f32 %v1442, %v1529
        %1531 = vmatmul.f32.gmra.mxu0 %v1358
        %v1532 = vpop.f32.mrf.mxu0
        %v1533 = vadd.f32 %v1442, %v1532
        %1534 = vmatmul.f32.gmra.mxu0 %v1360
        %v1535 = vpop.f32.mrf.mxu0
        %v1536 = vadd.f32 %v1442, %v1535
        %1537 = vmatmul.f32.gmra.mxu0 %v1362
        %v1538 = vpop.f32.mrf.mxu0
        %v1539 = vadd.f32 %v1442, %v1538
        %1540 = vmatmul.f32.gmra.mxu0 %v1364
        %v1541 = vpop.f32.mrf.mxu0
        %v1542 = vadd.f32 %v1442, %v1541
        %1543 = vmatmul.f32.gmra.mxu0 %v1366
        %v1544 = vpop.f32.mrf.mxu0
        %v1545 = vadd.f32 %v1442, %v1544
        %1546 = vmatmul.f32.gmra.mxu0 %v1368
        %v1547 = vpop.f32.mrf.mxu0
        %v1548 = vadd.f32 %v1442, %v1547
        %1549 = vmatmul.f32.gmra.mxu0 %v1370
        %v1550 = vpop.f32.mrf.mxu0
        %v1551 = vadd.f32 %v1442, %v1550
        %1552 = vmatmul.f32.gmra.mxu0 %v1372
        %v1553 = vpop.f32.mrf.mxu0
        %v1554 = vadd.f32 %v1442, %v1553
        %1555 = vmatmul.f32.gmra.mxu0 %v1374
        %v1556 = vpop.f32.mrf.mxu0
        %v1557 = vadd.f32 %v1442, %v1556
        %1558 = vdwg.mxu0
        %1559 = vmatpush.msra.mxu0 %v1438
        %1560 = vmatpush.msra.mxu0 %v1436
        %1561 = vmatpush.msra.mxu0 %v1434
        %1562 = vmatpush.msra.mxu0 %v1432
        %1563 = vmatpush.msra.mxu0 %v1430
        %1564 = vmatpush.msra.mxu0 %v1428
        %1565 = vmatpush.msra.mxu0 %v1426
        %1566 = vmatpush.msra.mxu0 %v1424
        %1567 = vmatpush.msra.mxu0 %v1422
        %1568 = vmatpush.msra.mxu0 %v1420
        %1569 = vmatpush.msra.mxu0 %v1418
        %1570 = vmatpush.msra.mxu0 %v1416
        %1571 = vmatpush.msra.mxu0 %v1414
        %1572 = vmatpush.msra.mxu0 %v1412
        %1573 = vmatpush.msra.mxu0 %v1410
        %1574 = vmatpush.msra.mxu0 %v1408
        %1575 = vmatmul.f32.gmra.mxu0 %v1313
        %v1576 = vpop.f32.mrf.mxu0
        %v1577 = vadd.f32 %v1464, %v1576
        %1578 = vmatmul.f32.gmra.mxu0 %v1315
        %v1579 = vpop.f32.mrf.mxu0
        %v1580 = vadd.f32 %v1467, %v1579
        %1581 = vmatmul.f32.gmra.mxu0 %v1317
        %v1582 = vpop.f32.mrf.mxu0
        %v1583 = vadd.f32 %v1470, %v1582
        %1584 = vmatmul.f32.gmra.mxu0 %v1319
        %v1585 = vpop.f32.mrf.mxu0
        %v1586 = vadd.f32 %v1473, %v1585
        %1587 = vmatmul.f32.gmra.mxu0 %v1321
        %v1588 = vpop.f32.mrf.mxu0
        %v1589 = vadd.f32 %v1476, %v1588
        %1590 = vmatmul.f32.gmra.mxu0 %v1323
        %v1591 = vpop.f32.mrf.mxu0
        %v1592 = vadd.f32 %v1479, %v1591
        %1593 = vmatmul.f32.gmra.mxu0 %v1325
        %v1594 = vpop.f32.mrf.mxu0
        %v1595 = vadd.f32 %v1482, %v1594
        %1596 = vmatmul.f32.gmra.mxu0 %v1327
        %v1597 = vpop.f32.mrf.mxu0
        %v1598 = vadd.f32 %v1485, %v1597
        %1599 = vmatmul.f32.gmra.mxu0 %v1329
        %v1600 = vpop.f32.mrf.mxu0
        %v1601 = vadd.f32 %v1488, %v1600
        %1602 = vmatmul.f32.gmra.mxu0 %v1331
        %v1603 = vpop.f32.mrf.mxu0
        %v1604 = vadd.f32 %v1491, %v1603
        %1605 = vmatmul.f32.gmra.mxu0 %v1333
        %v1606 = vpop.f32.mrf.mxu0
        %v1607 = vadd.f32 %v1494, %v1606
        %1608 = vmatmul.f32.gmra.mxu0 %v1335
        %v1609 = vpop.f32.mrf.mxu0
        %v1610 = vadd.f32 %v1497, %v1609
        %1611 = vmatmul.f32.gmra.mxu0 %v1337
        %v1612 = vpop.f32.mrf.mxu0
        %v1613 = vadd.f32 %v1500, %v1612
        %1614 = vmatmul.f32.gmra.mxu0 %v1339
        %v1615 = vpop.f32.mrf.mxu0
        %v1616 = vadd.f32 %v1503, %v1615
        %1617 = vmatmul.f32.gmra.mxu0 %v1341
        %v1618 = vpop.f32.mrf.mxu0
        %v1619 = vadd.f32 %v1506, %v1618
        %1620 = vmatmul.f32.gmra.mxu0 %v1343
        %v1621 = vpop.f32.mrf.mxu0
        %v1622 = vadd.f32 %v1509, %v1621
        %1623 = vmatmul.f32.gmra.mxu0 %v1345
        %v1624 = vpop.f32.mrf.mxu0
        %v1625 = vadd.f32 %v1512, %v1624
        %1626 = vmatmul.f32.gmra.mxu0 %v1347
        %v1627 = vpop.f32.mrf.mxu0
        %v1628 = vadd.f32 %v1515, %v1627
        %1629 = vmatmul.f32.gmra.mxu0 %v1349
        %v1630 = vpop.f32.mrf.mxu0
        %v1631 = vadd.f32 %v1518, %v1630
        %1632 = vmatmul.f32.gmra.mxu0 %v1351
        %v1633 = vpop.f32.mrf.mxu0
        %v1634 = vadd.f32 %v1521, %v1633
        %1635 = vmatmul.f32.gmra.mxu0 %v1353
        %v1636 = vpop.f32.mrf.mxu0
        %v1637 = vadd.f32 %v1524, %v1636
        %1638 = vmatmul.f32.gmra.mxu0 %v1355
        %v1639 = vpop.f32.mrf.mxu0
        %v1640 = vadd.f32 %v1527, %v1639
        %1641 = vmatmul.f32.gmra.mxu0 %v1357
        %v1642 = vpop.f32.mrf.mxu0
        %v1643 = vadd.f32 %v1530, %v1642
        %1644 = vmatmul.f32.gmra.mxu0 %v1359
        %v1645 = vpop.f32.mrf.mxu0
        %v1646 = vadd.f32 %v1533, %v1645
        %1647 = vmatmul.f32.gmra.mxu0 %v1361
        %v1648 = vpop.f32.mrf.mxu0
        %v1649 = vadd.f32 %v1536, %v1648
        %1650 = vmatmul.f32.gmra.mxu0 %v1363
        %v1651 = vpop.f32.mrf.mxu0
        %v1652 = vadd.f32 %v1539, %v1651
        %1653 = vmatmul.f32.gmra.mxu0 %v1365
        %v1654 = vpop.f32.mrf.mxu0
        %v1655 = vadd.f32 %v1542, %v1654
        %1656 = vmatmul.f32.gmra.mxu0 %v1367
        %v1657 = vpop.f32.mrf.mxu0
        %v1658 = vadd.f32 %v1545, %v1657
        %1659 = vmatmul.f32.gmra.mxu0 %v1369
        %v1660 = vpop.f32.mrf.mxu0
        %v1661 = vadd.f32 %v1548, %v1660
        %1662 = vmatmul.f32.gmra.mxu0 %v1371
        %v1663 = vpop.f32.mrf.mxu0
        %v1664 = vadd.f32 %v1551, %v1663
        %1665 = vmatmul.f32.gmra.mxu0 %v1373
        %v1666 = vpop.f32.mrf.mxu0
        %v1667 = vadd.f32 %v1554, %v1666
        %1668 = vmatmul.f32.gmra.mxu0 %v1375
        %v1669 = vpop.f32.mrf.mxu0
        %v1670 = vadd.f32 %v1557, %v1669
        %1671 = vdwg.mxu0
        %1672 = vmatpush.msra.mxu0 %v1407
        %1673 = vmatpush.msra.mxu0 %v1405
        %1674 = vmatpush.msra.mxu0 %v1403
        %1675 = vmatpush.msra.mxu0 %v1401
        %1676 = vmatpush.msra.mxu0 %v1399
        %1677 = vmatpush.msra.mxu0 %v1397
        %1678 = vmatpush.msra.mxu0 %v1395
        %1679 = vmatpush.msra.mxu0 %v1393
        %1680 = vmatpush.msra.mxu0 %v1391
        %1681 = vmatpush.msra.mxu0 %v1389
        %1682 = vmatpush.msra.mxu0 %v1387
        %1683 = vmatpush.msra.mxu0 %v1385
        %1684 = vmatpush.msra.mxu0 %v1383
        %1685 = vmatpush.msra.mxu0 %v1381
        %1686 = vmatpush.msra.mxu0 %v1379
        %1687 = vmatpush.msra.mxu0 %v1377
        %1688 = vmatmul.f32.gmra.mxu0 %v1312
        %v1689 = vpop.f32.mrf.mxu0
        %v1690 = vadd.f32 %v1443, %v1689
        %1691 = vmatmul.f32.gmra.mxu0 %v1314
        %v1692 = vpop.f32.mrf.mxu0
        %v1693 = vadd.f32 %v1443, %v1692
        %1694 = vmatmul.f32.gmra.mxu0 %v1316
        %v1695 = vpop.f32.mrf.mxu0
        %v1696 = vadd.f32 %v1443, %v1695
        %1697 = vmatmul.f32.gmra.mxu0 %v1318
        %v1698 = vpop.f32.mrf.mxu0
        %v1699 = vadd.f32 %v1443, %v1698
        %1700 = vmatmul.f32.gmra.mxu0 %v1320
        %v1701 = vpop.f32.mrf.mxu0
        %v1702 = vadd.f32 %v1443, %v1701
        %1703 = vmatmul.f32.gmra.mxu0 %v1322
        %v1704 = vpop.f32.mrf.mxu0
        %v1705 = vadd.f32 %v1443, %v1704
        %1706 = vmatmul.f32.gmra.mxu0 %v1324
        %v1707 = vpop.f32.mrf.mxu0
        %v1708 = vadd.f32 %v1443, %v1707
        %1709 = vmatmul.f32.gmra.mxu0 %v1326
        %v1710 = vpop.f32.mrf.mxu0
        %v1711 = vadd.f32 %v1443, %v1710
        %1712 = vmatmul.f32.gmra.mxu0 %v1328
        %v1713 = vpop.f32.mrf.mxu0
        %v1714 = vadd.f32 %v1443, %v1713
        %1715 = vmatmul.f32.gmra.mxu0 %v1330
        %v1716 = vpop.f32.mrf.mxu0
        %v1717 = vadd.f32 %v1443, %v1716
        %1718 = vmatmul.f32.gmra.mxu0 %v1332
        %v1719 = vpop.f32.mrf.mxu0
        %v1720 = vadd.f32 %v1443, %v1719
        %1721 = vmatmul.f32.gmra.mxu0 %v1334
        %v1722 = vpop.f32.mrf.mxu0
        %v1723 = vadd.f32 %v1443, %v1722
        %1724 = vmatmul.f32.gmra.mxu0 %v1336
        %v1725 = vpop.f32.mrf.mxu0
        %v1726 = vadd.f32 %v1443, %v1725
        %1727 = vmatmul.f32.gmra.mxu0 %v1338
        %v1728 = vpop.f32.mrf.mxu0
        %v1729 = vadd.f32 %v1443, %v1728
        %1730 = vmatmul.f32.gmra.mxu0 %v1340
        %v1731 = vpop.f32.mrf.mxu0
        %v1732 = vadd.f32 %v1443, %v1731
        %1733 = vmatmul.f32.gmra.mxu0 %v1342
        %v1734 = vpop.f32.mrf.mxu0
        %v1735 = vadd.f32 %v1443, %v1734
        %1736 = vmatmul.f32.gmra.mxu0 %v1344
        %v1737 = vpop.f32.mrf.mxu0
        %v1738 = vadd.f32 %v1443, %v1737
        %1739 = vmatmul.f32.gmra.mxu0 %v1346
        %v1740 = vpop.f32.mrf.mxu0
        %v1741 = vadd.f32 %v1443, %v1740
        %1742 = vmatmul.f32.gmra.mxu0 %v1348
        %v1743 = vpop.f32.mrf.mxu0
        %v1744 = vadd.f32 %v1443, %v1743
        %1745 = vmatmul.f32.gmra.mxu0 %v1350
        %v1746 = vpop.f32.mrf.mxu0
        %v1747 = vadd.f32 %v1443, %v1746
        %1748 = vmatmul.f32.gmra.mxu0 %v1352
        %v1749 = vpop.f32.mrf.mxu0
        %v1750 = vadd.f32 %v1443, %v1749
        %1751 = vmatmul.f32.gmra.mxu0 %v1354
        %v1752 = vpop.f32.mrf.mxu0
        %v1753 = vadd.f32 %v1443, %v1752
        %1754 = vmatmul.f32.gmra.mxu0 %v1356
        %v1755 = vpop.f32.mrf.mxu0
        %v1756 = vadd.f32 %v1443, %v1755
        %1757 = vmatmul.f32.gmra.mxu0 %v1358
        %v1758 = vpop.f32.mrf.mxu0
        %v1759 = vadd.f32 %v1443, %v1758
        %1760 = vmatmul.f32.gmra.mxu0 %v1360
        %v1761 = vpop.f32.mrf.mxu0
        %v1762 = vadd.f32 %v1443, %v1761
        %1763 = vmatmul.f32.gmra.mxu0 %v1362
        %v1764 = vpop.f32.mrf.mxu0
        %v1765 = vadd.f32 %v1443, %v1764
        %1766 = vmatmul.f32.gmra.mxu0 %v1364
        %v1767 = vpop.f32.mrf.mxu0
        %v1768 = vadd.f32 %v1443, %v1767
        %1769 = vmatmul.f32.gmra.mxu0 %v1366
        %v1770 = vpop.f32.mrf.mxu0
        %v1771 = vadd.f32 %v1443, %v1770
        %1772 = vmatmul.f32.gmra.mxu0 %v1368
        %v1773 = vpop.f32.mrf.mxu0
        %v1774 = vadd.f32 %v1443, %v1773
        %1775 = vmatmul.f32.gmra.mxu0 %v1370
        %v1776 = vpop.f32.mrf.mxu0
        %v1777 = vadd.f32 %v1443, %v1776
        %1778 = vmatmul.f32.gmra.mxu0 %v1372
        %v1779 = vpop.f32.mrf.mxu0
        %v1780 = vadd.f32 %v1443, %v1779
        %1781 = vmatmul.f32.gmra.mxu0 %v1374
        %v1782 = vpop.f32.mrf.mxu0
        %v1783 = vadd.f32 %v1443, %v1782
        %1784 = vdwg.mxu0
        %1785 = vmatpush.msra.mxu0 %v1439
        %1786 = vmatpush.msra.mxu0 %v1437
        %1787 = vmatpush.msra.mxu0 %v1435
        %1788 = vmatpush.msra.mxu0 %v1433
        %1789 = vmatpush.msra.mxu0 %v1431
        %1790 = vmatpush.msra.mxu0 %v1429
        %1791 = vmatpush.msra.mxu0 %v1427
        %1792 = vmatpush.msra.mxu0 %v1425
        %1793 = vmatpush.msra.mxu0 %v1423
        %1794 = vmatpush.msra.mxu0 %v1421
        %1795 = vmatpush.msra.mxu0 %v1419
        %1796 = vmatpush.msra.mxu0 %v1417
        %1797 = vmatpush.msra.mxu0 %v1415
        %1798 = vmatpush.msra.mxu0 %v1413
        %1799 = vmatpush.msra.mxu0 %v1411
        %1800 = vmatpush.msra.mxu0 %v1409
        %1801 = vmatmul.f32.gmra.mxu0 %v1313
        %v1802 = vpop.f32.mrf.mxu0
        %v1803 = vadd.f32 %v1690, %v1802
        %1804 = vmatmul.f32.gmra.mxu0 %v1315
        %v1805 = vpop.f32.mrf.mxu0
        %v1806 = vadd.f32 %v1693, %v1805
        %1807 = vmatmul.f32.gmra.mxu0 %v1317
        %v1808 = vpop.f32.mrf.mxu0
        %v1809 = vadd.f32 %v1696, %v1808
        %1810 = vmatmul.f32.gmra.mxu0 %v1319
        %v1811 = vpop.f32.mrf.mxu0
        %v1812 = vadd.f32 %v1699, %v1811
        %1813 = vmatmul.f32.gmra.mxu0 %v1321
        %v1814 = vpop.f32.mrf.mxu0
        %v1815 = vadd.f32 %v1702, %v1814
        %1816 = vmatmul.f32.gmra.mxu0 %v1323
        %v1817 = vpop.f32.mrf.mxu0
        %v1818 = vadd.f32 %v1705, %v1817
        %1819 = vmatmul.f32.gmra.mxu0 %v1325
        %v1820 = vpop.f32.mrf.mxu0
        %v1821 = vadd.f32 %v1708, %v1820
        %1822 = vmatmul.f32.gmra.mxu0 %v1327
        %v1823 = vpop.f32.mrf.mxu0
        %v1824 = vadd.f32 %v1711, %v1823
        %1825 = vmatmul.f32.gmra.mxu0 %v1329
        %v1826 = vpop.f32.mrf.mxu0
        %v1827 = vadd.f32 %v1714, %v1826
        %1828 = vmatmul.f32.gmra.mxu0 %v1331
        %v1829 = vpop.f32.mrf.mxu0
        %v1830 = vadd.f32 %v1717, %v1829
        %1831 = vmatmul.f32.gmra.mxu0 %v1333
        %v1832 = vpop.f32.mrf.mxu0
        %v1833 = vadd.f32 %v1720, %v1832
        %1834 = vmatmul.f32.gmra.mxu0 %v1335
        %v1835 = vpop.f32.mrf.mxu0
        %v1836 = vadd.f32 %v1723, %v1835
        %1837 = vmatmul.f32.gmra.mxu0 %v1337
        %v1838 = vpop.f32.mrf.mxu0
        %v1839 = vadd.f32 %v1726, %v1838
        %1840 = vmatmul.f32.gmra.mxu0 %v1339
        %v1841 = vpop.f32.mrf.mxu0
        %v1842 = vadd.f32 %v1729, %v1841
        %1843 = vmatmul.f32.gmra.mxu0 %v1341
        %v1844 = vpop.f32.mrf.mxu0
        %v1845 = vadd.f32 %v1732, %v1844
        %1846 = vmatmul.f32.gmra.mxu0 %v1343
        %v1847 = vpop.f32.mrf.mxu0
        %v1848 = vadd.f32 %v1735, %v1847
        %1849 = vmatmul.f32.gmra.mxu0 %v1345
        %v1850 = vpop.f32.mrf.mxu0
        %v1851 = vadd.f32 %v1738, %v1850
        %1852 = vmatmul.f32.gmra.mxu0 %v1347
        %v1853 = vpop.f32.mrf.mxu0
        %v1854 = vadd.f32 %v1741, %v1853
        %1855 = vmatmul.f32.gmra.mxu0 %v1349
        %v1856 = vpop.f32.mrf.mxu0
        %v1857 = vadd.f32 %v1744, %v1856
        %1858 = vmatmul.f32.gmra.mxu0 %v1351
        %v1859 = vpop.f32.mrf.mxu0
        %v1860 = vadd.f32 %v1747, %v1859
        %1861 = vmatmul.f32.gmra.mxu0 %v1353
        %v1862 = vpop.f32.mrf.mxu0
        %v1863 = vadd.f32 %v1750, %v1862
        %1864 = vmatmul.f32.gmra.mxu0 %v1355
        %v1865 = vpop.f32.mrf.mxu0
        %v1866 = vadd.f32 %v1753, %v1865
        %1867 = vmatmul.f32.gmra.mxu0 %v1357
        %v1868 = vpop.f32.mrf.mxu0
        %v1869 = vadd.f32 %v1756, %v1868
        %1870 = vmatmul.f32.gmra.mxu0 %v1359
        %v1871 = vpop.f32.mrf.mxu0
        %v1872 = vadd.f32 %v1759, %v1871
        %1873 = vmatmul.f32.gmra.mxu0 %v1361
        %v1874 = vpop.f32.mrf.mxu0
        %v1875 = vadd.f32 %v1762, %v1874
        %1876 = vmatmul.f32.gmra.mxu0 %v1363
        %v1877 = vpop.f32.mrf.mxu0
        %v1878 = vadd.f32 %v1765, %v1877
        %1879 = vmatmul.f32.gmra.mxu0 %v1365
        %v1880 = vpop.f32.mrf.mxu0
        %v1881 = vadd.f32 %v1768, %v1880
        %1882 = vmatmul.f32.gmra.mxu0 %v1367
        %v1883 = vpop.f32.mrf.mxu0
        %v1884 = vadd.f32 %v1771, %v1883
        %1885 = vmatmul.f32.gmra.mxu0 %v1369
        %v1886 = vpop.f32.mrf.mxu0
        %v1887 = vadd.f32 %v1774, %v1886
        %1888 = vmatmul.f32.gmra.mxu0 %v1371
        %v1889 = vpop.f32.mrf.mxu0
        %v1890 = vadd.f32 %v1777, %v1889
        %1891 = vmatmul.f32.gmra.mxu0 %v1373
        %v1892 = vpop.f32.mrf.mxu0
        %v1893 = vadd.f32 %v1780, %v1892
        %1894 = vmatmul.f32.gmra.mxu0 %v1375
        %v1895 = vpop.f32.mrf.mxu0
        %v1896 = vadd.f32 %v1783, %v1895
        %1897 = vdwg.mxu0
        %v1898 = vmax.f32 %v1577, 0.0
        %v1899 = vmax.f32 %v1803, 0.0
        %v1900 = vmax.f32 %v1580, 0.0
        %v1901 = vmax.f32 %v1806, 0.0
        %v1902 = vmax.f32 %v1583, 0.0
        %v1903 = vmax.f32 %v1809, 0.0
        %v1904 = vmax.f32 %v1586, 0.0
        %v1905 = vmax.f32 %v1812, 0.0
        %v1906 = vmax.f32 %v1589, 0.0
        %v1907 = vmax.f32 %v1815, 0.0
        %v1908 = vmax.f32 %v1592, 0.0
        %v1909 = vmax.f32 %v1818, 0.0
        %v1910 = vmax.f32 %v1595, 0.0
        %v1911 = vmax.f32 %v1821, 0.0
        %v1912 = vmax.f32 %v1598, 0.0
        %v1913 = vmax.f32 %v1824, 0.0
        %v1914 = vmax.f32 %v1601, 0.0
        %v1915 = vmax.f32 %v1827, 0.0
        %v1916 = vmax.f32 %v1604, 0.0
        %v1917 = vmax.f32 %v1830, 0.0
        %v1918 = vmax.f32 %v1607, 0.0
        %v1919 = vmax.f32 %v1833, 0.0
        %v1920 = vmax.f32 %v1610, 0.0
        %v1921 = vmax.f32 %v1836, 0.0
        %v1922 = vmax.f32 %v1613, 0.0
        %v1923 = vmax.f32 %v1839, 0.0
        %v1924 = vmax.f32 %v1616, 0.0
        %v1925 = vmax.f32 %v1842, 0.0
        %v1926 = vmax.f32 %v1619, 0.0
        %v1927 = vmax.f32 %v1845, 0.0
        %v1928 = vmax.f32 %v1622, 0.0
        %v1929 = vmax.f32 %v1848, 0.0
        %v1930 = vmax.f32 %v1625, 0.0
        %v1931 = vmax.f32 %v1851, 0.0
        %v1932 = vmax.f32 %v1628, 0.0
        %v1933 = vmax.f32 %v1854, 0.0
        %v1934 = vmax.f32 %v1631, 0.0
        %v1935 = vmax.f32 %v1857, 0.0
        %v1936 = vmax.f32 %v1634, 0.0
        %v1937 = vmax.f32 %v1860, 0.0
        %v1938 = vmax.f32 %v1637, 0.0
        %v1939 = vmax.f32 %v1863, 0.0
        %v1940 = vmax.f32 %v1640, 0.0
        %v1941 = vmax.f32 %v1866, 0.0
        %v1942 = vmax.f32 %v1643, 0.0
        %v1943 = vmax.f32 %v1869, 0.0
        %v1944 = vmax.f32 %v1646, 0.0
        %v1945 = vmax.f32 %v1872, 0.0
        %v1946 = vmax.f32 %v1649, 0.0
        %v1947 = vmax.f32 %v1875, 0.0
        %v1948 = vmax.f32 %v1652, 0.0
        %v1949 = vmax.f32 %v1878, 0.0
        %v1950 = vmax.f32 %v1655, 0.0
        %v1951 = vmax.f32 %v1881, 0.0
        %v1952 = vmax.f32 %v1658, 0.0
        %v1953 = vmax.f32 %v1884, 0.0
        %v1954 = vmax.f32 %v1661, 0.0
        %v1955 = vmax.f32 %v1887, 0.0
        %v1956 = vmax.f32 %v1664, 0.0
        %v1957 = vmax.f32 %v1890, 0.0
        %v1958 = vmax.f32 %v1667, 0.0
        %v1959 = vmax.f32 %v1893, 0.0
        %v1960 = vmax.f32 %v1670, 0.0
        %v1961 = vmax.f32 %v1896, 0.0
        %v1962 = vld [vmem:[#allocation8] sm:$0xff]
        %v1963 = vld [vmem:[#allocation8 + $0x8] sm:$0xff]
        %v1964 = vld [vmem:[#allocation8 + $0x10] sm:$0xff]
        %v1965 = vld [vmem:[#allocation8 + $0x18] sm:$0xff]
        %v1966 = vld [vmem:[#allocation8 + $0x20] sm:$0xff]
        %v1967 = vld [vmem:[#allocation8 + $0x28] sm:$0xff]
        %v1968 = vld [vmem:[#allocation8 + $0x30] sm:$0xff]
        %v1969 = vld [vmem:[#allocation8 + $0x38] sm:$0xff]
        %v1970 = vld [vmem:[#allocation8 + $0x40] sm:$0xff]
        %v1971 = vld [vmem:[#allocation8 + $0x48] sm:$0xff]
        %v1972 = vld [vmem:[#allocation8 + $0x50] sm:$0xff]
        %v1973 = vld [vmem:[#allocation8 + $0x58] sm:$0xff]
        %v1974 = vld [vmem:[#allocation8 + $0x60] sm:$0xff]
        %v1975 = vld [vmem:[#allocation8 + $0x68] sm:$0xff]
        %v1976 = vld [vmem:[#allocation8 + $0x70] sm:$0xff]
        %v1977 = vld [vmem:[#allocation8 + $0x78] sm:$0xff]
        %v1978 = vld [vmem:[#allocation8 + $0x80] sm:$0xff]
        %v1979 = vld [vmem:[#allocation8 + $0x88] sm:$0xff]
        %v1980 = vld [vmem:[#allocation8 + $0x90] sm:$0xff]
        %v1981 = vld [vmem:[#allocation8 + $0x98] sm:$0xff]
        %v1982 = vld [vmem:[#allocation8 + $0xa0] sm:$0xff]
        %v1983 = vld [vmem:[#allocation8 + $0xa8] sm:$0xff]
        %v1984 = vld [vmem:[#allocation8 + $0xb0] sm:$0xff]
        %v1985 = vld [vmem:[#allocation8 + $0xb8] sm:$0xff]
        %v1986 = vld [vmem:[#allocation8 + $0xc0] sm:$0xff]
        %v1987 = vld [vmem:[#allocation8 + $0xc8] sm:$0xff]
        %v1988 = vld [vmem:[#allocation8 + $0xd0] sm:$0xff]
        %v1989 = vld [vmem:[#allocation8 + $0xd8] sm:$0xff]
        %v1990 = vld [vmem:[#allocation8 + $0xe0] sm:$0xff]
        %v1991 = vld [vmem:[#allocation8 + $0xe8] sm:$0xff]
        %v1992 = vld [vmem:[#allocation8 + $0xf0] sm:$0xff]
        %v1993 = vld [vmem:[#allocation8 + $0xf8] sm:$0xff]
        %v1994 = vld [vmem:[#allocation8 + $0x100] sm:$0xff]
        %v1995 = vld [vmem:[#allocation8 + $0x108] sm:$0xff]
        %v1996 = vld [vmem:[#allocation8 + $0x110] sm:$0xff]
        %v1997 = vld [vmem:[#allocation8 + $0x118] sm:$0xff]
        %v1998 = vld [vmem:[#allocation8 + $0x120] sm:$0xff]
        %v1999 = vld [vmem:[#allocation8 + $0x128] sm:$0xff]
        %v2000 = vld [vmem:[#allocation8 + $0x130] sm:$0xff]
        %v2001 = vld [vmem:[#allocation8 + $0x138] sm:$0xff]
        %v2002 = vld [vmem:[#allocation8 + $0x140] sm:$0xff]
        %v2003 = vld [vmem:[#allocation8 + $0x148] sm:$0xff]
        %v2004 = vld [vmem:[#allocation8 + $0x150] sm:$0xff]
        %v2005 = vld [vmem:[#allocation8 + $0x158] sm:$0xff]
        %v2006 = vld [vmem:[#allocation8 + $0x160] sm:$0xff]
        %v2007 = vld [vmem:[#allocation8 + $0x168] sm:$0xff]
        %v2008 = vld [vmem:[#allocation8 + $0x170] sm:$0xff]
        %v2009 = vld [vmem:[#allocation8 + $0x178] sm:$0xff]
        %v2010 = vld [vmem:[#allocation8 + $0x180] sm:$0xff]
        %v2011 = vld [vmem:[#allocation8 + $0x188] sm:$0xff]
        %v2012 = vld [vmem:[#allocation8 + $0x190] sm:$0xff]
        %v2013 = vld [vmem:[#allocation8 + $0x198] sm:$0xff]
        %v2014 = vld [vmem:[#allocation8 + $0x1a0] sm:$0xff]
        %v2015 = vld [vmem:[#allocation8 + $0x1a8] sm:$0xff]
        %v2016 = vld [vmem:[#allocation8 + $0x1b0] sm:$0xff]
        %v2017 = vld [vmem:[#allocation8 + $0x1b8] sm:$0xff]
        %v2018 = vld [vmem:[#allocation8 + $0x1c0] sm:$0xff]
        %v2019 = vld [vmem:[#allocation8 + $0x1c8] sm:$0xff]
        %v2020 = vld [vmem:[#allocation8 + $0x1d0] sm:$0xff]
        %v2021 = vld [vmem:[#allocation8 + $0x1d8] sm:$0xff]
        %v2022 = vld [vmem:[#allocation8 + $0x1e0] sm:$0xff]
        %v2023 = vld [vmem:[#allocation8 + $0x1e8] sm:$0xff]
        %v2024 = vld [vmem:[#allocation8 + $0x1f0] sm:$0xff]
        %v2025 = vld [vmem:[#allocation8 + $0x1f8] sm:$0xff]
        %v2026 = vld [vmem:[%s10] sm:$0x3]
        %v2028 = vperm.slane %v2026, 0
        %v2029 = vperm.slane %v2026, 1
        %2032 = vmatpush.msra.mxu0 %v1992
        %2033 = vmatpush.msra.mxu0 %v1990
        %2034 = vmatpush.msra.mxu0 %v1988
        %2035 = vmatpush.msra.mxu0 %v1986
        %2036 = vmatpush.msra.mxu0 %v1984
        %2037 = vmatpush.msra.mxu0 %v1982
        %2038 = vmatpush.msra.mxu0 %v1980
        %2039 = vmatpush.msra.mxu0 %v1978
        %2040 = vmatpush.msra.mxu0 %v1976
        %2041 = vmatpush.msra.mxu0 %v1974
        %2042 = vmatpush.msra.mxu0 %v1972
        %2043 = vmatpush.msra.mxu0 %v1970
        %2044 = vmatpush.msra.mxu0 %v1968
        %2045 = vmatpush.msra.mxu0 %v1966
        %2046 = vmatpush.msra.mxu0 %v1964
        %2047 = vmatpush.msra.mxu0 %v1962
        %2048 = vmatmul.f32.gmra.mxu0 %v1898
        %v2049 = vpop.f32.mrf.mxu0
        %v2050 = vadd.f32 %v2028, %v2049
        %2051 = vmatmul.f32.gmra.mxu0 %v1900
        %v2052 = vpop.f32.mrf.mxu0
        %v2053 = vadd.f32 %v2028, %v2052
        %2054 = vmatmul.f32.gmra.mxu0 %v1902
        %v2055 = vpop.f32.mrf.mxu0
        %v2056 = vadd.f32 %v2028, %v2055
        %2057 = vmatmul.f32.gmra.mxu0 %v1904
        %v2058 = vpop.f32.mrf.mxu0
        %v2059 = vadd.f32 %v2028, %v2058
        %2060 = vmatmul.f32.gmra.mxu0 %v1906
        %v2061 = vpop.f32.mrf.mxu0
        %v2062 = vadd.f32 %v2028, %v2061
        %2063 = vmatmul.f32.gmra.mxu0 %v1908
        %v2064 = vpop.f32.mrf.mxu0
        %v2065 = vadd.f32 %v2028, %v2064
        %2066 = vmatmul.f32.gmra.mxu0 %v1910
        %v2067 = vpop.f32.mrf.mxu0
        %v2068 = vadd.f32 %v2028, %v2067
        %2069 = vmatmul.f32.gmra.mxu0 %v1912
        %v2070 = vpop.f32.mrf.mxu0
        %v2071 = vadd.f32 %v2028, %v2070
        %2072 = vmatmul.f32.gmra.mxu0 %v1914
        %v2073 = vpop.f32.mrf.mxu0
        %v2074 = vadd.f32 %v2028, %v2073
        %2075 = vmatmul.f32.gmra.mxu0 %v1916
        %v2076 = vpop.f32.mrf.mxu0
        %v2077 = vadd.f32 %v2028, %v2076
        %2078 = vmatmul.f32.gmra.mxu0 %v1918
        %v2079 = vpop.f32.mrf.mxu0
        %v2080 = vadd.f32 %v2028, %v2079
        %2081 = vmatmul.f32.gmra.mxu0 %v1920
        %v2082 = vpop.f32.mrf.mxu0
        %v2083 = vadd.f32 %v2028, %v2082
        %2084 = vmatmul.f32.gmra.mxu0 %v1922
        %v2085 = vpop.f32.mrf.mxu0
        %v2086 = vadd.f32 %v2028, %v2085
        %2087 = vmatmul.f32.gmra.mxu0 %v1924
        %v2088 = vpop.f32.mrf.mxu0
        %v2089 = vadd.f32 %v2028, %v2088
        %2090 = vmatmul.f32.gmra.mxu0 %v1926
        %v2091 = vpop.f32.mrf.mxu0
        %v2092 = vadd.f32 %v2028, %v2091
        %2093 = vmatmul.f32.gmra.mxu0 %v1928
        %v2094 = vpop.f32.mrf.mxu0
        %v2095 = vadd.f32 %v2028, %v2094
        %2096 = vmatmul.f32.gmra.mxu0 %v1930
        %v2097 = vpop.f32.mrf.mxu0
        %v2098 = vadd.f32 %v2028, %v2097
        %2099 = vmatmul.f32.gmra.mxu0 %v1932
        %v2100 = vpop.f32.mrf.mxu0
        %v2101 = vadd.f32 %v2028, %v2100
        %2102 = vmatmul.f32.gmra.mxu0 %v1934
        %v2103 = vpop.f32.mrf.mxu0
        %v2104 = vadd.f32 %v2028, %v2103
        %2105 = vmatmul.f32.gmra.mxu0 %v1936
        %v2106 = vpop.f32.mrf.mxu0
        %v2107 = vadd.f32 %v2028, %v2106
        %2108 = vmatmul.f32.gmra.mxu0 %v1938
        %v2109 = vpop.f32.mrf.mxu0
        %v2110 = vadd.f32 %v2028, %v2109
        %2111 = vmatmul.f32.gmra.mxu0 %v1940
        %v2112 = vpop.f32.mrf.mxu0
        %v2113 = vadd.f32 %v2028, %v2112
        %2114 = vmatmul.f32.gmra.mxu0 %v1942
        %v2115 = vpop.f32.mrf.mxu0
        %v2116 = vadd.f32 %v2028, %v2115
        %2117 = vmatmul.f32.gmra.mxu0 %v1944
        %v2118 = vpop.f32.mrf.mxu0
        %v2119 = vadd.f32 %v2028, %v2118
        %2120 = vmatmul.f32.gmra.mxu0 %v1946
        %v2121 = vpop.f32.mrf.mxu0
        %v2122 = vadd.f32 %v2028, %v2121
        %2123 = vmatmul.f32.gmra.mxu0 %v1948
        %v2124 = vpop.f32.mrf.mxu0
        %v2125 = vadd.f32 %v2028, %v2124
        %2126 = vmatmul.f32.gmra.mxu0 %v1950
        %v2127 = vpop.f32.mrf.mxu0
        %v2128 = vadd.f32 %v2028, %v2127
        %2129 = vmatmul.f32.gmra.mxu0 %v1952
        %v2130 = vpop.f32.mrf.mxu0
        %v2131 = vadd.f32 %v2028, %v2130
        %2132 = vmatmul.f32.gmra.mxu0 %v1954
        %v2133 = vpop.f32.mrf.mxu0
        %v2134 = vadd.f32 %v2028, %v2133
        %2135 = vmatmul.f32.gmra.mxu0 %v1956
        %v2136 = vpop.f32.mrf.mxu0
        %v2137 = vadd.f32 %v2028, %v2136
        %2138 = vmatmul.f32.gmra.mxu0 %v1958
        %v2139 = vpop.f32.mrf.mxu0
        %v2140 = vadd.f32 %v2028, %v2139
        %2141 = vmatmul.f32.gmra.mxu0 %v1960
        %v2142 = vpop.f32.mrf.mxu0
        %v2143 = vadd.f32 %v2028, %v2142
        %2144 = vdwg.mxu0
        %2145 = vmatpush.msra.mxu0 %v2024
        %2146 = vmatpush.msra.mxu0 %v2022
        %2147 = vmatpush.msra.mxu0 %v2020
        %2148 = vmatpush.msra.mxu0 %v2018
        %2149 = vmatpush.msra.mxu0 %v2016
        %2150 = vmatpush.msra.mxu0 %v2014
        %2151 = vmatpush.msra.mxu0 %v2012
        %2152 = vmatpush.msra.mxu0 %v2010
        %2153 = vmatpush.msra.mxu0 %v2008
        %2154 = vmatpush.msra.mxu0 %v2006
        %2155 = vmatpush.msra.mxu0 %v2004
        %2156 = vmatpush.msra.mxu0 %v2002
        %2157 = vmatpush.msra.mxu0 %v2000
        %2158 = vmatpush.msra.mxu0 %v1998
        %2159 = vmatpush.msra.mxu0 %v1996
        %2160 = vmatpush.msra.mxu0 %v1994
        %2161 = vmatmul.f32.gmra.mxu0 %v1899
        %v2162 = vpop.f32.mrf.mxu0
        %v2163 = vadd.f32 %v2050, %v2162
        %2164 = vmatmul.f32.gmra.mxu0 %v1901
        %v2165 = vpop.f32.mrf.mxu0
        %v2166 = vadd.f32 %v2053, %v2165
        %2167 = vmatmul.f32.gmra.mxu0 %v1903
        %v2168 = vpop.f32.mrf.mxu0
        %v2169 = vadd.f32 %v2056, %v2168
        %2170 = vmatmul.f32.gmra.mxu0 %v1905
        %v2171 = vpop.f32.mrf.mxu0
        %v2172 = vadd.f32 %v2059, %v2171
        %2173 = vmatmul.f32.gmra.mxu0 %v1907
        %v2174 = vpop.f32.mrf.mxu0
        %v2175 = vadd.f32 %v2062, %v2174
        %2176 = vmatmul.f32.gmra.mxu0 %v1909
        %v2177 = vpop.f32.mrf.mxu0
        %v2178 = vadd.f32 %v2065, %v2177
        %2179 = vmatmul.f32.gmra.mxu0 %v1911
        %v2180 = vpop.f32.mrf.mxu0
        %v2181 = vadd.f32 %v2068, %v2180
        %2182 = vmatmul.f32.gmra.mxu0 %v1913
        %v2183 = vpop.f32.mrf.mxu0
        %v2184 = vadd.f32 %v2071, %v2183
        %2185 = vmatmul.f32.gmra.mxu0 %v1915
        %v2186 = vpop.f32.mrf.mxu0
        %v2187 = vadd.f32 %v2074, %v2186
        %2188 = vmatmul.f32.gmra.mxu0 %v1917
        %v2189 = vpop.f32.mrf.mxu0
        %v2190 = vadd.f32 %v2077, %v2189
        %2191 = vmatmul.f32.gmra.mxu0 %v1919
        %v2192 = vpop.f32.mrf.mxu0
        %v2193 = vadd.f32 %v2080, %v2192
        %2194 = vmatmul.f32.gmra.mxu0 %v1921
        %v2195 = vpop.f32.mrf.mxu0
        %v2196 = vadd.f32 %v2083, %v2195
        %2197 = vmatmul.f32.gmra.mxu0 %v1923
        %v2198 = vpop.f32.mrf.mxu0
        %v2199 = vadd.f32 %v2086, %v2198
        %2200 = vmatmul.f32.gmra.mxu0 %v1925
        %v2201 = vpop.f32.mrf.mxu0
        %v2202 = vadd.f32 %v2089, %v2201
        %2203 = vmatmul.f32.gmra.mxu0 %v1927
        %v2204 = vpop.f32.mrf.mxu0
        %v2205 = vadd.f32 %v2092, %v2204
        %2206 = vmatmul.f32.gmra.mxu0 %v1929
        %v2207 = vpop.f32.mrf.mxu0
        %v2208 = vadd.f32 %v2095, %v2207
        %2209 = vmatmul.f32.gmra.mxu0 %v1931
        %v2210 = vpop.f32.mrf.mxu0
        %v2211 = vadd.f32 %v2098, %v2210
        %2212 = vmatmul.f32.gmra.mxu0 %v1933
        %v2213 = vpop.f32.mrf.mxu0
        %v2214 = vadd.f32 %v2101, %v2213
        %2215 = vmatmul.f32.gmra.mxu0 %v1935
        %v2216 = vpop.f32.mrf.mxu0
        %v2217 = vadd.f32 %v2104, %v2216
        %2218 = vmatmul.f32.gmra.mxu0 %v1937
        %v2219 = vpop.f32.mrf.mxu0
        %v2220 = vadd.f32 %v2107, %v2219
        %2221 = vmatmul.f32.gmra.mxu0 %v1939
        %v2222 = vpop.f32.mrf.mxu0
        %v2223 = vadd.f32 %v2110, %v2222
        %2224 = vmatmul.f32.gmra.mxu0 %v1941
        %v2225 = vpop.f32.mrf.mxu0
        %v2226 = vadd.f32 %v2113, %v2225
        %2227 = vmatmul.f32.gmra.mxu0 %v1943
        %v2228 = vpop.f32.mrf.mxu0
        %v2229 = vadd.f32 %v2116, %v2228
        %2230 = vmatmul.f32.gmra.mxu0 %v1945
        %v2231 = vpop.f32.mrf.mxu0
        %v2232 = vadd.f32 %v2119, %v2231
        %2233 = vmatmul.f32.gmra.mxu0 %v1947
        %v2234 = vpop.f32.mrf.mxu0
        %v2235 = vadd.f32 %v2122, %v2234
        %2236 = vmatmul.f32.gmra.mxu0 %v1949
        %v2237 = vpop.f32.mrf.mxu0
        %v2238 = vadd.f32 %v2125, %v2237
        %2239 = vmatmul.f32.gmra.mxu0 %v1951
        %v2240 = vpop.f32.mrf.mxu0
        %v2241 = vadd.f32 %v2128, %v2240
        %2242 = vmatmul.f32.gmra.mxu0 %v1953
        %v2243 = vpop.f32.mrf.mxu0
        %v2244 = vadd.f32 %v2131, %v2243
        %2245 = vmatmul.f32.gmra.mxu0 %v1955
        %v2246 = vpop.f32.mrf.mxu0
        %v2247 = vadd.f32 %v2134, %v2246
        %2248 = vmatmul.f32.gmra.mxu0 %v1957
        %v2249 = vpop.f32.mrf.mxu0
        %v2250 = vadd.f32 %v2137, %v2249
        %2251 = vmatmul.f32.gmra.mxu0 %v1959
        %v2252 = vpop.f32.mrf.mxu0
        %v2253 = vadd.f32 %v2140, %v2252
        %2254 = vmatmul.f32.gmra.mxu0 %v1961
        %v2255 = vpop.f32.mrf.mxu0
        %v2256 = vadd.f32 %v2143, %v2255
        %2257 = vdwg.mxu0
        %2258 = vmatpush.msra.mxu0 %v1993
        %2259 = vmatpush.msra.mxu0 %v1991
        %2260 = vmatpush.msra.mxu0 %v1989
        %2261 = vmatpush.msra.mxu0 %v1987
        %2262 = vmatpush.msra.mxu0 %v1985
        %2263 = vmatpush.msra.mxu0 %v1983
        %2264 = vmatpush.msra.mxu0 %v1981
        %2265 = vmatpush.msra.mxu0 %v1979
        %2266 = vmatpush.msra.mxu0 %v1977
        %2267 = vmatpush.msra.mxu0 %v1975
        %2268 = vmatpush.msra.mxu0 %v1973
        %2269 = vmatpush.msra.mxu0 %v1971
        %2270 = vmatpush.msra.mxu0 %v1969
        %2271 = vmatpush.msra.mxu0 %v1967
        %2272 = vmatpush.msra.mxu0 %v1965
        %2273 = vmatpush.msra.mxu0 %v1963
        %2274 = vmatmul.f32.gmra.mxu0 %v1898
        %v2275 = vpop.f32.mrf.mxu0
        %v2276 = vadd.f32 %v2029, %v2275
        %2277 = vmatmul.f32.gmra.mxu0 %v1900
        %v2278 = vpop.f32.mrf.mxu0
        %v2279 = vadd.f32 %v2029, %v2278
        %2280 = vmatmul.f32.gmra.mxu0 %v1902
        %v2281 = vpop.f32.mrf.mxu0
        %v2282 = vadd.f32 %v2029, %v2281
        %2283 = vmatmul.f32.gmra.mxu0 %v1904
        %v2284 = vpop.f32.mrf.mxu0
        %v2285 = vadd.f32 %v2029, %v2284
        %2286 = vmatmul.f32.gmra.mxu0 %v1906
        %v2287 = vpop.f32.mrf.mxu0
        %v2288 = vadd.f32 %v2029, %v2287
        %2289 = vmatmul.f32.gmra.mxu0 %v1908
        %v2290 = vpop.f32.mrf.mxu0
        %v2291 = vadd.f32 %v2029, %v2290
        %2292 = vmatmul.f32.gmra.mxu0 %v1910
        %v2293 = vpop.f32.mrf.mxu0
        %v2294 = vadd.f32 %v2029, %v2293
        %2295 = vmatmul.f32.gmra.mxu0 %v1912
        %v2296 = vpop.f32.mrf.mxu0
        %v2297 = vadd.f32 %v2029, %v2296
        %2298 = vmatmul.f32.gmra.mxu0 %v1914
        %v2299 = vpop.f32.mrf.mxu0
        %v2300 = vadd.f32 %v2029, %v2299
        %2301 = vmatmul.f32.gmra.mxu0 %v1916
        %v2302 = vpop.f32.mrf.mxu0
        %v2303 = vadd.f32 %v2029, %v2302
        %2304 = vmatmul.f32.gmra.mxu0 %v1918
        %v2305 = vpop.f32.mrf.mxu0
        %v2306 = vadd.f32 %v2029, %v2305
        %2307 = vmatmul.f32.gmra.mxu0 %v1920
        %v2308 = vpop.f32.mrf.mxu0
        %v2309 = vadd.f32 %v2029, %v2308
        %2310 = vmatmul.f32.gmra.mxu0 %v1922
        %v2311 = vpop.f32.mrf.mxu0
        %v2312 = vadd.f32 %v2029, %v2311
        %2313 = vmatmul.f32.gmra.mxu0 %v1924
        %v2314 = vpop.f32.mrf.mxu0
        %v2315 = vadd.f32 %v2029, %v2314
        %2316 = vmatmul.f32.gmra.mxu0 %v1926
        %v2317 = vpop.f32.mrf.mxu0
        %v2318 = vadd.f32 %v2029, %v2317
        %2319 = vmatmul.f32.gmra.mxu0 %v1928
        %v2320 = vpop.f32.mrf.mxu0
        %v2321 = vadd.f32 %v2029, %v2320
        %2322 = vmatmul.f32.gmra.mxu0 %v1930
        %v2323 = vpop.f32.mrf.mxu0
        %v2324 = vadd.f32 %v2029, %v2323
        %2325 = vmatmul.f32.gmra.mxu0 %v1932
        %v2326 = vpop.f32.mrf.mxu0
        %v2327 = vadd.f32 %v2029, %v2326
        %2328 = vmatmul.f32.gmra.mxu0 %v1934
        %v2329 = vpop.f32.mrf.mxu0
        %v2330 = vadd.f32 %v2029, %v2329
        %2331 = vmatmul.f32.gmra.mxu0 %v1936
        %v2332 = vpop.f32.mrf.mxu0
        %v2333 = vadd.f32 %v2029, %v2332
        %2334 = vmatmul.f32.gmra.mxu0 %v1938
        %v2335 = vpop.f32.mrf.mxu0
        %v2336 = vadd.f32 %v2029, %v2335
        %2337 = vmatmul.f32.gmra.mxu0 %v1940
        %v2338 = vpop.f32.mrf.mxu0
        %v2339 = vadd.f32 %v2029, %v2338
        %2340 = vmatmul.f32.gmra.mxu0 %v1942
        %v2341 = vpop.f32.mrf.mxu0
        %v2342 = vadd.f32 %v2029, %v2341
        %2343 = vmatmul.f32.gmra.mxu0 %v1944
        %v2344 = vpop.f32.mrf.mxu0
        %v2345 = vadd.f32 %v2029, %v2344
        %2346 = vmatmul.f32.gmra.mxu0 %v1946
        %v2347 = vpop.f32.mrf.mxu0
        %v2348 = vadd.f32 %v2029, %v2347
        %2349 = vmatmul.f32.gmra.mxu0 %v1948
        %v2350 = vpop.f32.mrf.mxu0
        %v2351 = vadd.f32 %v2029, %v2350
        %2352 = vmatmul.f32.gmra.mxu0 %v1950
        %v2353 = vpop.f32.mrf.mxu0
        %v2354 = vadd.f32 %v2029, %v2353
        %2355 = vmatmul.f32.gmra.mxu0 %v1952
        %v2356 = vpop.f32.mrf.mxu0
        %v2357 = vadd.f32 %v2029, %v2356
        %2358 = vmatmul.f32.gmra.mxu0 %v1954
        %v2359 = vpop.f32.mrf.mxu0
        %v2360 = vadd.f32 %v2029, %v2359
        %2361 = vmatmul.f32.gmra.mxu0 %v1956
        %v2362 = vpop.f32.mrf.mxu0
        %v2363 = vadd.f32 %v2029, %v2362
        %2364 = vmatmul.f32.gmra.mxu0 %v1958
        %v2365 = vpop.f32.mrf.mxu0
        %v2366 = vadd.f32 %v2029, %v2365
        %2367 = vmatmul.f32.gmra.mxu0 %v1960
        %v2368 = vpop.f32.mrf.mxu0
        %v2369 = vadd.f32 %v2029, %v2368
        %2370 = vdwg.mxu0
        %2371 = vmatpush.msra.mxu0 %v2025
        %2372 = vmatpush.msra.mxu0 %v2023
        %2373 = vmatpush.msra.mxu0 %v2021
        %2374 = vmatpush.msra.mxu0 %v2019
        %2375 = vmatpush.msra.mxu0 %v2017
        %2376 = vmatpush.msra.mxu0 %v2015
        %2377 = vmatpush.msra.mxu0 %v2013
        %2378 = vmatpush.msra.mxu0 %v2011
        %2379 = vmatpush.msra.mxu0 %v2009
        %2380 = vmatpush.msra.mxu0 %v2007
        %2381 = vmatpush.msra.mxu0 %v2005
        %2382 = vmatpush.msra.mxu0 %v2003
        %2383 = vmatpush.msra.mxu0 %v2001
        %2384 = vmatpush.msra.mxu0 %v1999
        %2385 = vmatpush.msra.mxu0 %v1997
        %2386 = vmatpush.msra.mxu0 %v1995
        %2387 = vmatmul.f32.gmra.mxu0 %v1899
        %v2388 = vpop.f32.mrf.mxu0
        %v2389 = vadd.f32 %v2276, %v2388
        %2390 = vmatmul.f32.gmra.mxu0 %v1901
        %v2391 = vpop.f32.mrf.mxu0
        %v2392 = vadd.f32 %v2279, %v2391
        %2393 = vmatmul.f32.gmra.mxu0 %v1903
        %v2394 = vpop.f32.mrf.mxu0
        %v2395 = vadd.f32 %v2282, %v2394
        %2396 = vmatmul.f32.gmra.mxu0 %v1905
        %v2397 = vpop.f32.mrf.mxu0
        %v2398 = vadd.f32 %v2285, %v2397
        %2399 = vmatmul.f32.gmra.mxu0 %v1907
        %v2400 = vpop.f32.mrf.mxu0
        %v2401 = vadd.f32 %v2288, %v2400
        %2402 = vmatmul.f32.gmra.mxu0 %v1909
        %v2403 = vpop.f32.mrf.mxu0
        %v2404 = vadd.f32 %v2291, %v2403
        %2405 = vmatmul.f32.gmra.mxu0 %v1911
        %v2406 = vpop.f32.mrf.mxu0
        %v2407 = vadd.f32 %v2294, %v2406
        %2408 = vmatmul.f32.gmra.mxu0 %v1913
        %v2409 = vpop.f32.mrf.mxu0
        %v2410 = vadd.f32 %v2297, %v2409
        %2411 = vmatmul.f32.gmra.mxu0 %v1915
        %v2412 = vpop.f32.mrf.mxu0
        %v2413 = vadd.f32 %v2300, %v2412
        %2414 = vmatmul.f32.gmra.mxu0 %v1917
        %v2415 = vpop.f32.mrf.mxu0
        %v2416 = vadd.f32 %v2303, %v2415
        %2417 = vmatmul.f32.gmra.mxu0 %v1919
        %v2418 = vpop.f32.mrf.mxu0
        %v2419 = vadd.f32 %v2306, %v2418
        %2420 = vmatmul.f32.gmra.mxu0 %v1921
        %v2421 = vpop.f32.mrf.mxu0
        %v2422 = vadd.f32 %v2309, %v2421
        %2423 = vmatmul.f32.gmra.mxu0 %v1923
        %v2424 = vpop.f32.mrf.mxu0
        %v2425 = vadd.f32 %v2312, %v2424
        %2426 = vmatmul.f32.gmra.mxu0 %v1925
        %v2427 = vpop.f32.mrf.mxu0
        %v2428 = vadd.f32 %v2315, %v2427
        %2429 = vmatmul.f32.gmra.mxu0 %v1927
        %v2430 = vpop.f32.mrf.mxu0
        %v2431 = vadd.f32 %v2318, %v2430
        %2432 = vmatmul.f32.gmra.mxu0 %v1929
        %v2433 = vpop.f32.mrf.mxu0
        %v2434 = vadd.f32 %v2321, %v2433
        %2435 = vmatmul.f32.gmra.mxu0 %v1931
        %v2436 = vpop.f32.mrf.mxu0
        %v2437 = vadd.f32 %v2324, %v2436
        %2438 = vmatmul.f32.gmra.mxu0 %v1933
        %v2439 = vpop.f32.mrf.mxu0
        %v2440 = vadd.f32 %v2327, %v2439
        %2441 = vmatmul.f32.gmra.mxu0 %v1935
        %v2442 = vpop.f32.mrf.mxu0
        %v2443 = vadd.f32 %v2330, %v2442
        %2444 = vmatmul.f32.gmra.mxu0 %v1937
        %v2445 = vpop.f32.mrf.mxu0
        %v2446 = vadd.f32 %v2333, %v2445
        %2447 = vmatmul.f32.gmra.mxu0 %v1939
        %v2448 = vpop.f32.mrf.mxu0
        %v2449 = vadd.f32 %v2336, %v2448
        %2450 = vmatmul.f32.gmra.mxu0 %v1941
        %v2451 = vpop.f32.mrf.mxu0
        %v2452 = vadd.f32 %v2339, %v2451
        %2453 = vmatmul.f32.gmra.mxu0 %v1943
        %v2454 = vpop.f32.mrf.mxu0
        %v2455 = vadd.f32 %v2342, %v2454
        %2456 = vmatmul.f32.gmra.mxu0 %v1945
        %v2457 = vpop.f32.mrf.mxu0
        %v2458 = vadd.f32 %v2345, %v2457
        %2459 = vmatmul.f32.gmra.mxu0 %v1947
        %v2460 = vpop.f32.mrf.mxu0
        %v2461 = vadd.f32 %v2348, %v2460
        %2462 = vmatmul.f32.gmra.mxu0 %v1949
        %v2463 = vpop.f32.mrf.mxu0
        %v2464 = vadd.f32 %v2351, %v2463
        %2465 = vmatmul.f32.gmra.mxu0 %v1951
        %v2466 = vpop.f32.mrf.mxu0
        %v2467 = vadd.f32 %v2354, %v2466
        %2468 = vmatmul.f32.gmra.mxu0 %v1953
        %v2469 = vpop.f32.mrf.mxu0
        %v2470 = vadd.f32 %v2357, %v2469
        %2471 = vmatmul.f32.gmra.mxu0 %v1955
        %v2472 = vpop.f32.mrf.mxu0
        %v2473 = vadd.f32 %v2360, %v2472
        %2474 = vmatmul.f32.gmra.mxu0 %v1957
        %v2475 = vpop.f32.mrf.mxu0
        %v2476 = vadd.f32 %v2363, %v2475
        %2477 = vmatmul.f32.gmra.mxu0 %v1959
        %v2478 = vpop.f32.mrf.mxu0
        %v2479 = vadd.f32 %v2366, %v2478
        %2480 = vmatmul.f32.gmra.mxu0 %v1961
        %v2481 = vpop.f32.mrf.mxu0
        %v2482 = vadd.f32 %v2369, %v2481
        %2483 = vdwg.mxu0
        %v2484 = vmax.f32 %v2163, 0.0
        %v2485 = vmax.f32 %v2389, 0.0
        %v2486 = vmax.f32 %v2166, 0.0
        %v2487 = vmax.f32 %v2392, 0.0
        %v2488 = vmax.f32 %v2169, 0.0
        %v2489 = vmax.f32 %v2395, 0.0
        %v2490 = vmax.f32 %v2172, 0.0
        %v2491 = vmax.f32 %v2398, 0.0
        %v2492 = vmax.f32 %v2175, 0.0
        %v2493 = vmax.f32 %v2401, 0.0
        %v2494 = vmax.f32 %v2178, 0.0
        %v2495 = vmax.f32 %v2404, 0.0
        %v2496 = vmax.f32 %v2181, 0.0
        %v2497 = vmax.f32 %v2407, 0.0
        %v2498 = vmax.f32 %v2184, 0.0
        %v2499 = vmax.f32 %v2410, 0.0
        %v2500 = vmax.f32 %v2187, 0.0
        %v2501 = vmax.f32 %v2413, 0.0
        %v2502 = vmax.f32 %v2190, 0.0
        %v2503 = vmax.f32 %v2416, 0.0
        %v2504 = vmax.f32 %v2193, 0.0
        %v2505 = vmax.f32 %v2419, 0.0
        %v2506 = vmax.f32 %v2196, 0.0
        %v2507 = vmax.f32 %v2422, 0.0
        %v2508 = vmax.f32 %v2199, 0.0
        %v2509 = vmax.f32 %v2425, 0.0
        %v2510 = vmax.f32 %v2202, 0.0
        %v2511 = vmax.f32 %v2428, 0.0
        %v2512 = vmax.f32 %v2205, 0.0
        %v2513 = vmax.f32 %v2431, 0.0
        %v2514 = vmax.f32 %v2208, 0.0
        %v2515 = vmax.f32 %v2434, 0.0
        %v2516 = vmax.f32 %v2211, 0.0
        %v2517 = vmax.f32 %v2437, 0.0
        %v2518 = vmax.f32 %v2214, 0.0
        %v2519 = vmax.f32 %v2440, 0.0
        %v2520 = vmax.f32 %v2217, 0.0
        %v2521 = vmax.f32 %v2443, 0.0
        %v2522 = vmax.f32 %v2220, 0.0
        %v2523 = vmax.f32 %v2446, 0.0
        %v2524 = vmax.f32 %v2223, 0.0
        %v2525 = vmax.f32 %v2449, 0.0
        %v2526 = vmax.f32 %v2226, 0.0
        %v2527 = vmax.f32 %v2452, 0.0
        %v2528 = vmax.f32 %v2229, 0.0
        %v2529 = vmax.f32 %v2455, 0.0
        %v2530 = vmax.f32 %v2232, 0.0
        %v2531 = vmax.f32 %v2458, 0.0
        %v2532 = vmax.f32 %v2235, 0.0
        %v2533 = vmax.f32 %v2461, 0.0
        %v2534 = vmax.f32 %v2238, 0.0
        %v2535 = vmax.f32 %v2464, 0.0
        %v2536 = vmax.f32 %v2241, 0.0
        %v2537 = vmax.f32 %v2467, 0.0
        %v2538 = vmax.f32 %v2244, 0.0
        %v2539 = vmax.f32 %v2470, 0.0
        %v2540 = vmax.f32 %v2247, 0.0
        %v2541 = vmax.f32 %v2473, 0.0
        %v2542 = vmax.f32 %v2250, 0.0
        %v2543 = vmax.f32 %v2476, 0.0
        %v2544 = vmax.f32 %v2253, 0.0
        %v2545 = vmax.f32 %v2479, 0.0
        %v2546 = vmax.f32 %v2256, 0.0
        %v2547 = vmax.f32 %v2482, 0.0
        %v2548 = vadd.f32 %v2484, %v2486
        %v2549 = vadd.f32 %v2548, %v2488
        %v2550 = vadd.f32 %v2549, %v2490
        %v2551 = vadd.f32 %v2550, %v2492
        %v2552 = vadd.f32 %v2551, %v2494
        %v2553 = vadd.f32 %v2552, %v2496
        %v2554 = vadd.f32 %v2553, %v2498
        %v2555 = vrot.slane %v2554, 4
        %v2556 = vadd.f32 %v2554, %v2555
        %v2557 = vrot.slane %v2556, 2
        %v2558 = vadd.f32 %v2556, %v2557
        %v2559 = vrot.slane %v2558, 1
        %v2560 = vadd.f32 %v2558, %v2559
        %v2561 = vadd.f32 %v2485, %v2487
        %v2562 = vadd.f32 %v2561, %v2489
        %v2563 = vadd.f32 %v2562, %v2491
        %v2564 = vadd.f32 %v2563, %v2493
        %v2565 = vadd.f32 %v2564, %v2495
        %v2566 = vadd.f32 %v2565, %v2497
        %v2567 = vadd.f32 %v2566, %v2499
        %v2568 = vrot.slane %v2567, 4
        %v2569 = vadd.f32 %v2567, %v2568
        %v2570 = vrot.slane %v2569, 2
        %v2571 = vadd.f32 %v2569, %v2570
        %v2572 = vrot.slane %v2571, 1
        %v2573 = vadd.f32 %v2571, %v2572
        %v2574 = vadd.f32 %v2500, %v2502
        %v2575 = vadd.f32 %v2574, %v2504
        %v2576 = vadd.f32 %v2575, %v2506
        %v2577 = vadd.f32 %v2576, %v2508
        %v2578 = vadd.f32 %v2577, %v2510
        %v2579 = vadd.f32 %v2578, %v2512
        %v2580 = vadd.f32 %v2579, %v2514
        %v2581 = vrot.slane %v2580, 4
        %v2582 = vadd.f32 %v2580, %v2581
        %v2583 = vrot.slane %v2582, 2
        %v2584 = vadd.f32 %v2582, %v2583
        %v2585 = vrot.slane %v2584, 1
        %v2586 = vadd.f32 %v2584, %v2585
        %v2587 = vadd.f32 %v2501, %v2503
        %v2588 = vadd.f32 %v2587, %v2505
        %v2589 = vadd.f32 %v2588, %v2507
        %v2590 = vadd.f32 %v2589, %v2509
        %v2591 = vadd.f32 %v2590, %v2511
        %v2592 = vadd.f32 %v2591, %v2513
        %v2593 = vadd.f32 %v2592, %v2515
        %v2594 = vrot.slane %v2593, 4
        %v2595 = vadd.f32 %v2593, %v2594
        %v2596 = vrot.slane %v2595, 2
        %v2597 = vadd.f32 %v2595, %v2596
        %v2598 = vrot.slane %v2597, 1
        %v2599 = vadd.f32 %v2597, %v2598
        %v2600 = vadd.f32 %v2516, %v2518
        %v2601 = vadd.f32 %v2600, %v2520
        %v2602 = vadd.f32 %v2601, %v2522
        %v2603 = vadd.f32 %v2602, %v2524
        %v2604 = vadd.f32 %v2603, %v2526
        %v2605 = vadd.f32 %v2604, %v2528
        %v2606 = vadd.f32 %v2605, %v2530
        %v2607 = vrot.slane %v2606, 4
        %v2608 = vadd.f32 %v2606, %v2607
        %v2609 = vrot.slane %v2608, 2
        %v2610 = vadd.f32 %v2608, %v2609
        %v2611 = vrot.slane %v2610, 1
        %v2612 = vadd.f32 %v2610, %v2611
        %v2613 = vadd.f32 %v2517, %v2519
        %v2614 = vadd.f32 %v2613, %v2521
        %v2615 = vadd.f32 %v2614, %v2523
        %v2616 = vadd.f32 %v2615, %v2525
        %v2617 = vadd.f32 %v2616, %v2527
        %v2618 = vadd.f32 %v2617, %v2529
        %v2619 = vadd.f32 %v2618, %v2531
        %v2620 = vrot.slane %v2619, 4
        %v2621 = vadd.f32 %v2619, %v2620
        %v2622 = vrot.slane %v2621, 2
        %v2623 = vadd.f32 %v2621, %v2622
        %v2624 = vrot.slane %v2623, 1
        %v2625 = vadd.f32 %v2623, %v2624
        %v2626 = vadd.f32 %v2532, %v2534
        %v2627 = vadd.f32 %v2626, %v2536
        %v2628 = vadd.f32 %v2627, %v2538
        %v2629 = vadd.f32 %v2628, %v2540
        %v2630 = vadd.f32 %v2629, %v2542
        %v2631 = vadd.f32 %v2630, %v2544
        %v2632 = vadd.f32 %v2631, %v2546
        %v2633 = vrot.slane %v2632, 4
        %v2634 = vadd.f32 %v2632, %v2633
        %v2635 = vrot.slane %v2634, 2
        %v2636 = vadd.f32 %v2634, %v2635
        %v2637 = vrot.slane %v2636, 1
        %v2638 = vadd.f32 %v2636, %v2637
        %v2639 = vadd.f32 %v2533, %v2535
        %v2640 = vadd.f32 %v2639, %v2537
        %v2641 = vadd.f32 %v2640, %v2539
        %v2642 = vadd.f32 %v2641, %v2541
        %v2643 = vadd.f32 %v2642, %v2543
        %v2644 = vadd.f32 %v2643, %v2545
        %v2645 = vadd.f32 %v2644, %v2547
        %v2646 = vrot.slane %v2645, 4
        %v2647 = vadd.f32 %v2645, %v2646
        %v2648 = vrot.slane %v2647, 2
        %v2649 = vadd.f32 %v2647, %v2648
        %v2650 = vrot.slane %v2649, 1
        %v2651 = vadd.f32 %v2649, %v2650
        %v2652 = vld [vmem:[#allocation10] sm:$0xff]
        %v2653 = vld [vmem:[#allocation10 + $0x8] sm:$0xff]
        %v2654 = vld [vmem:[#allocation10 + $0x10] sm:$0xff]
        %v2655 = vld [vmem:[#allocation10 + $0x18] sm:$0xff]
        %v2656 = vld [vmem:[#allocation10 + $0x20] sm:$0xff]
        %v2657 = vld [vmem:[#allocation10 + $0x28] sm:$0xff]
        %v2658 = vld [vmem:[#allocation10 + $0x30] sm:$0xff]
        %v2659 = vld [vmem:[#allocation10 + $0x38] sm:$0xff]
        %v2660 = vld [vmem:[#allocation10 + $0x40] sm:$0xff]
        %v2661 = vld [vmem:[#allocation10 + $0x48] sm:$0xff]
        %v2662 = vld [vmem:[#allocation10 + $0x50] sm:$0xff]
        %v2663 = vld [vmem:[#allocation10 + $0x58] sm:$0xff]
        %v2664 = vld [vmem:[#allocation10 + $0x60] sm:$0xff]
        %v2665 = vld [vmem:[#allocation10 + $0x68] sm:$0xff]
        %v2666 = vld [vmem:[#allocation10 + $0x70] sm:$0xff]
        %v2667 = vld [vmem:[#allocation10 + $0x78] sm:$0xff]
        %v2668 = vld [vmem:[#allocation10 + $0x80] sm:$0xff]
        %v2669 = vld [vmem:[#allocation10 + $0x88] sm:$0xff]
        %v2670 = vld [vmem:[#allocation10 + $0x90] sm:$0xff]
        %v2671 = vld [vmem:[#allocation10 + $0x98] sm:$0xff]
        %v2672 = vld [vmem:[#allocation10 + $0xa0] sm:$0xff]
        %v2673 = vld [vmem:[#allocation10 + $0xa8] sm:$0xff]
        %v2674 = vld [vmem:[#allocation10 + $0xb0] sm:$0xff]
        %v2675 = vld [vmem:[#allocation10 + $0xb8] sm:$0xff]
        %v2676 = vld [vmem:[#allocation10 + $0xc0] sm:$0xff]
        %v2677 = vld [vmem:[#allocation10 + $0xc8] sm:$0xff]
        %v2678 = vld [vmem:[#allocation10 + $0xd0] sm:$0xff]
        %v2679 = vld [vmem:[#allocation10 + $0xd8] sm:$0xff]
        %v2680 = vld [vmem:[#allocation10 + $0xe0] sm:$0xff]
        %v2681 = vld [vmem:[#allocation10 + $0xe8] sm:$0xff]
        %v2682 = vld [vmem:[#allocation10 + $0xf0] sm:$0xff]
        %v2683 = vld [vmem:[#allocation10 + $0xf8] sm:$0xff]
        %v2684 = vld [vmem:[#allocation10 + $0x100] sm:$0xff]
        %v2685 = vld [vmem:[#allocation10 + $0x108] sm:$0xff]
        %v2686 = vld [vmem:[#allocation10 + $0x110] sm:$0xff]
        %v2687 = vld [vmem:[#allocation10 + $0x118] sm:$0xff]
        %v2688 = vld [vmem:[#allocation10 + $0x120] sm:$0xff]
        %v2689 = vld [vmem:[#allocation10 + $0x128] sm:$0xff]
        %v2690 = vld [vmem:[#allocation10 + $0x130] sm:$0xff]
        %v2691 = vld [vmem:[#allocation10 + $0x138] sm:$0xff]
        %v2692 = vld [vmem:[#allocation10 + $0x140] sm:$0xff]
        %v2693 = vld [vmem:[#allocation10 + $0x148] sm:$0xff]
        %v2694 = vld [vmem:[#allocation10 + $0x150] sm:$0xff]
        %v2695 = vld [vmem:[#allocation10 + $0x158] sm:$0xff]
        %v2696 = vld [vmem:[#allocation10 + $0x160] sm:$0xff]
        %v2697 = vld [vmem:[#allocation10 + $0x168] sm:$0xff]
        %v2698 = vld [vmem:[#allocation10 + $0x170] sm:$0xff]
        %v2699 = vld [vmem:[#allocation10 + $0x178] sm:$0xff]
        %v2700 = vld [vmem:[#allocation10 + $0x180] sm:$0xff]
        %v2701 = vld [vmem:[#allocation10 + $0x188] sm:$0xff]
        %v2702 = vld [vmem:[#allocation10 + $0x190] sm:$0xff]
        %v2703 = vld [vmem:[#allocation10 + $0x198] sm:$0xff]
        %v2704 = vld [vmem:[#allocation10 + $0x1a0] sm:$0xff]
        %v2705 = vld [vmem:[#allocation10 + $0x1a8] sm:$0xff]
        %v2706 = vld [vmem:[#allocation10 + $0x1b0] sm:$0xff]
        %v2707 = vld [vmem:[#allocation10 + $0x1b8] sm:$0xff]
        %v2708 = vld [vmem:[#allocation10 + $0x1c0] sm:$0xff]
        %v2709 = vld [vmem:[#allocation10 + $0x1c8] sm:$0xff]
        %v2710 = vld [vmem:[#allocation10 + $0x1d0] sm:$0xff]
        %v2711 = vld [vmem:[#allocation10 + $0x1d8] sm:$0xff]
        %v2712 = vld [vmem:[#allocation10 + $0x1e0] sm:$0xff]
        %v2713 = vld [vmem:[#allocation10 + $0x1e8] sm:$0xff]
        %v2714 = vld [vmem:[#allocation10 + $0x1f0] sm:$0xff]
        %v2715 = vld [vmem:[#allocation10 + $0x1f8] sm:$0xff]
        %v2716 = vld [vmem:[#allocation11] sm:$0x3]
        %v2718 = vperm.slane %v2716, 0
        %v2719 = vperm.slane %v2716, 1
        %vm2730 = vcmask 1041409
        %v2731 = vsel %vm2730, %v2586, %v2560
        %vm2732 = vcmask 1042434
        %v2733 = vsel %vm2732, %v2612, %v2731
        %vm2734 = vcmask 1043459
        %v2735 = vsel %vm2734, %v2638, %v2733
        %v2736 = vsel %vm2730, %v2599, %v2573
        %v2737 = vsel %vm2732, %v2625, %v2736
        %v2738 = vsel %vm2734, %v2651, %v2737
        %2741 = vmatpush.msra.mxu0 %v2682
        %2742 = vmatpush.msra.mxu0 %v2680
        %2743 = vmatpush.msra.mxu0 %v2678
        %2744 = vmatpush.msra.mxu0 %v2676
        %2745 = vmatpush.msra.mxu0 %v2674
        %2746 = vmatpush.msra.mxu0 %v2672
        %2747 = vmatpush.msra.mxu0 %v2670
        %2748 = vmatpush.msra.mxu0 %v2668
        %2749 = vmatpush.msra.mxu0 %v2666
        %2750 = vmatpush.msra.mxu0 %v2664
        %2751 = vmatpush.msra.mxu0 %v2662
        %2752 = vmatpush.msra.mxu0 %v2660
        %2753 = vmatpush.msra.mxu0 %v2658
        %2754 = vmatpush.msra.mxu0 %v2656
        %2755 = vmatpush.msra.mxu0 %v2654
        %2756 = vmatpush.msra.mxu0 %v2652
        %2757 = vmatmul.f32.gmra.mxu0 %v2735
        %v2758 = vpop.f32.mrf.mxu0
        %v2759 = vadd.f32 %v2718, %v2758
        %2760 = vdwg.mxu0
        %2761 = vmatpush.msra.mxu0 %v2714
        %2762 = vmatpush.msra.mxu0 %v2712
        %2763 = vmatpush.msra.mxu0 %v2710
        %2764 = vmatpush.msra.mxu0 %v2708
        %2765 = vmatpush.msra.mxu0 %v2706
        %2766 = vmatpush.msra.mxu0 %v2704
        %2767 = vmatpush.msra.mxu0 %v2702
        %2768 = vmatpush.msra.mxu0 %v2700
        %2769 = vmatpush.msra.mxu0 %v2698
        %2770 = vmatpush.msra.mxu0 %v2696
        %2771 = vmatpush.msra.mxu0 %v2694
        %2772 = vmatpush.msra.mxu0 %v2692
        %2773 = vmatpush.msra.mxu0 %v2690
        %2774 = vmatpush.msra.mxu0 %v2688
        %2775 = vmatpush.msra.mxu0 %v2686
        %2776 = vmatpush.msra.mxu0 %v2684
        %2777 = vmatmul.f32.gmra.mxu0 %v2738
        %v2778 = vpop.f32.mrf.mxu0
        %v2779 = vadd.f32 %v2759, %v2778
        %2780 = vdwg.mxu0
        %2781 = vmatpush.msra.mxu0 %v2683
        %2782 = vmatpush.msra.mxu0 %v2681
        %2783 = vmatpush.msra.mxu0 %v2679
        %2784 = vmatpush.msra.mxu0 %v2677
        %2785 = vmatpush.msra.mxu0 %v2675
        %2786 = vmatpush.msra.mxu0 %v2673
        %2787 = vmatpush.msra.mxu0 %v2671
        %2788 = vmatpush.msra.mxu0 %v2669
        %2789 = vmatpush.msra.mxu0 %v2667
        %2790 = vmatpush.msra.mxu0 %v2665
        %2791 = vmatpush.msra.mxu0 %v2663
        %2792 = vmatpush.msra.mxu0 %v2661
        %2793 = vmatpush.msra.mxu0 %v2659
        %2794 = vmatpush.msra.mxu0 %v2657
        %2795 = vmatpush.msra.mxu0 %v2655
        %2796 = vmatpush.msra.mxu0 %v2653
        %2797 = vmatmul.f32.gmra.mxu0 %v2735
        %v2798 = vpop.f32.mrf.mxu0
        %v2799 = vadd.f32 %v2719, %v2798
        %2800 = vdwg.mxu0
        %2801 = vmatpush.msra.mxu0 %v2715
        %2802 = vmatpush.msra.mxu0 %v2713
        %2803 = vmatpush.msra.mxu0 %v2711
        %2804 = vmatpush.msra.mxu0 %v2709
        %2805 = vmatpush.msra.mxu0 %v2707
        %2806 = vmatpush.msra.mxu0 %v2705
        %2807 = vmatpush.msra.mxu0 %v2703
        %2808 = vmatpush.msra.mxu0 %v2701
        %2809 = vmatpush.msra.mxu0 %v2699
        %2810 = vmatpush.msra.mxu0 %v2697
        %2811 = vmatpush.msra.mxu0 %v2695
        %2812 = vmatpush.msra.mxu0 %v2693
        %2813 = vmatpush.msra.mxu0 %v2691
        %2814 = vmatpush.msra.mxu0 %v2689
        %2815 = vmatpush.msra.mxu0 %v2687
        %2816 = vmatpush.msra.mxu0 %v2685
        %2817 = vmatmul.f32.gmra.mxu0 %v2738
        %v2818 = vpop.f32.mrf.mxu0
        %v2819 = vadd.f32 %v2799, %v2818
        %2820 = vdwg.mxu0
        %v2821 = vmax.f32 %v2779, 0.0
        %v2822 = vmax.f32 %v2819, 0.0
        %v2823 = vld [vmem:[#allocation13] sm:$0xff]
        %v2824 = vld [vmem:[#allocation13 + $0x8] sm:$0xff]
        %v2825 = vld [vmem:[#allocation13 + $0x10] sm:$0xff]
        %v2826 = vld [vmem:[#allocation13 + $0x18] sm:$0xff]
        %v2827 = vld [vmem:[#allocation13 + $0x20] sm:$0xff]
        %v2828 = vld [vmem:[#allocation13 + $0x28] sm:$0xff]
        %v2829 = vld [vmem:[#allocation13 + $0x30] sm:$0xff]
        %v2830 = vld [vmem:[#allocation13 + $0x38] sm:$0xff]
        %v2831 = vld [vmem:[#allocation13 + $0x40] sm:$0xff]
        %v2832 = vld [vmem:[#allocation13 + $0x48] sm:$0xff]
        %v2833 = vld [vmem:[#allocation13 + $0x50] sm:$0xff]
        %v2834 = vld [vmem:[#allocation13 + $0x58] sm:$0xff]
        %v2835 = vld [vmem:[#allocation13 + $0x60] sm:$0xff]
        %v2836 = vld [vmem:[#allocation13 + $0x68] sm:$0xff]
        %v2837 = vld [vmem:[#allocation13 + $0x70] sm:$0xff]
        %v2838 = vld [vmem:[#allocation13 + $0x78] sm:$0xff]
        %v2839 = vld [vmem:[#allocation13 + $0x80] sm:$0xff]
        %v2840 = vld [vmem:[#allocation13 + $0x88] sm:$0xff]
        %v2841 = vld [vmem:[#allocation13 + $0x90] sm:$0xff]
        %v2842 = vld [vmem:[#allocation13 + $0x98] sm:$0xff]
        %v2843 = vld [vmem:[#allocation13 + $0xa0] sm:$0xff]
        %v2844 = vld [vmem:[#allocation13 + $0xa8] sm:$0xff]
        %v2845 = vld [vmem:[#allocation13 + $0xb0] sm:$0xff]
        %v2846 = vld [vmem:[#allocation13 + $0xb8] sm:$0xff]
        %v2847 = vld [vmem:[#allocation13 + $0xc0] sm:$0xff]
        %v2848 = vld [vmem:[#allocation13 + $0xc8] sm:$0xff]
        %v2849 = vld [vmem:[#allocation13 + $0xd0] sm:$0xff]
        %v2850 = vld [vmem:[#allocation13 + $0xd8] sm:$0xff]
        %v2851 = vld [vmem:[#allocation13 + $0xe0] sm:$0xff]
        %v2852 = vld [vmem:[#allocation13 + $0xe8] sm:$0xff]
        %v2853 = vld [vmem:[#allocation13 + $0xf0] sm:$0xff]
        %v2854 = vld [vmem:[#allocation13 + $0xf8] sm:$0xff]
        %v2855 = vld [vmem:[#allocation13 + $0x100] sm:$0xff]
        %v2856 = vld [vmem:[#allocation13 + $0x108] sm:$0xff]
        %v2857 = vld [vmem:[#allocation13 + $0x110] sm:$0xff]
        %v2858 = vld [vmem:[#allocation13 + $0x118] sm:$0xff]
        %v2859 = vld [vmem:[#allocation13 + $0x120] sm:$0xff]
        %v2860 = vld [vmem:[#allocation13 + $0x128] sm:$0xff]
        %v2861 = vld [vmem:[#allocation13 + $0x130] sm:$0xff]
        %v2862 = vld [vmem:[#allocation13 + $0x138] sm:$0xff]
        %v2863 = vld [vmem:[#allocation13 + $0x140] sm:$0xff]
        %v2864 = vld [vmem:[#allocation13 + $0x148] sm:$0xff]
        %v2865 = vld [vmem:[#allocation13 + $0x150] sm:$0xff]
        %v2866 = vld [vmem:[#allocation13 + $0x158] sm:$0xff]
        %v2867 = vld [vmem:[#allocation13 + $0x160] sm:$0xff]
        %v2868 = vld [vmem:[#allocation13 + $0x168] sm:$0xff]
        %v2869 = vld [vmem:[#allocation13 + $0x170] sm:$0xff]
        %v2870 = vld [vmem:[#allocation13 + $0x178] sm:$0xff]
        %v2871 = vld [vmem:[#allocation13 + $0x180] sm:$0xff]
        %v2872 = vld [vmem:[#allocation13 + $0x188] sm:$0xff]
        %v2873 = vld [vmem:[#allocation13 + $0x190] sm:$0xff]
        %v2874 = vld [vmem:[#allocation13 + $0x198] sm:$0xff]
        %v2875 = vld [vmem:[#allocation13 + $0x1a0] sm:$0xff]
        %v2876 = vld [vmem:[#allocation13 + $0x1a8] sm:$0xff]
        %v2877 = vld [vmem:[#allocation13 + $0x1b0] sm:$0xff]
        %v2878 = vld [vmem:[#allocation13 + $0x1b8] sm:$0xff]
        %v2879 = vld [vmem:[#allocation13 + $0x1c0] sm:$0xff]
        %v2880 = vld [vmem:[#allocation13 + $0x1c8] sm:$0xff]
        %v2881 = vld [vmem:[#allocation13 + $0x1d0] sm:$0xff]
        %v2882 = vld [vmem:[#allocation13 + $0x1d8] sm:$0xff]
        %v2883 = vld [vmem:[#allocation13 + $0x1e0] sm:$0xff]
        %v2884 = vld [vmem:[#allocation13 + $0x1e8] sm:$0xff]
        %v2885 = vld [vmem:[#allocation13 + $0x1f0] sm:$0xff]
        %v2886 = vld [vmem:[#allocation13 + $0x1f8] sm:$0xff]
        %v2887 = vld [vmem:[#allocation14] sm:$0x3]
        %v2889 = vperm.slane %v2887, 0
        %v2890 = vperm.slane %v2887, 1
        %2893 = vmatpush.msra.mxu0 %v2853
        %2894 = vmatpush.msra.mxu0 %v2851
        %2895 = vmatpush.msra.mxu0 %v2849
        %2896 = vmatpush.msra.mxu0 %v2847
        %2897 = vmatpush.msra.mxu0 %v2845
        %2898 = vmatpush.msra.mxu0 %v2843
        %2899 = vmatpush.msra.mxu0 %v2841
        %2900 = vmatpush.msra.mxu0 %v2839
        %2901 = vmatpush.msra.mxu0 %v2837
        %2902 = vmatpush.msra.mxu0 %v2835
        %2903 = vmatpush.msra.mxu0 %v2833
        %2904 = vmatpush.msra.mxu0 %v2831
        %2905 = vmatpush.msra.mxu0 %v2829
        %2906 = vmatpush.msra.mxu0 %v2827
        %2907 = vmatpush.msra.mxu0 %v2825
        %2908 = vmatpush.msra.mxu0 %v2823
        %2909 = vmatmul.f32.gmra.mxu0 %v2821
        %v2910 = vpop.f32.mrf.mxu0
        %v2911 = vadd.f32 %v2889, %v2910
        %2912 = vdwg.mxu0
        %2913 = vmatpush.msra.mxu0 %v2885
        %2914 = vmatpush.msra.mxu0 %v2883
        %2915 = vmatpush.msra.mxu0 %v2881
        %2916 = vmatpush.msra.mxu0 %v2879
        %2917 = vmatpush.msra.mxu0 %v2877
        %2918 = vmatpush.msra.mxu0 %v2875
        %2919 = vmatpush.msra.mxu0 %v2873
        %2920 = vmatpush.msra.mxu0 %v2871
        %2921 = vmatpush.msra.mxu0 %v2869
        %2922 = vmatpush.msra.mxu0 %v2867
        %2923 = vmatpush.msra.mxu0 %v2865
        %2924 = vmatpush.msra.mxu0 %v2863
        %2925 = vmatpush.msra.mxu0 %v2861
        %2926 = vmatpush.msra.mxu0 %v2859
        %2927 = vmatpush.msra.mxu0 %v2857
        %2928 = vmatpush.msra.mxu0 %v2855
        %2929 = vmatmul.f32.gmra.mxu0 %v2822
        %v2930 = vpop.f32.mrf.mxu0
        %v2931 = vadd.f32 %v2911, %v2930
        %2932 = vdwg.mxu0
        %2933 = vmatpush.msra.mxu0 %v2854
        %2934 = vmatpush.msra.mxu0 %v2852
        %2935 = vmatpush.msra.mxu0 %v2850
        %2936 = vmatpush.msra.mxu0 %v2848
        %2937 = vmatpush.msra.mxu0 %v2846
        %2938 = vmatpush.msra.mxu0 %v2844
        %2939 = vmatpush.msra.mxu0 %v2842
        %2940 = vmatpush.msra.mxu0 %v2840
        %2941 = vmatpush.msra.mxu0 %v2838
        %2942 = vmatpush.msra.mxu0 %v2836
        %2943 = vmatpush.msra.mxu0 %v2834
        %2944 = vmatpush.msra.mxu0 %v2832
        %2945 = vmatpush.msra.mxu0 %v2830
        %2946 = vmatpush.msra.mxu0 %v2828
        %2947 = vmatpush.msra.mxu0 %v2826
        %2948 = vmatpush.msra.mxu0 %v2824
        %2949 = vmatmul.f32.gmra.mxu0 %v2821
        %v2950 = vpop.f32.mrf.mxu0
        %v2951 = vadd.f32 %v2890, %v2950
        %2952 = vdwg.mxu0
        %2953 = vmatpush.msra.mxu0 %v2886
        %2954 = vmatpush.msra.mxu0 %v2884
        %2955 = vmatpush.msra.mxu0 %v2882
        %2956 = vmatpush.msra.mxu0 %v2880
        %2957 = vmatpush.msra.mxu0 %v2878
        %2958 = vmatpush.msra.mxu0 %v2876
        %2959 = vmatpush.msra.mxu0 %v2874
        %2960 = vmatpush.msra.mxu0 %v2872
        %2961 = vmatpush.msra.mxu0 %v2870
        %2962 = vmatpush.msra.mxu0 %v2868
        %2963 = vmatpush.msra.mxu0 %v2866
        %2964 = vmatpush.msra.mxu0 %v2864
        %2965 = vmatpush.msra.mxu0 %v2862
        %2966 = vmatpush.msra.mxu0 %v2860
        %2967 = vmatpush.msra.mxu0 %v2858
        %2968 = vmatpush.msra.mxu0 %v2856
        %2969 = vmatmul.f32.gmra.mxu0 %v2822
        %v2970 = vpop.f32.mrf.mxu0
        %v2971 = vadd.f32 %v2951, %v2970
        %2972 = vdwg.mxu0
        %v2973 = vmax.f32 %v2931, 0.0
        %v2974 = vmax.f32 %v2971, 0.0
        %v2975 = vld [vmem:[%s15] sm:$0xff]
        %v2976 = vld [vmem:[%s15 + $0x8] sm:$0xff]
        %v2977 = vld [vmem:[%s15 + $0x10] sm:$0xff]
        %v2978 = vld [vmem:[%s15 + $0x18] sm:$0xff]
        %v2979 = vld [vmem:[%s15 + $0x20] sm:$0xff]
        %v2980 = vld [vmem:[%s15 + $0x28] sm:$0xff]
        %v2981 = vld [vmem:[%s15 + $0x30] sm:$0xff]
        %v2982 = vld [vmem:[%s15 + $0x38] sm:$0xff]
        %v2983 = vld [vmem:[%s15 + $0x40] sm:$0xff]
        %v2984 = vld [vmem:[%s15 + $0x48] sm:$0xff]
        %v2985 = vld [vmem:[%s15 + $0x50] sm:$0xff]
        %v2986 = vld [vmem:[%s15 + $0x58] sm:$0xff]
        %v2987 = vld [vmem:[%s15 + $0x60] sm:$0xff]
        %v2988 = vld [vmem:[%s15 + $0x68] sm:$0xff]
        %v2989 = vld [vmem:[%s15 + $0x70] sm:$0xff]
        %v2990 = vld [vmem:[%s15 + $0x78] sm:$0xff]
        %v2991 = vld [vmem:[%s15 + $0x80] sm:$0xff]
        %v2992 = vld [vmem:[%s15 + $0x88] sm:$0xff]
        %v2993 = vld [vmem:[%s15 + $0x90] sm:$0xff]
        %v2994 = vld [vmem:[%s15 + $0x98] sm:$0xff]
        %v2995 = vld [vmem:[%s15 + $0xa0] sm:$0xff]
        %v2996 = vld [vmem:[%s15 + $0xa8] sm:$0xff]
        %v2997 = vld [vmem:[%s15 + $0xb0] sm:$0xff]
        %v2998 = vld [vmem:[%s15 + $0xb8] sm:$0xff]
        %v2999 = vld [vmem:[%s15 + $0xc0] sm:$0xff]
        %v3000 = vld [vmem:[%s15 + $0xc8] sm:$0xff]
        %v3001 = vld [vmem:[%s15 + $0xd0] sm:$0xff]
        %v3002 = vld [vmem:[%s15 + $0xd8] sm:$0xff]
        %v3003 = vld [vmem:[%s15 + $0xe0] sm:$0xff]
        %v3004 = vld [vmem:[%s15 + $0xe8] sm:$0xff]
        %v3005 = vld [vmem:[%s15 + $0xf0] sm:$0xff]
        %v3006 = vld [vmem:[%s15 + $0xf8] sm:$0xff]
        %v3007 = vld [vmem:[#allocation16] sm:$0x1]
        %v3009 = vperm.slane %v3007, 0
        %3011 = vmatpush.msra.mxu0 %v2990
        %3012 = vmatpush.msra.mxu0 %v2989
        %3013 = vmatpush.msra.mxu0 %v2988
        %3014 = vmatpush.msra.mxu0 %v2987
        %3015 = vmatpush.msra.mxu0 %v2986
        %3016 = vmatpush.msra.mxu0 %v2985
        %3017 = vmatpush.msra.mxu0 %v2984
        %3018 = vmatpush.msra.mxu0 %v2983
        %3019 = vmatpush.msra.mxu0 %v2982
        %3020 = vmatpush.msra.mxu0 %v2981
        %3021 = vmatpush.msra.mxu0 %v2980
        %3022 = vmatpush.msra.mxu0 %v2979
        %3023 = vmatpush.msra.mxu0 %v2978
        %3024 = vmatpush.msra.mxu0 %v2977
        %3025 = vmatpush.msra.mxu0 %v2976
        %3026 = vmatpush.msra.mxu0 %v2975
        %3027 = vmatmul.f32.gmra.mxu0 %v2973
        %v3028 = vpop.f32.mrf.mxu0
        %v3029 = vadd.f32 %v3009, %v3028
        %3030 = vdwg.mxu0
        %3031 = vmatpush.msra.mxu0 %v3006
        %3032 = vmatpush.msra.mxu0 %v3005
        %3033 = vmatpush.msra.mxu0 %v3004
        %3034 = vmatpush.msra.mxu0 %v3003
        %3035 = vmatpush.msra.mxu0 %v3002
        %3036 = vmatpush.msra.mxu0 %v3001
        %3037 = vmatpush.msra.mxu0 %v3000
        %3038 = vmatpush.msra.mxu0 %v2999
        %3039 = vmatpush.msra.mxu0 %v2998
        %3040 = vmatpush.msra.mxu0 %v2997
        %3041 = vmatpush.msra.mxu0 %v2996
        %3042 = vmatpush.msra.mxu0 %v2995
        %3043 = vmatpush.msra.mxu0 %v2994
        %3044 = vmatpush.msra.mxu0 %v2993
        %3045 = vmatpush.msra.mxu0 %v2992
        %3046 = vmatpush.msra.mxu0 %v2991
        %3047 = vmatmul.f32.gmra.mxu0 %v2974
        %v3048 = vpop.f32.mrf.mxu0
        %v3049 = vadd.f32 %v3029, %v3048
        %3050 = vdwg.mxu0
        %v3051 = vsel %vm1079, %v3049, -inf
        %3052 = vmax.xlane.f32.xlu0 %v3051
        %v3053 = vpop.xlane.xlu0 %3052
        %v3054 = vsub.f32 %v3049, %v3053
        %v3055 = vmul.f32 %v3054, 1.442695
        %v3056 = vpow.pop %v3055
        %v3057 = vsel %vm1079, %v3056, 0.0
        %3058 = vadd.xlane.f32.xlu0 %v3057
        %v3059 = vpop.xlane.xlu0 %3058
        %v3060 = vlog2.pop %v3059
        %v3061 = vmul.f32 %v3060, 0.6931472
        %v3062 = vsub.f32 %v3054, %v3061
        %3063 = vst [vmem:[%s699] sm:$0xf] %v3062
        %s3064 = sand.u32 %s411, 1
        %s3065 = scalar_lea.sflag [#allocation4], %s3064
        %s3066 = sand.u32 %s411, 1
        %s3067 = smul.addr %s3066, 4
        %s3068 = scalar_lea.vmem [#allocation17], %s3067
        // Predicated region
        $region125: #{tpu_custom_call.1} parent=87 // pred_check
          %p3069 = pneg %p421
        $region126: #{tpu_custom_call.1} parent=87 // pred_check_branch
          %3071 = sbr.rel (%p3069) target = $region128
        $region127: #{tpu_custom_call.1} parent=87 // pred_region
          %3073 = vsyncadd %s3065, 0
          %s3074 = smul.addr %s36, 4
          %s3075 = scalar_lea.hbm %s17, %s3074
          %s3077 = sshll.u32 %s3068, 4
          %s3078 = int_to_ptr.vmem [resolvable:$true] %s3077
          %s3079 = sshll.u32 %s3075, 4
          %s3080 = int_to_ptr.hbm [resolvable:$true] %s3079
          %3082 = dma.vmem_to_hbm [thread:$0]  %s3078, 64, %s3080, %s3065
        $region128: #{tpu_custom_call.1} parent=87 // pred_fallthru
          _
      $region88: #{tpu_custom_call.1} parent=5 // pred_fallthru
        _
      %p3083 = scmp.le.s32.totalorder 2, %s31
      // Predicated region
      $region129: #{tpu_custom_call.1} parent=5 // pred_check
        %p3084 = pneg %p3083
      $region130: #{tpu_custom_call.1} parent=5 // pred_check_branch
        %3086 = sbr.rel (%p3084) target = $region132
      $region131: #{tpu_custom_call.1} parent=5 // pred_region
        %s3087 = ssub.s32 %s31, 2
        // Predicated region
        $region133: #{tpu_custom_call.1} parent=131 // pred_check
          %p3088 = pneg %p427
        $region134: #{tpu_custom_call.1} parent=131 // pred_check_branch
          %3090 = sbr.rel (%p3088) target = $region136
        $region135: #{tpu_custom_call.1} parent=131 // pred_region
          %s3091 = sand.u32 %s412, 1
          %s3092 = scalar_lea.sflag [#allocation4], %s3091
          %s3093 = sand.u32 %s412, 1
          %s3094 = smul.addr %s3093, 4
          %s3095 = scalar_lea.vmem [#allocation17], %s3094
          %3097 = dma.done %s3092, 64
        $region136: #{tpu_custom_call.1} parent=131 // pred_fallthru
          _
      $region132: #{tpu_custom_call.1} parent=5 // pred_fallthru
        _
    $region6: #{tpu_custom_call.1} parent=1 // loop_footer
      %s35 = sadd.s32 1, %s31
    $region7: #{tpu_custom_call.1} parent=1 // loop_footer_branch
      %30 = sbr.rel target = $region3
    $region8: #{tpu_custom_call.1} parent=1 // loop_exit
      _
    %3098 = vsyncpa [#allocation3], 1
    %s3099 = scalar_lea.sflag [#allocation3], 1
    %3100 = vsyncpa %s3099, 1
    %3101 = vsyncpa [#allocation6], 1
    %3102 = vsyncpa [#allocation9], 1
    %3103 = vsyncpa [#allocation12], 1
    %3104 = vsyncpa [#allocation15], 1
    %3105 = vsyncpa [#allocation4], 1
    %s3106 = scalar_lea.sflag [#allocation4], 1
    %3107 = vsyncpa %s3106, 1

</llo_original>
